<compile_context>
chip_gen: v7x
topology: tpu7x:2x2x1
jax: 0.10.0
libtpu: 0.0.40
codegen_flags: <defaults>
</compile_context>

<pallas_src>
import functools

import jax
import jax.numpy as jnp
from jax.experimental import pallas as pl
from jax.experimental.pallas import tpu as pltpu


def _round_up(n, m):
    return (n + m - 1) // m * m


def _conv_rows_kernel(t00, t01, t10, t11, t20, t21, wt_ref, b_ref, o_ref,
                      *, rows, wo):
    """Computes `rows` output rows of a 3x3/stride-2 conv + bias + ReLU.

    t{kh}{pw}: (rows, cin, wo+1) row-tap / column-parity input tiles (VMEM).
               Row tap kh in {0,1,2}; column parity pw = kw % 2.
    wt_ref:    (cout, 9*cin)  transposed im2col weights, rows (kh, kw, ci).
    b_ref:     (cout, 1)      bias (lane-broadcast).
    o_ref:     (rows, cout, wo) output tile (channel-major per row).
    """
    wt = wt_ref[...]
    b = b_ref[...]
    taps = (t00[...], t01[...], t10[...], t11[...], t20[...], t21[...])

    # Static unroll over the (small) number of rows handled per grid step.
    for rr in range(rows):
        parts = []
        for kh in range(3):
            for kw in range(3):
                t = taps[kh * 2 + (kw % 2)]          # (rows, cin, wo+1)
                c0 = kw // 2                          # column offset 0 or 1
                parts.append(t[rr, :, c0:c0 + wo])    # (cin, wo), static slice
        p = jnp.concatenate(parts, axis=0)            # (9*cin, wo) = (K, wo)
        acc = jnp.dot(wt, p, preferred_element_type=jnp.float32)
        o_ref[rr] = jnp.maximum(acc + b, 0.0).astype(o_ref.dtype)


def _pick_rows_per_step(rows_total, wo):
    """Rows per grid step: ~512 output positions/step, >=2 parallel steps."""
    r = max(1, 512 // max(wo, 1))
    r = min(r, rows_total)
    while rows_total % r:
        r -= 1
    if rows_total // r < 2 and rows_total >= 2:
        r = max(1, rows_total // 2)
        while rows_total % r:
            r -= 1
    return r


def conv3x3_s2_relu(x_bhcw, wt, b2):
    """3x3 stride-2 conv (padding=1) + bias + ReLU, channel-major rows.

    x_bhcw: (B, H, C, W) float32 activation.
    wt:     (Cout, 9*Cpad) pre-packed im2col weights (Cpad = C rounded to 8).
    b2:     (Cout, 1) bias.
    Returns (B, H//2, Cout, W//2) float32.
    """
    B, H, C, W = x_bhcw.shape
    Cout = wt.shape[0]
    cpad = wt.shape[1] // 9
    assert H % 2 == 0 and W % 2 == 0
    Ho, Wo = H // 2, W // 2
    rows = B * Ho
    K = 9 * cpad

    # ---- wrapper-side layout glue (no 9x im2col expansion in HBM) ----
    if cpad != C:  # pad channels to a sublane-aligned count (zeros)
        x_bhcw = jnp.pad(x_bhcw, ((0, 0), (0, 0), (0, cpad - C), (0, 0)))
    xp = jnp.pad(x_bhcw, ((0, 0), (1, 1), (0, 0), (1, 1)))   # halo pad H, W
    taps = []
    for r in range(3):            # row tap kh
        for pw in range(2):       # column parity kw % 2
            t = xp[:, r:r + 2 * Ho:2, :, pw::2]      # (B, Ho, cpad, Wo+1)
            taps.append(t.reshape(rows, cpad, Wo + 1))

    rstep = _pick_rows_per_step(rows, Wo)
    grid = (rows // rstep,)

    kernel = functools.partial(_conv_rows_kernel, rows=rstep, wo=Wo)
    tap_spec = pl.BlockSpec((rstep, cpad, Wo + 1), lambda i: (i, 0, 0))

    flops = 2 * Cout * K * rows * Wo
    bytes_accessed = 4 * (6 * rows * cpad * (Wo + 1)
                          + Cout * K + Cout + rows * Cout * Wo)

    out = pl.pallas_call(
        kernel,
        out_shape=jax.ShapeDtypeStruct((rows, Cout, Wo), jnp.float32),
        grid=grid,
        in_specs=[tap_spec] * 6 + [
            pl.BlockSpec((Cout, K), lambda i: (0, 0)),   # weights: resident
            pl.BlockSpec((Cout, 1), lambda i: (0, 0)),   # bias: resident
        ],
        out_specs=pl.BlockSpec((rstep, Cout, Wo), lambda i: (i, 0, 0)),
        compiler_params=pltpu.CompilerParams(
            dimension_semantics=("parallel",),
            vmem_limit_bytes=32 * 1024 * 1024,
        ),
        cost_estimate=pl.CostEstimate(
            flops=flops, transcendentals=0, bytes_accessed=bytes_accessed),
    )(*taps, wt, b2)

    return out.reshape(B, Ho, Cout, Wo)


class ModelEncoderPallas:
    """Pallas re-implementation of ModelEncoder.forward semantics:
    features = encoder(x); return features[encoding_position]."""

    def __init__(self, key, in_chans=3, stage_chans=(16, 32),
                 encoding_position=-1):
        self.encoding_position = encoding_position
        self.out_channels = (in_chans,) + tuple(stage_chans)
        self.out_chans = self.out_channels[encoding_position]
        self.params = []        # (w HWIO, b) kept for the XLA reference check
        self.gemm_params = []   # (wt (Cout, 9*Cpad), b (Cout, 1)) for kernels
        c_prev = in_chans
        for c in stage_chans:
            key, kw_key, kb_key = jax.random.split(key, 3)
            fan_in = 3 * 3 * c_prev
            w = jax.random.normal(kw_key, (3, 3, c_prev, c), jnp.float32)
            w = w * (1.0 / jnp.sqrt(jnp.float32(fan_in)))
            b = jax.random.normal(kb_key, (c,), jnp.float32) * 0.01
            self.params.append((w, b))
            # Pre-pack weights ONCE into GEMM layout (review item): pad Cin to
            # a multiple of 8 and transpose to (Cout, K).
            cpad = _round_up(c_prev, 8)
            w_pad = jnp.pad(w, ((0, 0), (0, 0), (0, cpad - c_prev), (0, 0)))
            wt = jnp.asarray(w_pad.reshape(9 * cpad, c).T)
            self.gemm_params.append((wt, b.reshape(c, 1)))
            c_prev = c

    def __call__(self, x_nchw):
        # NCHW -> channel-major rows (B, H, C, W); converted back only once.
        x = jnp.transpose(x_nchw, (0, 2, 1, 3)).astype(jnp.float32)
        features = [x]                       # stage 0: identity (SMP contract)
        for wt, b2 in self.gemm_params:
            x = conv3x3_s2_relu(x, wt, b2)
            features.append(x)
        out = features[self.encoding_position]
        return jnp.transpose(out, (0, 2, 1, 3))   # (B,H,C,W) -> NCHW


def _reference_forward(x_nchw, params, encoding_position):
    """Pure-XLA reference (same math) used for correctness verification."""
    x = jnp.transpose(x_nchw, (0, 2, 3, 1)).astype(jnp.float32)
    feats = [x]
    for w, b in params:
        y = jax.lax.conv_general_dilated(
            x, w, window_strides=(2, 2), padding=((1, 1), (1, 1)),
            dimension_numbers=("NHWC", "HWIO", "NHWC"))
        x = jnp.maximum(y + b, 0.0)
        feats.append(x)
    return jnp.transpose(feats[encoding_position], (0, 3, 1, 2))


if __name__ == "__main__":
    key = jax.random.PRNGKey(0)
    key_x, key_p = jax.random.split(key)

    # Small shapes consistent with the module: batch=2, 3-channel 16x16 image.
    x = jax.random.normal(key_x, (2, 3, 16, 16), jnp.float32)

    encoder = ModelEncoderPallas(key_p, in_chans=3, stage_chans=(16, 32),
                                 encoding_position=-1)

    out = jax.jit(encoder.__call__)(x)
    out = jax.block_until_ready(out)

    ref = _reference_forward(x, encoder.params, encoder.encoding_position)
    ref = jax.block_until_ready(ref)

    assert out.shape == (2, encoder.out_chans, 4, 4), out.shape
    assert jnp.allclose(out, ref, atol=1e-4, rtol=1e-4), "mismatch vs XLA reference"

    print("KERNEL_OK")
</pallas_src>

<mosaic_0001>
module attributes {stable_mosaic.version = 11 : i64} {
  func.func @_conv_rows_kernel(%arg0: i32, %arg1: memref<8x8x9xf32, #tpu.memory_space<vmem>>, %arg2: memref<8x8x9xf32, #tpu.memory_space<vmem>>, %arg3: memref<8x8x9xf32, #tpu.memory_space<vmem>>, %arg4: memref<8x8x9xf32, #tpu.memory_space<vmem>>, %arg5: memref<8x8x9xf32, #tpu.memory_space<vmem>>, %arg6: memref<8x8x9xf32, #tpu.memory_space<vmem>>, %arg7: memref<16x72xf32, #tpu.memory_space<vmem>>, %arg8: memref<16x1xf32, #tpu.memory_space<vmem>>, %arg9: memref<8x16x8xf32, #tpu.memory_space<vmem>>) attributes {dimension_semantics = [#tpu.dimension_semantics<parallel>], iteration_bounds = array<i64: 2>, scalar_prefetch = 0 : i64, scratch_operands = 0 : i64, tpu.core_type = #tpu.core_type<tc>, window_params = [{transform_indices = @transform_0, window_bounds = array<i64: 8, 8, 9>}, {transform_indices = @transform_1, window_bounds = array<i64: 8, 8, 9>}, {transform_indices = @transform_2, window_bounds = array<i64: 8, 8, 9>}, {transform_indices = @transform_3, window_bounds = array<i64: 8, 8, 9>}, {transform_indices = @transform_4, window_bounds = array<i64: 8, 8, 9>}, {transform_indices = @transform_5, window_bounds = array<i64: 8, 8, 9>}, {pipeline_mode = #tpu.pipeline_mode<synchronous>, transform_indices = @transform_6, window_bounds = array<i64: 16, 72>}, {pipeline_mode = #tpu.pipeline_mode<synchronous>, transform_indices = @transform_7, window_bounds = array<i64: 16, 1>}, {transform_indices = @transform_8, window_bounds = array<i64: 8, 16, 8>}]} {
    %c0 = arith.constant 0 : index
    %c0_0 = arith.constant 0 : index
    %0 = vector.load %arg7[%c0, %c0_0] : memref<16x72xf32, #tpu.memory_space<vmem>>, vector<16x72xf32>
    %c0_1 = arith.constant 0 : index
    %c0_2 = arith.constant 0 : index
    %1 = vector.load %arg8[%c0_1, %c0_2] : memref<16x1xf32, #tpu.memory_space<vmem>>, vector<16x1xf32>
    %c0_3 = arith.constant 0 : index
    %c0_4 = arith.constant 0 : index
    %c0_5 = arith.constant 0 : index
    %2 = vector.load %arg1[%c0_3, %c0_4, %c0_5] : memref<8x8x9xf32, #tpu.memory_space<vmem>>, vector<8x8x9xf32>
    %c0_6 = arith.constant 0 : index
    %c0_7 = arith.constant 0 : index
    %c0_8 = arith.constant 0 : index
    %3 = vector.load %arg2[%c0_6, %c0_7, %c0_8] : memref<8x8x9xf32, #tpu.memory_space<vmem>>, vector<8x8x9xf32>
    %c0_9 = arith.constant 0 : index
    %c0_10 = arith.constant 0 : index
    %c0_11 = arith.constant 0 : index
    %4 = vector.load %arg3[%c0_9, %c0_10, %c0_11] : memref<8x8x9xf32, #tpu.memory_space<vmem>>, vector<8x8x9xf32>
    %c0_12 = arith.constant 0 : index
    %c0_13 = arith.constant 0 : index
    %c0_14 = arith.constant 0 : index
    %5 = vector.load %arg4[%c0_12, %c0_13, %c0_14] : memref<8x8x9xf32, #tpu.memory_space<vmem>>, vector<8x8x9xf32>
    %c0_15 = arith.constant 0 : index
    %c0_16 = arith.constant 0 : index
    %c0_17 = arith.constant 0 : index
    %6 = vector.load %arg5[%c0_15, %c0_16, %c0_17] : memref<8x8x9xf32, #tpu.memory_space<vmem>>, vector<8x8x9xf32>
    %c0_18 = arith.constant 0 : index
    %c0_19 = arith.constant 0 : index
    %c0_20 = arith.constant 0 : index
    %7 = vector.load %arg6[%c0_18, %c0_19, %c0_20] : memref<8x8x9xf32, #tpu.memory_space<vmem>>, vector<8x8x9xf32>
    %8 = vector.extract_strided_slice %2 {offsets = [0, 0, 0], sizes = [1, 8, 8], strides = [1, 1, 1]} : vector<8x8x9xf32> to vector<1x8x8xf32>
    %9 = vector.shape_cast %8 : vector<1x8x8xf32> to vector<8x8xf32>
    %10 = vector.extract_strided_slice %3 {offsets = [0, 0, 0], sizes = [1, 8, 8], strides = [1, 1, 1]} : vector<8x8x9xf32> to vector<1x8x8xf32>
    %11 = vector.shape_cast %10 : vector<1x8x8xf32> to vector<8x8xf32>
    %12 = vector.extract_strided_slice %2 {offsets = [0, 0, 1], sizes = [1, 8, 8], strides = [1, 1, 1]} : vector<8x8x9xf32> to vector<1x8x8xf32>
    %13 = vector.shape_cast %12 : vector<1x8x8xf32> to vector<8x8xf32>
    %14 = vector.extract_strided_slice %4 {offsets = [0, 0, 0], sizes = [1, 8, 8], strides = [1, 1, 1]} : vector<8x8x9xf32> to vector<1x8x8xf32>
    %15 = vector.shape_cast %14 : vector<1x8x8xf32> to vector<8x8xf32>
    %16 = vector.extract_strided_slice %5 {offsets = [0, 0, 0], sizes = [1, 8, 8], strides = [1, 1, 1]} : vector<8x8x9xf32> to vector<1x8x8xf32>
    %17 = vector.shape_cast %16 : vector<1x8x8xf32> to vector<8x8xf32>
    %18 = vector.extract_strided_slice %4 {offsets = [0, 0, 1], sizes = [1, 8, 8], strides = [1, 1, 1]} : vector<8x8x9xf32> to vector<1x8x8xf32>
    %19 = vector.shape_cast %18 : vector<1x8x8xf32> to vector<8x8xf32>
    %20 = vector.extract_strided_slice %6 {offsets = [0, 0, 0], sizes = [1, 8, 8], strides = [1, 1, 1]} : vector<8x8x9xf32> to vector<1x8x8xf32>
    %21 = vector.shape_cast %20 : vector<1x8x8xf32> to vector<8x8xf32>
    %22 = vector.extract_strided_slice %7 {offsets = [0, 0, 0], sizes = [1, 8, 8], strides = [1, 1, 1]} : vector<8x8x9xf32> to vector<1x8x8xf32>
    %23 = vector.shape_cast %22 : vector<1x8x8xf32> to vector<8x8xf32>
    %24 = vector.extract_strided_slice %6 {offsets = [0, 0, 1], sizes = [1, 8, 8], strides = [1, 1, 1]} : vector<8x8x9xf32> to vector<1x8x8xf32>
    %25 = vector.shape_cast %24 : vector<1x8x8xf32> to vector<8x8xf32>
    %26 = tpu.concatenate %9, %11, %13, %15, %17, %19, %21, %23, %25 in 0 : vector<8x8xf32>, vector<8x8xf32>, vector<8x8xf32>, vector<8x8xf32>, vector<8x8xf32>, vector<8x8xf32>, vector<8x8xf32>, vector<8x8xf32>, vector<8x8xf32> -> vector<72x8xf32>
    %cst = arith.constant dense<0.000000e+00> : vector<16x8xf32>
    %27 = tpu.matmul %0, %26, %cst {dimension_numbers = #tpu.dot_dimension_numbers<[1], [0], [0], [1], [0, 0, 1, 1], [], []>} : vector<16x72xf32>, vector<72x8xf32>, vector<16x8xf32> -> vector<16x8xf32>
    %28 = vector.broadcast %1 : vector<16x1xf32> to vector<16x8xf32>
    %29 = arith.addf %27, %28 : vector<16x8xf32>
    %cst_21 = arith.constant 0.000000e+00 : f32
    %30 = vector.broadcast %cst_21 : f32 to vector<16x8xf32>
    %31 = arith.maximumf %29, %30 : vector<16x8xf32>
    %c0_22 = arith.constant 0 : index
    %c0_23 = arith.constant 0 : index
    %c0_24 = arith.constant 0 : index
    %32 = vector.load %arg9[%c0_22, %c0_23, %c0_24] : memref<8x16x8xf32, #tpu.memory_space<vmem>>, vector<1x16x8xf32>
    %33 = vector.shape_cast %32 : vector<1x16x8xf32> to vector<16x8xf32>
    %34 = vector.shape_cast %31 : vector<16x8xf32> to vector<1x16x8xf32>
    tpu.vector_store %arg9[%c0_22, %c0_23, %c0_24], %34 {strides = array<i32>} : memref<8x16x8xf32, #tpu.memory_space<vmem>>, vector<1x16x8xf32>,
    %35 = vector.extract_strided_slice %2 {offsets = [1, 0, 0], sizes = [1, 8, 8], strides = [1, 1, 1]} : vector<8x8x9xf32> to vector<1x8x8xf32>
    %36 = vector.shape_cast %35 : vector<1x8x8xf32> to vector<8x8xf32>
    %37 = vector.extract_strided_slice %3 {offsets = [1, 0, 0], sizes = [1, 8, 8], strides = [1, 1, 1]} : vector<8x8x9xf32> to vector<1x8x8xf32>
    %38 = vector.shape_cast %37 : vector<1x8x8xf32> to vector<8x8xf32>
    %39 = vector.extract_strided_slice %2 {offsets = [1, 0, 1], sizes = [1, 8, 8], strides = [1, 1, 1]} : vector<8x8x9xf32> to vector<1x8x8xf32>
    %40 = vector.shape_cast %39 : vector<1x8x8xf32> to vector<8x8xf32>
    %41 = vector.extract_strided_slice %4 {offsets = [1, 0, 0], sizes = [1, 8, 8], strides = [1, 1, 1]} : vector<8x8x9xf32> to vector<1x8x8xf32>
    %42 = vector.shape_cast %41 : vector<1x8x8xf32> to vector<8x8xf32>
    %43 = vector.extract_strided_slice %5 {offsets = [1, 0, 0], sizes = [1, 8, 8], strides = [1, 1, 1]} : vector<8x8x9xf32> to vector<1x8x8xf32>
    %44 = vector.shape_cast %43 : vector<1x8x8xf32> to vector<8x8xf32>
    %45 = vector.extract_strided_slice %4 {offsets = [1, 0, 1], sizes = [1, 8, 8], strides = [1, 1, 1]} : vector<8x8x9xf32> to vector<1x8x8xf32>
    %46 = vector.shape_cast %45 : vector<1x8x8xf32> to vector<8x8xf32>
    %47 = vector.extract_strided_slice %6 {offsets = [1, 0, 0], sizes = [1, 8, 8], strides = [1, 1, 1]} : vector<8x8x9xf32> to vector<1x8x8xf32>
    %48 = vector.shape_cast %47 : vector<1x8x8xf32> to vector<8x8xf32>
    %49 = vector.extract_strided_slice %7 {offsets = [1, 0, 0], sizes = [1, 8, 8], strides = [1, 1, 1]} : vector<8x8x9xf32> to vector<1x8x8xf32>
    %50 = vector.shape_cast %49 : vector<1x8x8xf32> to vector<8x8xf32>
    %51 = vector.extract_strided_slice %6 {offsets = [1, 0, 1], sizes = [1, 8, 8], strides = [1, 1, 1]} : vector<8x8x9xf32> to vector<1x8x8xf32>
    %52 = vector.shape_cast %51 : vector<1x8x8xf32> to vector<8x8xf32>
    %53 = tpu.concatenate %36, %38, %40, %42, %44, %46, %48, %50, %52 in 0 : vector<8x8xf32>, vector<8x8xf32>, vector<8x8xf32>, vector<8x8xf32>, vector<8x8xf32>, vector<8x8xf32>, vector<8x8xf32>, vector<8x8xf32>, vector<8x8xf32> -> vector<72x8xf32>
    %cst_25 = arith.constant dense<0.000000e+00> : vector<16x8xf32>
    %54 = tpu.matmul %0, %53, %cst_25 {dimension_numbers = #tpu.dot_dimension_numbers<[1], [0], [0], [1], [0, 0, 1, 1], [], []>} : vector<16x72xf32>, vector<72x8xf32>, vector<16x8xf32> -> vector<16x8xf32>
    %55 = vector.broadcast %1 : vector<16x1xf32> to vector<16x8xf32>
    %56 = arith.addf %54, %55 : vector<16x8xf32>
    %cst_26 = arith.constant 0.000000e+00 : f32
    %57 = vector.broadcast %cst_26 : f32 to vector<16x8xf32>
    %58 = arith.maximumf %56, %57 : vector<16x8xf32>
    %c1 = arith.constant 1 : index
    %c0_27 = arith.constant 0 : index
    %c0_28 = arith.constant 0 : index
    %59 = vector.load %arg9[%c1, %c0_27, %c0_28] : memref<8x16x8xf32, #tpu.memory_space<vmem>>, vector<1x16x8xf32>
    %60 = vector.shape_cast %59 : vector<1x16x8xf32> to vector<16x8xf32>
    %61 = vector.shape_cast %58 : vector<16x8xf32> to vector<1x16x8xf32>
    tpu.vector_store %arg9[%c1, %c0_27, %c0_28], %61 {strides = array<i32>} : memref<8x16x8xf32, #tpu.memory_space<vmem>>, vector<1x16x8xf32>,
    %62 = vector.extract_strided_slice %2 {offsets = [2, 0, 0], sizes = [1, 8, 8], strides = [1, 1, 1]} : vector<8x8x9xf32> to vector<1x8x8xf32>
    %63 = vector.shape_cast %62 : vector<1x8x8xf32> to vector<8x8xf32>
    %64 = vector.extract_strided_slice %3 {offsets = [2, 0, 0], sizes = [1, 8, 8], strides = [1, 1, 1]} : vector<8x8x9xf32> to vector<1x8x8xf32>
    %65 = vector.shape_cast %64 : vector<1x8x8xf32> to vector<8x8xf32>
    %66 = vector.extract_strided_slice %2 {offsets = [2, 0, 1], sizes = [1, 8, 8], strides = [1, 1, 1]} : vector<8x8x9xf32> to vector<1x8x8xf32>
    %67 = vector.shape_cast %66 : vector<1x8x8xf32> to vector<8x8xf32>
    %68 = vector.extract_strided_slice %4 {offsets = [2, 0, 0], sizes = [1, 8, 8], strides = [1, 1, 1]} : vector<8x8x9xf32> to vector<1x8x8xf32>
    %69 = vector.shape_cast %68 : vector<1x8x8xf32> to vector<8x8xf32>
    %70 = vector.extract_strided_slice %5 {offsets = [2, 0, 0], sizes = [1, 8, 8], strides = [1, 1, 1]} : vector<8x8x9xf32> to vector<1x8x8xf32>
    %71 = vector.shape_cast %70 : vector<1x8x8xf32> to vector<8x8xf32>
    %72 = vector.extract_strided_slice %4 {offsets = [2, 0, 1], sizes = [1, 8, 8], strides = [1, 1, 1]} : vector<8x8x9xf32> to vector<1x8x8xf32>
    %73 = vector.shape_cast %72 : vector<1x8x8xf32> to vector<8x8xf32>
    %74 = vector.extract_strided_slice %6 {offsets = [2, 0, 0], sizes = [1, 8, 8], strides = [1, 1, 1]} : vector<8x8x9xf32> to vector<1x8x8xf32>
    %75 = vector.shape_cast %74 : vector<1x8x8xf32> to vector<8x8xf32>
    %76 = vector.extract_strided_slice %7 {offsets = [2, 0, 0], sizes = [1, 8, 8], strides = [1, 1, 1]} : vector<8x8x9xf32> to vector<1x8x8xf32>
    %77 = vector.shape_cast %76 : vector<1x8x8xf32> to vector<8x8xf32>
    %78 = vector.extract_strided_slice %6 {offsets = [2, 0, 1], sizes = [1, 8, 8], strides = [1, 1, 1]} : vector<8x8x9xf32> to vector<1x8x8xf32>
    %79 = vector.shape_cast %78 : vector<1x8x8xf32> to vector<8x8xf32>
    %80 = tpu.concatenate %63, %65, %67, %69, %71, %73, %75, %77, %79 in 0 : vector<8x8xf32>, vector<8x8xf32>, vector<8x8xf32>, vector<8x8xf32>, vector<8x8xf32>, vector<8x8xf32>, vector<8x8xf32>, vector<8x8xf32>, vector<8x8xf32> -> vector<72x8xf32>
    %cst_29 = arith.constant dense<0.000000e+00> : vector<16x8xf32>
    %81 = tpu.matmul %0, %80, %cst_29 {dimension_numbers = #tpu.dot_dimension_numbers<[1], [0], [0], [1], [0, 0, 1, 1], [], []>} : vector<16x72xf32>, vector<72x8xf32>, vector<16x8xf32> -> vector<16x8xf32>
    %82 = vector.broadcast %1 : vector<16x1xf32> to vector<16x8xf32>
    %83 = arith.addf %81, %82 : vector<16x8xf32>
    %cst_30 = arith.constant 0.000000e+00 : f32
    %84 = vector.broadcast %cst_30 : f32 to vector<16x8xf32>
    %85 = arith.maximumf %83, %84 : vector<16x8xf32>
    %c2 = arith.constant 2 : index
    %c0_31 = arith.constant 0 : index
    %c0_32 = arith.constant 0 : index
    %86 = vector.load %arg9[%c2, %c0_31, %c0_32] : memref<8x16x8xf32, #tpu.memory_space<vmem>>, vector<1x16x8xf32>
    %87 = vector.shape_cast %86 : vector<1x16x8xf32> to vector<16x8xf32>
    %88 = vector.shape_cast %85 : vector<16x8xf32> to vector<1x16x8xf32>
    tpu.vector_store %arg9[%c2, %c0_31, %c0_32], %88 {strides = array<i32>} : memref<8x16x8xf32, #tpu.memory_space<vmem>>, vector<1x16x8xf32>,
    %89 = vector.extract_strided_slice %2 {offsets = [3, 0, 0], sizes = [1, 8, 8], strides = [1, 1, 1]} : vector<8x8x9xf32> to vector<1x8x8xf32>
    %90 = vector.shape_cast %89 : vector<1x8x8xf32> to vector<8x8xf32>
    %91 = vector.extract_strided_slice %3 {offsets = [3, 0, 0], sizes = [1, 8, 8], strides = [1, 1, 1]} : vector<8x8x9xf32> to vector<1x8x8xf32>
    %92 = vector.shape_cast %91 : vector<1x8x8xf32> to vector<8x8xf32>
    %93 = vector.extract_strided_slice %2 {offsets = [3, 0, 1], sizes = [1, 8, 8], strides = [1, 1, 1]} : vector<8x8x9xf32> to vector<1x8x8xf32>
    %94 = vector.shape_cast %93 : vector<1x8x8xf32> to vector<8x8xf32>
    %95 = vector.extract_strided_slice %4 {offsets = [3, 0, 0], sizes = [1, 8, 8], strides = [1, 1, 1]} : vector<8x8x9xf32> to vector<1x8x8xf32>
    %96 = vector.shape_cast %95 : vector<1x8x8xf32> to vector<8x8xf32>
    %97 = vector.extract_strided_slice %5 {offsets = [3, 0, 0], sizes = [1, 8, 8], strides = [1, 1, 1]} : vector<8x8x9xf32> to vector<1x8x8xf32>
    %98 = vector.shape_cast %97 : vector<1x8x8xf32> to vector<8x8xf32>
    %99 = vector.extract_strided_slice %4 {offsets = [3, 0, 1], sizes = [1, 8, 8], strides = [1, 1, 1]} : vector<8x8x9xf32> to vector<1x8x8xf32>
    %100 = vector.shape_cast %99 : vector<1x8x8xf32> to vector<8x8xf32>
    %101 = vector.extract_strided_slice %6 {offsets = [3, 0, 0], sizes = [1, 8, 8], strides = [1, 1, 1]} : vector<8x8x9xf32> to vector<1x8x8xf32>
    %102 = vector.shape_cast %101 : vector<1x8x8xf32> to vector<8x8xf32>
    %103 = vector.extract_strided_slice %7 {offsets = [3, 0, 0], sizes = [1, 8, 8], strides = [1, 1, 1]} : vector<8x8x9xf32> to vector<1x8x8xf32>
    %104 = vector.shape_cast %103 : vector<1x8x8xf32> to vector<8x8xf32>
    %105 = vector.extract_strided_slice %6 {offsets = [3, 0, 1], sizes = [1, 8, 8], strides = [1, 1, 1]} : vector<8x8x9xf32> to vector<1x8x8xf32>
    %106 = vector.shape_cast %105 : vector<1x8x8xf32> to vector<8x8xf32>
    %107 = tpu.concatenate %90, %92, %94, %96, %98, %100, %102, %104, %106 in 0 : vector<8x8xf32>, vector<8x8xf32>, vector<8x8xf32>, vector<8x8xf32>, vector<8x8xf32>, vector<8x8xf32>, vector<8x8xf32>, vector<8x8xf32>, vector<8x8xf32> -> vector<72x8xf32>
    %cst_33 = arith.constant dense<0.000000e+00> : vector<16x8xf32>
    %108 = tpu.matmul %0, %107, %cst_33 {dimension_numbers = #tpu.dot_dimension_numbers<[1], [0], [0], [1], [0, 0, 1, 1], [], []>} : vector<16x72xf32>, vector<72x8xf32>, vector<16x8xf32> -> vector<16x8xf32>
    %109 = vector.broadcast %1 : vector<16x1xf32> to vector<16x8xf32>
    %110 = arith.addf %108, %109 : vector<16x8xf32>
    %cst_34 = arith.constant 0.000000e+00 : f32
    %111 = vector.broadcast %cst_34 : f32 to vector<16x8xf32>
    %112 = arith.maximumf %110, %111 : vector<16x8xf32>
    %c3 = arith.constant 3 : index
    %c0_35 = arith.constant 0 : index
    %c0_36 = arith.constant 0 : index
    %113 = vector.load %arg9[%c3, %c0_35, %c0_36] : memref<8x16x8xf32, #tpu.memory_space<vmem>>, vector<1x16x8xf32>
    %114 = vector.shape_cast %113 : vector<1x16x8xf32> to vector<16x8xf32>
    %115 = vector.shape_cast %112 : vector<16x8xf32> to vector<1x16x8xf32>
    tpu.vector_store %arg9[%c3, %c0_35, %c0_36], %115 {strides = array<i32>} : memref<8x16x8xf32, #tpu.memory_space<vmem>>, vector<1x16x8xf32>,
    %116 = vector.extract_strided_slice %2 {offsets = [4, 0, 0], sizes = [1, 8, 8], strides = [1, 1, 1]} : vector<8x8x9xf32> to vector<1x8x8xf32>
    %117 = vector.shape_cast %116 : vector<1x8x8xf32> to vector<8x8xf32>
    %118 = vector.extract_strided_slice %3 {offsets = [4, 0, 0], sizes = [1, 8, 8], strides = [1, 1, 1]} : vector<8x8x9xf32> to vector<1x8x8xf32>
    %119 = vector.shape_cast %118 : vector<1x8x8xf32> to vector<8x8xf32>
    %120 = vector.extract_strided_slice %2 {offsets = [4, 0, 1], sizes = [1, 8, 8], strides = [1, 1, 1]} : vector<8x8x9xf32> to vector<1x8x8xf32>
    %121 = vector.shape_cast %120 : vector<1x8x8xf32> to vector<8x8xf32>
    %122 = vector.extract_strided_slice %4 {offsets = [4, 0, 0], sizes = [1, 8, 8], strides = [1, 1, 1]} : vector<8x8x9xf32> to vector<1x8x8xf32>
    %123 = vector.shape_cast %122 : vector<1x8x8xf32> to vector<8x8xf32>
    %124 = vector.extract_strided_slice %5 {offsets = [4, 0, 0], sizes = [1, 8, 8], strides = [1, 1, 1]} : vector<8x8x9xf32> to vector<1x8x8xf32>
    %125 = vector.shape_cast %124 : vector<1x8x8xf32> to vector<8x8xf32>
    %126 = vector.extract_strided_slice %4 {offsets = [4, 0, 1], sizes = [1, 8, 8], strides = [1, 1, 1]} : vector<8x8x9xf32> to vector<1x8x8xf32>
    %127 = vector.shape_cast %126 : vector<1x8x8xf32> to vector<8x8xf32>
    %128 = vector.extract_strided_slice %6 {offsets = [4, 0, 0], sizes = [1, 8, 8], strides = [1, 1, 1]} : vector<8x8x9xf32> to vector<1x8x8xf32>
    %129 = vector.shape_cast %128 : vector<1x8x8xf32> to vector<8x8xf32>
    %130 = vector.extract_strided_slice %7 {offsets = [4, 0, 0], sizes = [1, 8, 8], strides = [1, 1, 1]} : vector<8x8x9xf32> to vector<1x8x8xf32>
    %131 = vector.shape_cast %130 : vector<1x8x8xf32> to vector<8x8xf32>
    %132 = vector.extract_strided_slice %6 {offsets = [4, 0, 1], sizes = [1, 8, 8], strides = [1, 1, 1]} : vector<8x8x9xf32> to vector<1x8x8xf32>
    %133 = vector.shape_cast %132 : vector<1x8x8xf32> to vector<8x8xf32>
    %134 = tpu.concatenate %117, %119, %121, %123, %125, %127, %129, %131, %133 in 0 : vector<8x8xf32>, vector<8x8xf32>, vector<8x8xf32>, vector<8x8xf32>, vector<8x8xf32>, vector<8x8xf32>, vector<8x8xf32>, vector<8x8xf32>, vector<8x8xf32> -> vector<72x8xf32>
    %cst_37 = arith.constant dense<0.000000e+00> : vector<16x8xf32>
    %135 = tpu.matmul %0, %134, %cst_37 {dimension_numbers = #tpu.dot_dimension_numbers<[1], [0], [0], [1], [0, 0, 1, 1], [], []>} : vector<16x72xf32>, vector<72x8xf32>, vector<16x8xf32> -> vector<16x8xf32>
    %136 = vector.broadcast %1 : vector<16x1xf32> to vector<16x8xf32>
    %137 = arith.addf %135, %136 : vector<16x8xf32>
    %cst_38 = arith.constant 0.000000e+00 : f32
    %138 = vector.broadcast %cst_38 : f32 to vector<16x8xf32>
    %139 = arith.maximumf %137, %138 : vector<16x8xf32>
    %c4 = arith.constant 4 : index
    %c0_39 = arith.constant 0 : index
    %c0_40 = arith.constant 0 : index
    %140 = vector.load %arg9[%c4, %c0_39, %c0_40] : memref<8x16x8xf32, #tpu.memory_space<vmem>>, vector<1x16x8xf32>
    %141 = vector.shape_cast %140 : vector<1x16x8xf32> to vector<16x8xf32>
    %142 = vector.shape_cast %139 : vector<16x8xf32> to vector<1x16x8xf32>
    tpu.vector_store %arg9[%c4, %c0_39, %c0_40], %142 {strides = array<i32>} : memref<8x16x8xf32, #tpu.memory_space<vmem>>, vector<1x16x8xf32>,
    %143 = vector.extract_strided_slice %2 {offsets = [5, 0, 0], sizes = [1, 8, 8], strides = [1, 1, 1]} : vector<8x8x9xf32> to vector<1x8x8xf32>
    %144 = vector.shape_cast %143 : vector<1x8x8xf32> to vector<8x8xf32>
    %145 = vector.extract_strided_slice %3 {offsets = [5, 0, 0], sizes = [1, 8, 8], strides = [1, 1, 1]} : vector<8x8x9xf32> to vector<1x8x8xf32>
    %146 = vector.shape_cast %145 : vector<1x8x8xf32> to vector<8x8xf32>
    %147 = vector.extract_strided_slice %2 {offsets = [5, 0, 1], sizes = [1, 8, 8], strides = [1, 1, 1]} : vector<8x8x9xf32> to vector<1x8x8xf32>
    %148 = vector.shape_cast %147 : vector<1x8x8xf32> to vector<8x8xf32>
    %149 = vector.extract_strided_slice %4 {offsets = [5, 0, 0], sizes = [1, 8, 8], strides = [1, 1, 1]} : vector<8x8x9xf32> to vector<1x8x8xf32>
    %150 = vector.shape_cast %149 : vector<1x8x8xf32> to vector<8x8xf32>
    %151 = vector.extract_strided_slice %5 {offsets = [5, 0, 0], sizes = [1, 8, 8], strides = [1, 1, 1]} : vector<8x8x9xf32> to vector<1x8x8xf32>
    %152 = vector.shape_cast %151 : vector<1x8x8xf32> to vector<8x8xf32>
    %153 = vector.extract_strided_slice %4 {offsets = [5, 0, 1], sizes = [1, 8, 8], strides = [1, 1, 1]} : vector<8x8x9xf32> to vector<1x8x8xf32>
    %154 = vector.shape_cast %153 : vector<1x8x8xf32> to vector<8x8xf32>
    %155 = vector.extract_strided_slice %6 {offsets = [5, 0, 0], sizes = [1, 8, 8], strides = [1, 1, 1]} : vector<8x8x9xf32> to vector<1x8x8xf32>
    %156 = vector.shape_cast %155 : vector<1x8x8xf32> to vector<8x8xf32>
    %157 = vector.extract_strided_slice %7 {offsets = [5, 0, 0], sizes = [1, 8, 8], strides = [1, 1, 1]} : vector<8x8x9xf32> to vector<1x8x8xf32>
    %158 = vector.shape_cast %157 : vector<1x8x8xf32> to vector<8x8xf32>
    %159 = vector.extract_strided_slice %6 {offsets = [5, 0, 1], sizes = [1, 8, 8], strides = [1, 1, 1]} : vector<8x8x9xf32> to vector<1x8x8xf32>
    %160 = vector.shape_cast %159 : vector<1x8x8xf32> to vector<8x8xf32>
    %161 = tpu.concatenate %144, %146, %148, %150, %152, %154, %156, %158, %160 in 0 : vector<8x8xf32>, vector<8x8xf32>, vector<8x8xf32>, vector<8x8xf32>, vector<8x8xf32>, vector<8x8xf32>, vector<8x8xf32>, vector<8x8xf32>, vector<8x8xf32> -> vector<72x8xf32>
    %cst_41 = arith.constant dense<0.000000e+00> : vector<16x8xf32>
    %162 = tpu.matmul %0, %161, %cst_41 {dimension_numbers = #tpu.dot_dimension_numbers<[1], [0], [0], [1], [0, 0, 1, 1], [], []>} : vector<16x72xf32>, vector<72x8xf32>, vector<16x8xf32> -> vector<16x8xf32>
    %163 = vector.broadcast %1 : vector<16x1xf32> to vector<16x8xf32>
    %164 = arith.addf %162, %163 : vector<16x8xf32>
    %cst_42 = arith.constant 0.000000e+00 : f32
    %165 = vector.broadcast %cst_42 : f32 to vector<16x8xf32>
    %166 = arith.maximumf %164, %165 : vector<16x8xf32>
    %c5 = arith.constant 5 : index
    %c0_43 = arith.constant 0 : index
    %c0_44 = arith.constant 0 : index
    %167 = vector.load %arg9[%c5, %c0_43, %c0_44] : memref<8x16x8xf32, #tpu.memory_space<vmem>>, vector<1x16x8xf32>
    %168 = vector.shape_cast %167 : vector<1x16x8xf32> to vector<16x8xf32>
    %169 = vector.shape_cast %166 : vector<16x8xf32> to vector<1x16x8xf32>
    tpu.vector_store %arg9[%c5, %c0_43, %c0_44], %169 {strides = array<i32>} : memref<8x16x8xf32, #tpu.memory_space<vmem>>, vector<1x16x8xf32>,
    %170 = vector.extract_strided_slice %2 {offsets = [6, 0, 0], sizes = [1, 8, 8], strides = [1, 1, 1]} : vector<8x8x9xf32> to vector<1x8x8xf32>
    %171 = vector.shape_cast %170 : vector<1x8x8xf32> to vector<8x8xf32>
    %172 = vector.extract_strided_slice %3 {offsets = [6, 0, 0], sizes = [1, 8, 8], strides = [1, 1, 1]} : vector<8x8x9xf32> to vector<1x8x8xf32>
    %173 = vector.shape_cast %172 : vector<1x8x8xf32> to vector<8x8xf32>
    %174 = vector.extract_strided_slice %2 {offsets = [6, 0, 1], sizes = [1, 8, 8], strides = [1, 1, 1]} : vector<8x8x9xf32> to vector<1x8x8xf32>
    %175 = vector.shape_cast %174 : vector<1x8x8xf32> to vector<8x8xf32>
    %176 = vector.extract_strided_slice %4 {offsets = [6, 0, 0], sizes = [1, 8, 8], strides = [1, 1, 1]} : vector<8x8x9xf32> to vector<1x8x8xf32>
    %177 = vector.shape_cast %176 : vector<1x8x8xf32> to vector<8x8xf32>
    %178 = vector.extract_strided_slice %5 {offsets = [6, 0, 0], sizes = [1, 8, 8], strides = [1, 1, 1]} : vector<8x8x9xf32> to vector<1x8x8xf32>
    %179 = vector.shape_cast %178 : vector<1x8x8xf32> to vector<8x8xf32>
    %180 = vector.extract_strided_slice %4 {offsets = [6, 0, 1], sizes = [1, 8, 8], strides = [1, 1, 1]} : vector<8x8x9xf32> to vector<1x8x8xf32>
    %181 = vector.shape_cast %180 : vector<1x8x8xf32> to vector<8x8xf32>
    %182 = vector.extract_strided_slice %6 {offsets = [6, 0, 0], sizes = [1, 8, 8], strides = [1, 1, 1]} : vector<8x8x9xf32> to vector<1x8x8xf32>
    %183 = vector.shape_cast %182 : vector<1x8x8xf32> to vector<8x8xf32>
    %184 = vector.extract_strided_slice %7 {offsets = [6, 0, 0], sizes = [1, 8, 8], strides = [1, 1, 1]} : vector<8x8x9xf32> to vector<1x8x8xf32>
    %185 = vector.shape_cast %184 : vector<1x8x8xf32> to vector<8x8xf32>
    %186 = vector.extract_strided_slice %6 {offsets = [6, 0, 1], sizes = [1, 8, 8], strides = [1, 1, 1]} : vector<8x8x9xf32> to vector<1x8x8xf32>
    %187 = vector.shape_cast %186 : vector<1x8x8xf32> to vector<8x8xf32>
    %188 = tpu.concatenate %171, %173, %175, %177, %179, %181, %183, %185, %187 in 0 : vector<8x8xf32>, vector<8x8xf32>, vector<8x8xf32>, vector<8x8xf32>, vector<8x8xf32>, vector<8x8xf32>, vector<8x8xf32>, vector<8x8xf32>, vector<8x8xf32> -> vector<72x8xf32>
    %cst_45 = arith.constant dense<0.000000e+00> : vector<16x8xf32>
    %189 = tpu.matmul %0, %188, %cst_45 {dimension_numbers = #tpu.dot_dimension_numbers<[1], [0], [0], [1], [0, 0, 1, 1], [], []>} : vector<16x72xf32>, vector<72x8xf32>, vector<16x8xf32> -> vector<16x8xf32>
    %190 = vector.broadcast %1 : vector<16x1xf32> to vector<16x8xf32>
    %191 = arith.addf %189, %190 : vector<16x8xf32>
    %cst_46 = arith.constant 0.000000e+00 : f32
    %192 = vector.broadcast %cst_46 : f32 to vector<16x8xf32>
    %193 = arith.maximumf %191, %192 : vector<16x8xf32>
    %c6 = arith.constant 6 : index
    %c0_47 = arith.constant 0 : index
    %c0_48 = arith.constant 0 : index
    %194 = vector.load %arg9[%c6, %c0_47, %c0_48] : memref<8x16x8xf32, #tpu.memory_space<vmem>>, vector<1x16x8xf32>
    %195 = vector.shape_cast %194 : vector<1x16x8xf32> to vector<16x8xf32>
    %196 = vector.shape_cast %193 : vector<16x8xf32> to vector<1x16x8xf32>
    tpu.vector_store %arg9[%c6, %c0_47, %c0_48], %196 {strides = array<i32>} : memref<8x16x8xf32, #tpu.memory_space<vmem>>, vector<1x16x8xf32>,
    %197 = vector.extract_strided_slice %2 {offsets = [7, 0, 0], sizes = [1, 8, 8], strides = [1, 1, 1]} : vector<8x8x9xf32> to vector<1x8x8xf32>
    %198 = vector.shape_cast %197 : vector<1x8x8xf32> to vector<8x8xf32>
    %199 = vector.extract_strided_slice %3 {offsets = [7, 0, 0], sizes = [1, 8, 8], strides = [1, 1, 1]} : vector<8x8x9xf32> to vector<1x8x8xf32>
    %200 = vector.shape_cast %199 : vector<1x8x8xf32> to vector<8x8xf32>
    %201 = vector.extract_strided_slice %2 {offsets = [7, 0, 1], sizes = [1, 8, 8], strides = [1, 1, 1]} : vector<8x8x9xf32> to vector<1x8x8xf32>
    %202 = vector.shape_cast %201 : vector<1x8x8xf32> to vector<8x8xf32>
    %203 = vector.extract_strided_slice %4 {offsets = [7, 0, 0], sizes = [1, 8, 8], strides = [1, 1, 1]} : vector<8x8x9xf32> to vector<1x8x8xf32>
    %204 = vector.shape_cast %203 : vector<1x8x8xf32> to vector<8x8xf32>
    %205 = vector.extract_strided_slice %5 {offsets = [7, 0, 0], sizes = [1, 8, 8], strides = [1, 1, 1]} : vector<8x8x9xf32> to vector<1x8x8xf32>
    %206 = vector.shape_cast %205 : vector<1x8x8xf32> to vector<8x8xf32>
    %207 = vector.extract_strided_slice %4 {offsets = [7, 0, 1], sizes = [1, 8, 8], strides = [1, 1, 1]} : vector<8x8x9xf32> to vector<1x8x8xf32>
    %208 = vector.shape_cast %207 : vector<1x8x8xf32> to vector<8x8xf32>
    %209 = vector.extract_strided_slice %6 {offsets = [7, 0, 0], sizes = [1, 8, 8], strides = [1, 1, 1]} : vector<8x8x9xf32> to vector<1x8x8xf32>
    %210 = vector.shape_cast %209 : vector<1x8x8xf32> to vector<8x8xf32>
    %211 = vector.extract_strided_slice %7 {offsets = [7, 0, 0], sizes = [1, 8, 8], strides = [1, 1, 1]} : vector<8x8x9xf32> to vector<1x8x8xf32>
    %212 = vector.shape_cast %211 : vector<1x8x8xf32> to vector<8x8xf32>
    %213 = vector.extract_strided_slice %6 {offsets = [7, 0, 1], sizes = [1, 8, 8], strides = [1, 1, 1]} : vector<8x8x9xf32> to vector<1x8x8xf32>
    %214 = vector.shape_cast %213 : vector<1x8x8xf32> to vector<8x8xf32>
    %215 = tpu.concatenate %198, %200, %202, %204, %206, %208, %210, %212, %214 in 0 : vector<8x8xf32>, vector<8x8xf32>, vector<8x8xf32>, vector<8x8xf32>, vector<8x8xf32>, vector<8x8xf32>, vector<8x8xf32>, vector<8x8xf32>, vector<8x8xf32> -> vector<72x8xf32>
    %cst_49 = arith.constant dense<0.000000e+00> : vector<16x8xf32>
    %216 = tpu.matmul %0, %215, %cst_49 {dimension_numbers = #tpu.dot_dimension_numbers<[1], [0], [0], [1], [0, 0, 1, 1], [], []>} : vector<16x72xf32>, vector<72x8xf32>, vector<16x8xf32> -> vector<16x8xf32>
    %217 = vector.broadcast %1 : vector<16x1xf32> to vector<16x8xf32>
    %218 = arith.addf %216, %217 : vector<16x8xf32>
    %cst_50 = arith.constant 0.000000e+00 : f32
    %219 = vector.broadcast %cst_50 : f32 to vector<16x8xf32>
    %220 = arith.maximumf %218, %219 : vector<16x8xf32>
    %c7 = arith.constant 7 : index
    %c0_51 = arith.constant 0 : index
    %c0_52 = arith.constant 0 : index
    %221 = vector.load %arg9[%c7, %c0_51, %c0_52] : memref<8x16x8xf32, #tpu.memory_space<vmem>>, vector<1x16x8xf32>
    %222 = vector.shape_cast %221 : vector<1x16x8xf32> to vector<16x8xf32>
    %223 = vector.shape_cast %220 : vector<16x8xf32> to vector<1x16x8xf32>
    tpu.vector_store %arg9[%c7, %c0_51, %c0_52], %223 {strides = array<i32>} : memref<8x16x8xf32, #tpu.memory_space<vmem>>, vector<1x16x8xf32>,
    return
  }
  func.func @transform_0(%arg0: i32) -> (i32, i32, i32) {
    %c0_i32 = arith.constant 0 : i32
    %c0_i32_0 = arith.constant 0 : i32
    %c0_i32_1 = arith.constant 0 : i32
    return %arg0, %c0_i32, %c0_i32_0 : i32, i32, i32
  }
  func.func @transform_1(%arg0: i32) -> (i32, i32, i32) {
    %c0_i32 = arith.constant 0 : i32
    %c0_i32_0 = arith.constant 0 : i32
    %c0_i32_1 = arith.constant 0 : i32
    return %arg0, %c0_i32, %c0_i32_0 : i32, i32, i32
  }
  func.func @transform_2(%arg0: i32) -> (i32, i32, i32) {
    %c0_i32 = arith.constant 0 : i32
    %c0_i32_0 = arith.constant 0 : i32
    %c0_i32_1 = arith.constant 0 : i32
    return %arg0, %c0_i32, %c0_i32_0 : i32, i32, i32
  }
  func.func @transform_3(%arg0: i32) -> (i32, i32, i32) {
    %c0_i32 = arith.constant 0 : i32
    %c0_i32_0 = arith.constant 0 : i32
    %c0_i32_1 = arith.constant 0 : i32
    return %arg0, %c0_i32, %c0_i32_0 : i32, i32, i32
  }
  func.func @transform_4(%arg0: i32) -> (i32, i32, i32) {
    %c0_i32 = arith.constant 0 : i32
    %c0_i32_0 = arith.constant 0 : i32
    %c0_i32_1 = arith.constant 0 : i32
    return %arg0, %c0_i32, %c0_i32_0 : i32, i32, i32
  }
  func.func @transform_5(%arg0: i32) -> (i32, i32, i32) {
    %c0_i32 = arith.constant 0 : i32
    %c0_i32_0 = arith.constant 0 : i32
    %c0_i32_1 = arith.constant 0 : i32
    return %arg0, %c0_i32, %c0_i32_0 : i32, i32, i32
  }
  func.func @transform_6(%arg0: i32) -> (i32, i32) {
    %c0_i32 = arith.constant 0 : i32
    %c0_i32_0 = arith.constant 0 : i32
    %c0_i32_1 = arith.constant 0 : i32
    return %c0_i32, %c0_i32_0 : i32, i32
  }
  func.func @transform_7(%arg0: i32) -> (i32, i32) {
    %c0_i32 = arith.constant 0 : i32
    %c0_i32_0 = arith.constant 0 : i32
    %c0_i32_1 = arith.constant 0 : i32
    return %c0_i32, %c0_i32_0 : i32, i32
  }
  func.func @transform_8(%arg0: i32) -> (i32, i32, i32) {
    %c0_i32 = arith.constant 0 : i32
    %c0_i32_0 = arith.constant 0 : i32
    %c0_i32_1 = arith.constant 0 : i32
    return %arg0, %c0_i32, %c0_i32_0 : i32, i32, i32
  }
}

module attributes {stable_mosaic.version = 11 : i64} {
  func.func @_conv_rows_kernel(%arg0: i32, %arg1: memref<4x16x5xf32, #tpu.memory_space<vmem>>, %arg2: memref<4x16x5xf32, #tpu.memory_space<vmem>>, %arg3: memref<4x16x5xf32, #tpu.memory_space<vmem>>, %arg4: memref<4x16x5xf32, #tpu.memory_space<vmem>>, %arg5: memref<4x16x5xf32, #tpu.memory_space<vmem>>, %arg6: memref<4x16x5xf32, #tpu.memory_space<vmem>>, %arg7: memref<32x144xf32, #tpu.memory_space<vmem>>, %arg8: memref<32x1xf32, #tpu.memory_space<vmem>>, %arg9: memref<4x32x4xf32, #tpu.memory_space<vmem>>) attributes {dimension_semantics = [#tpu.dimension_semantics<parallel>], iteration_bounds = array<i64: 2>, scalar_prefetch = 0 : i64, scratch_operands = 0 : i64, tpu.core_type = #tpu.core_type<tc>, window_params = [{transform_indices = @transform_0, window_bounds = array<i64: 4, 16, 5>}, {transform_indices = @transform_1, window_bounds = array<i64: 4, 16, 5>}, {transform_indices = @transform_2, window_bounds = array<i64: 4, 16, 5>}, {transform_indices = @transform_3, window_bounds = array<i64: 4, 16, 5>}, {transform_indices = @transform_4, window_bounds = array<i64: 4, 16, 5>}, {transform_indices = @transform_5, window_bounds = array<i64: 4, 16, 5>}, {pipeline_mode = #tpu.pipeline_mode<synchronous>, transform_indices = @transform_6, window_bounds = array<i64: 32, 144>}, {pipeline_mode = #tpu.pipeline_mode<synchronous>, transform_indices = @transform_7, window_bounds = array<i64: 32, 1>}, {transform_indices = @transform_8, window_bounds = array<i64: 4, 32, 4>}]} {
    %c0 = arith.constant 0 : index
    %c0_0 = arith.constant 0 : index
    %0 = vector.load %arg7[%c0, %c0_0] : memref<32x144xf32, #tpu.memory_space<vmem>>, vector<32x144xf32>
    %c0_1 = arith.constant 0 : index
    %c0_2 = arith.constant 0 : index
    %1 = vector.load %arg8[%c0_1, %c0_2] : memref<32x1xf32, #tpu.memory_space<vmem>>, vector<32x1xf32>
    %c0_3 = arith.constant 0 : index
    %c0_4 = arith.constant 0 : index
    %c0_5 = arith.constant 0 : index
    %2 = vector.load %arg1[%c0_3, %c0_4, %c0_5] : memref<4x16x5xf32, #tpu.memory_space<vmem>>, vector<4x16x5xf32>
    %c0_6 = arith.constant 0 : index
    %c0_7 = arith.constant 0 : index
    %c0_8 = arith.constant 0 : index
    %3 = vector.load %arg2[%c0_6, %c0_7, %c0_8] : memref<4x16x5xf32, #tpu.memory_space<vmem>>, vector<4x16x5xf32>
    %c0_9 = arith.constant 0 : index
    %c0_10 = arith.constant 0 : index
    %c0_11 = arith.constant 0 : index
    %4 = vector.load %arg3[%c0_9, %c0_10, %c0_11] : memref<4x16x5xf32, #tpu.memory_space<vmem>>, vector<4x16x5xf32>
    %c0_12 = arith.constant 0 : index
    %c0_13 = arith.constant 0 : index
    %c0_14 = arith.constant 0 : index
    %5 = vector.load %arg4[%c0_12, %c0_13, %c0_14] : memref<4x16x5xf32, #tpu.memory_space<vmem>>, vector<4x16x5xf32>
    %c0_15 = arith.constant 0 : index
    %c0_16 = arith.constant 0 : index
    %c0_17 = arith.constant 0 : index
    %6 = vector.load %arg5[%c0_15, %c0_16, %c0_17] : memref<4x16x5xf32, #tpu.memory_space<vmem>>, vector<4x16x5xf32>
    %c0_18 = arith.constant 0 : index
    %c0_19 = arith.constant 0 : index
    %c0_20 = arith.constant 0 : index
    %7 = vector.load %arg6[%c0_18, %c0_19, %c0_20] : memref<4x16x5xf32, #tpu.memory_space<vmem>>, vector<4x16x5xf32>
    %8 = vector.extract_strided_slice %2 {offsets = [0, 0, 0], sizes = [1, 16, 4], strides = [1, 1, 1]} : vector<4x16x5xf32> to vector<1x16x4xf32>
    %9 = vector.shape_cast %8 : vector<1x16x4xf32> to vector<16x4xf32>
    %10 = vector.extract_strided_slice %3 {offsets = [0, 0, 0], sizes = [1, 16, 4], strides = [1, 1, 1]} : vector<4x16x5xf32> to vector<1x16x4xf32>
    %11 = vector.shape_cast %10 : vector<1x16x4xf32> to vector<16x4xf32>
    %12 = vector.extract_strided_slice %2 {offsets = [0, 0, 1], sizes = [1, 16, 4], strides = [1, 1, 1]} : vector<4x16x5xf32> to vector<1x16x4xf32>
    %13 = vector.shape_cast %12 : vector<1x16x4xf32> to vector<16x4xf32>
    %14 = vector.extract_strided_slice %4 {offsets = [0, 0, 0], sizes = [1, 16, 4], strides = [1, 1, 1]} : vector<4x16x5xf32> to vector<1x16x4xf32>
    %15 = vector.shape_cast %14 : vector<1x16x4xf32> to vector<16x4xf32>
    %16 = vector.extract_strided_slice %5 {offsets = [0, 0, 0], sizes = [1, 16, 4], strides = [1, 1, 1]} : vector<4x16x5xf32> to vector<1x16x4xf32>
    %17 = vector.shape_cast %16 : vector<1x16x4xf32> to vector<16x4xf32>
    %18 = vector.extract_strided_slice %4 {offsets = [0, 0, 1], sizes = [1, 16, 4], strides = [1, 1, 1]} : vector<4x16x5xf32> to vector<1x16x4xf32>
    %19 = vector.shape_cast %18 : vector<1x16x4xf32> to vector<16x4xf32>
    %20 = vector.extract_strided_slice %6 {offsets = [0, 0, 0], sizes = [1, 16, 4], strides = [1, 1, 1]} : vector<4x16x5xf32> to vector<1x16x4xf32>
    %21 = vector.shape_cast %20 : vector<1x16x4xf32> to vector<16x4xf32>
    %22 = vector.extract_strided_slice %7 {offsets = [0, 0, 0], sizes = [1, 16, 4], strides = [1, 1, 1]} : vector<4x16x5xf32> to vector<1x16x4xf32>
    %23 = vector.shape_cast %22 : vector<1x16x4xf32> to vector<16x4xf32>
    %24 = vector.extract_strided_slice %6 {offsets = [0, 0, 1], sizes = [1, 16, 4], strides = [1, 1, 1]} : vector<4x16x5xf32> to vector<1x16x4xf32>
    %25 = vector.shape_cast %24 : vector<1x16x4xf32> to vector<16x4xf32>
    %26 = tpu.concatenate %9, %11, %13, %15, %17, %19, %21, %23, %25 in 0 : vector<16x4xf32>, vector<16x4xf32>, vector<16x4xf32>, vector<16x4xf32>, vector<16x4xf32>, vector<16x4xf32>, vector<16x4xf32>, vector<16x4xf32>, vector<16x4xf32> -> vector<144x4xf32>
    %cst = arith.constant dense<0.000000e+00> : vector<32x4xf32>
    %27 = tpu.matmul %0, %26, %cst {dimension_numbers = #tpu.dot_dimension_numbers<[1], [0], [0], [1], [0, 0, 1, 1], [], []>} : vector<32x144xf32>, vector<144x4xf32>, vector<32x4xf32> -> vector<32x4xf32>
    %28 = vector.broadcast %1 : vector<32x1xf32> to vector<32x4xf32>
    %29 = arith.addf %27, %28 : vector<32x4xf32>
    %cst_21 = arith.constant 0.000000e+00 : f32
    %30 = vector.broadcast %cst_21 : f32 to vector<32x4xf32>
    %31 = arith.maximumf %29, %30 : vector<32x4xf32>
    %c0_22 = arith.constant 0 : index
    %c0_23 = arith.constant 0 : index
    %c0_24 = arith.constant 0 : index
    %32 = vector.load %arg9[%c0_22, %c0_23, %c0_24] : memref<4x32x4xf32, #tpu.memory_space<vmem>>, vector<1x32x4xf32>
    %33 = vector.shape_cast %32 : vector<1x32x4xf32> to vector<32x4xf32>
    %34 = vector.shape_cast %31 : vector<32x4xf32> to vector<1x32x4xf32>
    tpu.vector_store %arg9[%c0_22, %c0_23, %c0_24], %34 {strides = array<i32>} : memref<4x32x4xf32, #tpu.memory_space<vmem>>, vector<1x32x4xf32>,
    %35 = vector.extract_strided_slice %2 {offsets = [1, 0, 0], sizes = [1, 16, 4], strides = [1, 1, 1]} : vector<4x16x5xf32> to vector<1x16x4xf32>
    %36 = vector.shape_cast %35 : vector<1x16x4xf32> to vector<16x4xf32>
    %37 = vector.extract_strided_slice %3 {offsets = [1, 0, 0], sizes = [1, 16, 4], strides = [1, 1, 1]} : vector<4x16x5xf32> to vector<1x16x4xf32>
    %38 = vector.shape_cast %37 : vector<1x16x4xf32> to vector<16x4xf32>
    %39 = vector.extract_strided_slice %2 {offsets = [1, 0, 1], sizes = [1, 16, 4], strides = [1, 1, 1]} : vector<4x16x5xf32> to vector<1x16x4xf32>
    %40 = vector.shape_cast %39 : vector<1x16x4xf32> to vector<16x4xf32>
    %41 = vector.extract_strided_slice %4 {offsets = [1, 0, 0], sizes = [1, 16, 4], strides = [1, 1, 1]} : vector<4x16x5xf32> to vector<1x16x4xf32>
    %42 = vector.shape_cast %41 : vector<1x16x4xf32> to vector<16x4xf32>
    %43 = vector.extract_strided_slice %5 {offsets = [1, 0, 0], sizes = [1, 16, 4], strides = [1, 1, 1]} : vector<4x16x5xf32> to vector<1x16x4xf32>
    %44 = vector.shape_cast %43 : vector<1x16x4xf32> to vector<16x4xf32>
    %45 = vector.extract_strided_slice %4 {offsets = [1, 0, 1], sizes = [1, 16, 4], strides = [1, 1, 1]} : vector<4x16x5xf32> to vector<1x16x4xf32>
    %46 = vector.shape_cast %45 : vector<1x16x4xf32> to vector<16x4xf32>
    %47 = vector.extract_strided_slice %6 {offsets = [1, 0, 0], sizes = [1, 16, 4], strides = [1, 1, 1]} : vector<4x16x5xf32> to vector<1x16x4xf32>
    %48 = vector.shape_cast %47 : vector<1x16x4xf32> to vector<16x4xf32>
    %49 = vector.extract_strided_slice %7 {offsets = [1, 0, 0], sizes = [1, 16, 4], strides = [1, 1, 1]} : vector<4x16x5xf32> to vector<1x16x4xf32>
    %50 = vector.shape_cast %49 : vector<1x16x4xf32> to vector<16x4xf32>
    %51 = vector.extract_strided_slice %6 {offsets = [1, 0, 1], sizes = [1, 16, 4], strides = [1, 1, 1]} : vector<4x16x5xf32> to vector<1x16x4xf32>
    %52 = vector.shape_cast %51 : vector<1x16x4xf32> to vector<16x4xf32>
    %53 = tpu.concatenate %36, %38, %40, %42, %44, %46, %48, %50, %52 in 0 : vector<16x4xf32>, vector<16x4xf32>, vector<16x4xf32>, vector<16x4xf32>, vector<16x4xf32>, vector<16x4xf32>, vector<16x4xf32>, vector<16x4xf32>, vector<16x4xf32> -> vector<144x4xf32>
    %cst_25 = arith.constant dense<0.000000e+00> : vector<32x4xf32>
    %54 = tpu.matmul %0, %53, %cst_25 {dimension_numbers = #tpu.dot_dimension_numbers<[1], [0], [0], [1], [0, 0, 1, 1], [], []>} : vector<32x144xf32>, vector<144x4xf32>, vector<32x4xf32> -> vector<32x4xf32>
    %55 = vector.broadcast %1 : vector<32x1xf32> to vector<32x4xf32>
    %56 = arith.addf %54, %55 : vector<32x4xf32>
    %cst_26 = arith.constant 0.000000e+00 : f32
    %57 = vector.broadcast %cst_26 : f32 to vector<32x4xf32>
    %58 = arith.maximumf %56, %57 : vector<32x4xf32>
    %c1 = arith.constant 1 : index
    %c0_27 = arith.constant 0 : index
    %c0_28 = arith.constant 0 : index
    %59 = vector.load %arg9[%c1, %c0_27, %c0_28] : memref<4x32x4xf32, #tpu.memory_space<vmem>>, vector<1x32x4xf32>
    %60 = vector.shape_cast %59 : vector<1x32x4xf32> to vector<32x4xf32>
    %61 = vector.shape_cast %58 : vector<32x4xf32> to vector<1x32x4xf32>
    tpu.vector_store %arg9[%c1, %c0_27, %c0_28], %61 {strides = array<i32>} : memref<4x32x4xf32, #tpu.memory_space<vmem>>, vector<1x32x4xf32>,
    %62 = vector.extract_strided_slice %2 {offsets = [2, 0, 0], sizes = [1, 16, 4], strides = [1, 1, 1]} : vector<4x16x5xf32> to vector<1x16x4xf32>
    %63 = vector.shape_cast %62 : vector<1x16x4xf32> to vector<16x4xf32>
    %64 = vector.extract_strided_slice %3 {offsets = [2, 0, 0], sizes = [1, 16, 4], strides = [1, 1, 1]} : vector<4x16x5xf32> to vector<1x16x4xf32>
    %65 = vector.shape_cast %64 : vector<1x16x4xf32> to vector<16x4xf32>
    %66 = vector.extract_strided_slice %2 {offsets = [2, 0, 1], sizes = [1, 16, 4], strides = [1, 1, 1]} : vector<4x16x5xf32> to vector<1x16x4xf32>
    %67 = vector.shape_cast %66 : vector<1x16x4xf32> to vector<16x4xf32>
    %68 = vector.extract_strided_slice %4 {offsets = [2, 0, 0], sizes = [1, 16, 4], strides = [1, 1, 1]} : vector<4x16x5xf32> to vector<1x16x4xf32>
    %69 = vector.shape_cast %68 : vector<1x16x4xf32> to vector<16x4xf32>
    %70 = vector.extract_strided_slice %5 {offsets = [2, 0, 0], sizes = [1, 16, 4], strides = [1, 1, 1]} : vector<4x16x5xf32> to vector<1x16x4xf32>
    %71 = vector.shape_cast %70 : vector<1x16x4xf32> to vector<16x4xf32>
    %72 = vector.extract_strided_slice %4 {offsets = [2, 0, 1], sizes = [1, 16, 4], strides = [1, 1, 1]} : vector<4x16x5xf32> to vector<1x16x4xf32>
    %73 = vector.shape_cast %72 : vector<1x16x4xf32> to vector<16x4xf32>
    %74 = vector.extract_strided_slice %6 {offsets = [2, 0, 0], sizes = [1, 16, 4], strides = [1, 1, 1]} : vector<4x16x5xf32> to vector<1x16x4xf32>
    %75 = vector.shape_cast %74 : vector<1x16x4xf32> to vector<16x4xf32>
    %76 = vector.extract_strided_slice %7 {offsets = [2, 0, 0], sizes = [1, 16, 4], strides = [1, 1, 1]} : vector<4x16x5xf32> to vector<1x16x4xf32>
    %77 = vector.shape_cast %76 : vector<1x16x4xf32> to vector<16x4xf32>
    %78 = vector.extract_strided_slice %6 {offsets = [2, 0, 1], sizes = [1, 16, 4], strides = [1, 1, 1]} : vector<4x16x5xf32> to vector<1x16x4xf32>
    %79 = vector.shape_cast %78 : vector<1x16x4xf32> to vector<16x4xf32>
    %80 = tpu.concatenate %63, %65, %67, %69, %71, %73, %75, %77, %79 in 0 : vector<16x4xf32>, vector<16x4xf32>, vector<16x4xf32>, vector<16x4xf32>, vector<16x4xf32>, vector<16x4xf32>, vector<16x4xf32>, vector<16x4xf32>, vector<16x4xf32> -> vector<144x4xf32>
    %cst_29 = arith.constant dense<0.000000e+00> : vector<32x4xf32>
    %81 = tpu.matmul %0, %80, %cst_29 {dimension_numbers = #tpu.dot_dimension_numbers<[1], [0], [0], [1], [0, 0, 1, 1], [], []>} : vector<32x144xf32>, vector<144x4xf32>, vector<32x4xf32> -> vector<32x4xf32>
    %82 = vector.broadcast %1 : vector<32x1xf32> to vector<32x4xf32>
    %83 = arith.addf %81, %82 : vector<32x4xf32>
    %cst_30 = arith.constant 0.000000e+00 : f32
    %84 = vector.broadcast %cst_30 : f32 to vector<32x4xf32>
    %85 = arith.maximumf %83, %84 : vector<32x4xf32>
    %c2 = arith.constant 2 : index
    %c0_31 = arith.constant 0 : index
    %c0_32 = arith.constant 0 : index
    %86 = vector.load %arg9[%c2, %c0_31, %c0_32] : memref<4x32x4xf32, #tpu.memory_space<vmem>>, vector<1x32x4xf32>
    %87 = vector.shape_cast %86 : vector<1x32x4xf32> to vector<32x4xf32>
    %88 = vector.shape_cast %85 : vector<32x4xf32> to vector<1x32x4xf32>
    tpu.vector_store %arg9[%c2, %c0_31, %c0_32], %88 {strides = array<i32>} : memref<4x32x4xf32, #tpu.memory_space<vmem>>, vector<1x32x4xf32>,
    %89 = vector.extract_strided_slice %2 {offsets = [3, 0, 0], sizes = [1, 16, 4], strides = [1, 1, 1]} : vector<4x16x5xf32> to vector<1x16x4xf32>
    %90 = vector.shape_cast %89 : vector<1x16x4xf32> to vector<16x4xf32>
    %91 = vector.extract_strided_slice %3 {offsets = [3, 0, 0], sizes = [1, 16, 4], strides = [1, 1, 1]} : vector<4x16x5xf32> to vector<1x16x4xf32>
    %92 = vector.shape_cast %91 : vector<1x16x4xf32> to vector<16x4xf32>
    %93 = vector.extract_strided_slice %2 {offsets = [3, 0, 1], sizes = [1, 16, 4], strides = [1, 1, 1]} : vector<4x16x5xf32> to vector<1x16x4xf32>
    %94 = vector.shape_cast %93 : vector<1x16x4xf32> to vector<16x4xf32>
    %95 = vector.extract_strided_slice %4 {offsets = [3, 0, 0], sizes = [1, 16, 4], strides = [1, 1, 1]} : vector<4x16x5xf32> to vector<1x16x4xf32>
    %96 = vector.shape_cast %95 : vector<1x16x4xf32> to vector<16x4xf32>
    %97 = vector.extract_strided_slice %5 {offsets = [3, 0, 0], sizes = [1, 16, 4], strides = [1, 1, 1]} : vector<4x16x5xf32> to vector<1x16x4xf32>
    %98 = vector.shape_cast %97 : vector<1x16x4xf32> to vector<16x4xf32>
    %99 = vector.extract_strided_slice %4 {offsets = [3, 0, 1], sizes = [1, 16, 4], strides = [1, 1, 1]} : vector<4x16x5xf32> to vector<1x16x4xf32>
    %100 = vector.shape_cast %99 : vector<1x16x4xf32> to vector<16x4xf32>
    %101 = vector.extract_strided_slice %6 {offsets = [3, 0, 0], sizes = [1, 16, 4], strides = [1, 1, 1]} : vector<4x16x5xf32> to vector<1x16x4xf32>
    %102 = vector.shape_cast %101 : vector<1x16x4xf32> to vector<16x4xf32>
    %103 = vector.extract_strided_slice %7 {offsets = [3, 0, 0], sizes = [1, 16, 4], strides = [1, 1, 1]} : vector<4x16x5xf32> to vector<1x16x4xf32>
    %104 = vector.shape_cast %103 : vector<1x16x4xf32> to vector<16x4xf32>
    %105 = vector.extract_strided_slice %6 {offsets = [3, 0, 1], sizes = [1, 16, 4], strides = [1, 1, 1]} : vector<4x16x5xf32> to vector<1x16x4xf32>
    %106 = vector.shape_cast %105 : vector<1x16x4xf32> to vector<16x4xf32>
    %107 = tpu.concatenate %90, %92, %94, %96, %98, %100, %102, %104, %106 in 0 : vector<16x4xf32>, vector<16x4xf32>, vector<16x4xf32>, vector<16x4xf32>, vector<16x4xf32>, vector<16x4xf32>, vector<16x4xf32>, vector<16x4xf32>, vector<16x4xf32> -> vector<144x4xf32>
    %cst_33 = arith.constant dense<0.000000e+00> : vector<32x4xf32>
    %108 = tpu.matmul %0, %107, %cst_33 {dimension_numbers = #tpu.dot_dimension_numbers<[1], [0], [0], [1], [0, 0, 1, 1], [], []>} : vector<32x144xf32>, vector<144x4xf32>, vector<32x4xf32> -> vector<32x4xf32>
    %109 = vector.broadcast %1 : vector<32x1xf32> to vector<32x4xf32>
    %110 = arith.addf %108, %109 : vector<32x4xf32>
    %cst_34 = arith.constant 0.000000e+00 : f32
    %111 = vector.broadcast %cst_34 : f32 to vector<32x4xf32>
    %112 = arith.maximumf %110, %111 : vector<32x4xf32>
    %c3 = arith.constant 3 : index
    %c0_35 = arith.constant 0 : index
    %c0_36 = arith.constant 0 : index
    %113 = vector.load %arg9[%c3, %c0_35, %c0_36] : memref<4x32x4xf32, #tpu.memory_space<vmem>>, vector<1x32x4xf32>
    %114 = vector.shape_cast %113 : vector<1x32x4xf32> to vector<32x4xf32>
    %115 = vector.shape_cast %112 : vector<32x4xf32> to vector<1x32x4xf32>
    tpu.vector_store %arg9[%c3, %c0_35, %c0_36], %115 {strides = array<i32>} : memref<4x32x4xf32, #tpu.memory_space<vmem>>, vector<1x32x4xf32>,
    return
  }
  func.func @transform_0(%arg0: i32) -> (i32, i32, i32) {
    %c0_i32 = arith.constant 0 : i32
    %c0_i32_0 = arith.constant 0 : i32
    %c0_i32_1 = arith.constant 0 : i32
    return %arg0, %c0_i32, %c0_i32_0 : i32, i32, i32
  }
  func.func @transform_1(%arg0: i32) -> (i32, i32, i32) {
    %c0_i32 = arith.constant 0 : i32
    %c0_i32_0 = arith.constant 0 : i32
    %c0_i32_1 = arith.constant 0 : i32
    return %arg0, %c0_i32, %c0_i32_0 : i32, i32, i32
  }
  func.func @transform_2(%arg0: i32) -> (i32, i32, i32) {
    %c0_i32 = arith.constant 0 : i32
    %c0_i32_0 = arith.constant 0 : i32
    %c0_i32_1 = arith.constant 0 : i32
    return %arg0, %c0_i32, %c0_i32_0 : i32, i32, i32
  }
  func.func @transform_3(%arg0: i32) -> (i32, i32, i32) {
    %c0_i32 = arith.constant 0 : i32
    %c0_i32_0 = arith.constant 0 : i32
    %c0_i32_1 = arith.constant 0 : i32
    return %arg0, %c0_i32, %c0_i32_0 : i32, i32, i32
  }
  func.func @transform_4(%arg0: i32) -> (i32, i32, i32) {
    %c0_i32 = arith.constant 0 : i32
    %c0_i32_0 = arith.constant 0 : i32
    %c0_i32_1 = arith.constant 0 : i32
    return %arg0, %c0_i32, %c0_i32_0 : i32, i32, i32
  }
  func.func @transform_5(%arg0: i32) -> (i32, i32, i32) {
    %c0_i32 = arith.constant 0 : i32
    %c0_i32_0 = arith.constant 0 : i32
    %c0_i32_1 = arith.constant 0 : i32
    return %arg0, %c0_i32, %c0_i32_0 : i32, i32, i32
  }
  func.func @transform_6(%arg0: i32) -> (i32, i32) {
    %c0_i32 = arith.constant 0 : i32
    %c0_i32_0 = arith.constant 0 : i32
    %c0_i32_1 = arith.constant 0 : i32
    return %c0_i32, %c0_i32_0 : i32, i32
  }
  func.func @transform_7(%arg0: i32) -> (i32, i32) {
    %c0_i32 = arith.constant 0 : i32
    %c0_i32_0 = arith.constant 0 : i32
    %c0_i32_1 = arith.constant 0 : i32
    return %c0_i32, %c0_i32_0 : i32, i32
  }
  func.func @transform_8(%arg0: i32) -> (i32, i32, i32) {
    %c0_i32 = arith.constant 0 : i32
    %c0_i32_0 = arith.constant 0 : i32
    %c0_i32_1 = arith.constant 0 : i32
    return %arg0, %c0_i32, %c0_i32_0 : i32, i32, i32
  }
}

</mosaic_0001>

<llo_original>
// kernel: a_call__.3
$region0: #{a_call__.3}
  #allocation0 [shape = 'u32[]', space=smem, size = 0x4, offset = 0x4, fixed_abs, tag = 'smem constant byte address 0x4 - core index']
  #allocation1 [shape = 'u32[144,128]{1,0:T(1,128)}', space=vmem, size = 0x12000, scoped, tag = 'internal scratch']
  %s0 = inlined_call_operand.vmem [shape: f32[8,16,5], index: 0, kind: input, shape index: {}]
  %s1 = inlined_call_operand.vmem [shape: f32[8,16,5], index: 1, kind: input, shape index: {}]
  %s2 = inlined_call_operand.vmem [shape: f32[8,16,5], index: 2, kind: input, shape index: {}]
  %s3 = inlined_call_operand.vmem [shape: f32[8,16,5], index: 3, kind: input, shape index: {}]
  %s4 = inlined_call_operand.vmem [shape: f32[8,16,5], index: 4, kind: input, shape index: {}]
  %s5 = inlined_call_operand.vmem [shape: f32[8,16,5], index: 5, kind: input, shape index: {}]
  %s6 = inlined_call_operand.vmem [shape: f32[32,144], index: 6, kind: input, shape index: {}]
  %s7 = inlined_call_operand.vmem [shape: f32[32,1], index: 7, kind: input, shape index: {}]
  %s8 = inlined_call_operand.vmem [shape: f32[8,32,4], index: 8, kind: output, shape index: {}]
  %s9 = sld [smem:[#allocation0]]
  $region65: #{a_call__.3} parent=0
    _
  %s11 = ssub.s32 1, %s9
  %s12 = scalar_select 0, %s11, %s9
  loop: start=0, step=1, limit=4
  $region2: #{a_call__.3} parent=0 // loop_pre_header
    _
  $region3: #{a_call__.3} parent=0 // loop_header
    %s14 = sphi 0, %s18
    %p15 = scmp.ge.s32.totalorder %s14, 4
    %s24 = sphi 0, %s26
    %s27 = sphi 0, %s24
    %s28 = sphi 0, %s27
    %s44 = sphi 0, %s28
    %s50 = sphi 0, %s52
    %s53 = sphi 0, %s50
    %s54 = sphi 0, %s53
    %s70 = sphi 0, %s54
    %s76 = sphi 0, %s78
    %s79 = sphi 0, %s76
    %s80 = sphi 0, %s79
    %s96 = sphi 0, %s80
    %s102 = sphi 0, %s104
    %s105 = sphi 0, %s102
    %s106 = sphi 0, %s105
    %s122 = sphi 0, %s106
    %s128 = sphi 0, %s130
    %s131 = sphi 0, %s128
    %s132 = sphi 0, %s131
    %s148 = sphi 0, %s132
    %s154 = sphi 0, %s156
    %s157 = sphi 0, %s154
    %s158 = sphi 0, %s157
    %s174 = sphi 0, %s158
    %s178 = sphi 0, %s178
    %s180 = sphi 0, %s178
    %s181 = sphi 0, %s180
    %s195 = sphi 0, %s181
    %s199 = sphi 0, %s199
    %s201 = sphi 0, %s199
    %s202 = sphi 0, %s201
    %s216 = sphi 0, %s202
    %s222 = sphi 0, %s224
    %s225 = sphi 0, %s222
    %s226 = sphi 0, %s225
    %s242 = sphi 0, %s226
  $region4: #{a_call__.3} parent=0 // loop_header_branch
    %17 = sbr.rel (%p15) target = $region8
  $region5: #{a_call__.3} parent=0 // loop_body
    %s19 = ssub.s32 %s14, 1
    %s20 = ssub.s32 %s14, 2
    %s21 = sadd.s32 %s14, 1
    %s22 = ssub.s32 %s14, %s21
    %p23 = scmp.eq.s32.totalorder %s22, 0
    %s25 = sadd.s32 %s24, 1
    %s26 = scalar_select %p23, %s24, %s25
    %p29 = pneg %p23
    %p30 = scmp.eq.s32.totalorder %s14, 1
    %p31 = por %p29, %p30
    %p32 = scmp.ne.s32.totalorder %s24, %s27
    %p33 = scmp.eq.s32.totalorder %s14, 0
    %p34 = por %p32, %p33
    %p35 = scmp.ne.s32.totalorder %s24, %s27
    %p36 = scmp.eq.s32.totalorder %s19, 1
    %p37 = por %p35, %p36
    %p38 = scmp.ne.s32.totalorder %s27, %s28
    %p39 = scmp.eq.s32.totalorder %s19, 0
    %p40 = por %p38, %p39
    %p41 = scmp.ne.s32.totalorder %s27, %s28
    %p42 = scmp.eq.s32.totalorder %s20, 1
    %p43 = por %p41, %p42
    %p45 = scmp.ne.s32.totalorder %s28, %s44
    %p46 = scmp.eq.s32.totalorder %s20, 0
    %p47 = por %p45, %p46
    %s48 = ssub.s32 %s14, %s21
    %p49 = scmp.eq.s32.totalorder %s48, 0
    %s51 = sadd.s32 %s50, 1
    %s52 = scalar_select %p49, %s50, %s51
    %p55 = pneg %p49
    %p56 = scmp.eq.s32.totalorder %s14, 1
    %p57 = por %p55, %p56
    %p58 = scmp.ne.s32.totalorder %s50, %s53
    %p59 = scmp.eq.s32.totalorder %s14, 0
    %p60 = por %p58, %p59
    %p61 = scmp.ne.s32.totalorder %s50, %s53
    %p62 = scmp.eq.s32.totalorder %s19, 1
    %p63 = por %p61, %p62
    %p64 = scmp.ne.s32.totalorder %s53, %s54
    %p65 = scmp.eq.s32.totalorder %s19, 0
    %p66 = por %p64, %p65
    %p67 = scmp.ne.s32.totalorder %s53, %s54
    %p68 = scmp.eq.s32.totalorder %s20, 1
    %p69 = por %p67, %p68
    %p71 = scmp.ne.s32.totalorder %s54, %s70
    %p72 = scmp.eq.s32.totalorder %s20, 0
    %p73 = por %p71, %p72
    %s74 = ssub.s32 %s14, %s21
    %p75 = scmp.eq.s32.totalorder %s74, 0
    %s77 = sadd.s32 %s76, 1
    %s78 = scalar_select %p75, %s76, %s77
    %p81 = pneg %p75
    %p82 = scmp.eq.s32.totalorder %s14, 1
    %p83 = por %p81, %p82
    %p84 = scmp.ne.s32.totalorder %s76, %s79
    %p85 = scmp.eq.s32.totalorder %s14, 0
    %p86 = por %p84, %p85
    %p87 = scmp.ne.s32.totalorder %s76, %s79
    %p88 = scmp.eq.s32.totalorder %s19, 1
    %p89 = por %p87, %p88
    %p90 = scmp.ne.s32.totalorder %s79, %s80
    %p91 = scmp.eq.s32.totalorder %s19, 0
    %p92 = por %p90, %p91
    %p93 = scmp.ne.s32.totalorder %s79, %s80
    %p94 = scmp.eq.s32.totalorder %s20, 1
    %p95 = por %p93, %p94
    %p97 = scmp.ne.s32.totalorder %s80, %s96
    %p98 = scmp.eq.s32.totalorder %s20, 0
    %p99 = por %p97, %p98
    %s100 = ssub.s32 %s14, %s21
    %p101 = scmp.eq.s32.totalorder %s100, 0
    %s103 = sadd.s32 %s102, 1
    %s104 = scalar_select %p101, %s102, %s103
    %p107 = pneg %p101
    %p108 = scmp.eq.s32.totalorder %s14, 1
    %p109 = por %p107, %p108
    %p110 = scmp.ne.s32.totalorder %s102, %s105
    %p111 = scmp.eq.s32.totalorder %s14, 0
    %p112 = por %p110, %p111
    %p113 = scmp.ne.s32.totalorder %s102, %s105
    %p114 = scmp.eq.s32.totalorder %s19, 1
    %p115 = por %p113, %p114
    %p116 = scmp.ne.s32.totalorder %s105, %s106
    %p117 = scmp.eq.s32.totalorder %s19, 0
    %p118 = por %p116, %p117
    %p119 = scmp.ne.s32.totalorder %s105, %s106
    %p120 = scmp.eq.s32.totalorder %s20, 1
    %p121 = por %p119, %p120
    %p123 = scmp.ne.s32.totalorder %s106, %s122
    %p124 = scmp.eq.s32.totalorder %s20, 0
    %p125 = por %p123, %p124
    %s126 = ssub.s32 %s14, %s21
    %p127 = scmp.eq.s32.totalorder %s126, 0
    %s129 = sadd.s32 %s128, 1
    %s130 = scalar_select %p127, %s128, %s129
    %p133 = pneg %p127
    %p134 = scmp.eq.s32.totalorder %s14, 1
    %p135 = por %p133, %p134
    %p136 = scmp.ne.s32.totalorder %s128, %s131
    %p137 = scmp.eq.s32.totalorder %s14, 0
    %p138 = por %p136, %p137
    %p139 = scmp.ne.s32.totalorder %s128, %s131
    %p140 = scmp.eq.s32.totalorder %s19, 1
    %p141 = por %p139, %p140
    %p142 = scmp.ne.s32.totalorder %s131, %s132
    %p143 = scmp.eq.s32.totalorder %s19, 0
    %p144 = por %p142, %p143
    %p145 = scmp.ne.s32.totalorder %s131, %s132
    %p146 = scmp.eq.s32.totalorder %s20, 1
    %p147 = por %p145, %p146
    %p149 = scmp.ne.s32.totalorder %s132, %s148
    %p150 = scmp.eq.s32.totalorder %s20, 0
    %p151 = por %p149, %p150
    %s152 = ssub.s32 %s14, %s21
    %p153 = scmp.eq.s32.totalorder %s152, 0
    %s155 = sadd.s32 %s154, 1
    %s156 = scalar_select %p153, %s154, %s155
    %p159 = pneg %p153
    %p160 = scmp.eq.s32.totalorder %s14, 1
    %p161 = por %p159, %p160
    %p162 = scmp.ne.s32.totalorder %s154, %s157
    %p163 = scmp.eq.s32.totalorder %s14, 0
    %p164 = por %p162, %p163
    %p165 = scmp.ne.s32.totalorder %s154, %s157
    %p166 = scmp.eq.s32.totalorder %s19, 1
    %p167 = por %p165, %p166
    %p168 = scmp.ne.s32.totalorder %s157, %s158
    %p169 = scmp.eq.s32.totalorder %s19, 0
    %p170 = por %p168, %p169
    %p171 = scmp.ne.s32.totalorder %s157, %s158
    %p172 = scmp.eq.s32.totalorder %s20, 1
    %p173 = por %p171, %p172
    %p175 = scmp.ne.s32.totalorder %s158, %s174
    %p176 = scmp.eq.s32.totalorder %s20, 0
    %p177 = por %p175, %p176
    %s179 = sadd.s32 %s178, 1
    %p182 = scmp.eq.s32.totalorder %s14, 1
    %p183 = scmp.ne.s32.totalorder %s178, %s180
    %p184 = scmp.eq.s32.totalorder %s14, 0
    %p185 = por %p183, %p184
    %p186 = scmp.ne.s32.totalorder %s178, %s180
    %p187 = scmp.eq.s32.totalorder %s19, 1
    %p188 = por %p186, %p187
    %p189 = scmp.ne.s32.totalorder %s180, %s181
    %p190 = scmp.eq.s32.totalorder %s19, 0
    %p191 = por %p189, %p190
    %p192 = scmp.ne.s32.totalorder %s180, %s181
    %p193 = scmp.eq.s32.totalorder %s20, 1
    %p194 = por %p192, %p193
    %p196 = scmp.ne.s32.totalorder %s181, %s195
    %p197 = scmp.eq.s32.totalorder %s20, 0
    %p198 = por %p196, %p197
    %s200 = sadd.s32 %s199, 1
    %p203 = scmp.eq.s32.totalorder %s14, 1
    %p204 = scmp.ne.s32.totalorder %s199, %s201
    %p205 = scmp.eq.s32.totalorder %s14, 0
    %p206 = por %p204, %p205
    %p207 = scmp.ne.s32.totalorder %s199, %s201
    %p208 = scmp.eq.s32.totalorder %s19, 1
    %p209 = por %p207, %p208
    %p210 = scmp.ne.s32.totalorder %s201, %s202
    %p211 = scmp.eq.s32.totalorder %s19, 0
    %p212 = por %p210, %p211
    %p213 = scmp.ne.s32.totalorder %s201, %s202
    %p214 = scmp.eq.s32.totalorder %s20, 1
    %p215 = por %p213, %p214
    %p217 = scmp.ne.s32.totalorder %s202, %s216
    %p218 = scmp.eq.s32.totalorder %s20, 0
    %p219 = por %p217, %p218
    %s220 = ssub.s32 %s14, %s21
    %p221 = scmp.eq.s32.totalorder %s220, 0
    %s223 = sadd.s32 %s222, 1
    %s224 = scalar_select %p221, %s222, %s223
    %p227 = pneg %p221
    %p228 = scmp.eq.s32.totalorder %s14, 1
    %p229 = por %p227, %p228
    %p230 = scmp.ne.s32.totalorder %s222, %s225
    %p231 = scmp.eq.s32.totalorder %s14, 0
    %p232 = por %p230, %p231
    %p233 = scmp.ne.s32.totalorder %s222, %s225
    %p234 = scmp.eq.s32.totalorder %s19, 1
    %p235 = por %p233, %p234
    %p236 = scmp.ne.s32.totalorder %s225, %s226
    %p237 = scmp.eq.s32.totalorder %s19, 0
    %p238 = por %p236, %p237
    %p239 = scmp.ne.s32.totalorder %s225, %s226
    %p240 = scmp.eq.s32.totalorder %s20, 1
    %p241 = por %p239, %p240
    %p243 = scmp.ne.s32.totalorder %s226, %s242
    %p244 = scmp.eq.s32.totalorder %s20, 0
    %p245 = por %p243, %p244
    %p246 = scmp.le.s32.totalorder 1, %s14
    %p247 = scmp.lt.s32.totalorder %s14, 3
    %p248 = pnand %p246, %p247
    %p249 = pneg %p248
    // Predicated region
    $region9: #{a_call__.3} parent=5 // pred_check
      _
    $region10: #{a_call__.3} parent=5 // pred_check_branch
      %251 = sbr.rel (%p248) target = $region12
    $region11: #{a_call__.3} parent=5 // pred_region
      %s252 = ssub.s32 %s14, 1
      // Predicated region
      $region13: #{a_call__.3} parent=11 // pred_check
        %p253 = pneg %p191
      $region14: #{a_call__.3} parent=11 // pred_check_branch
        %255 = sbr.rel (%p253) target = $region16
      $region15: #{a_call__.3} parent=11 // pred_region
        _
      $region16: #{a_call__.3} parent=11 // pred_fallthru
        _
      // Predicated region
      $region17: #{a_call__.3} parent=11 // pred_check
        %p256 = pneg %p212
      $region18: #{a_call__.3} parent=11 // pred_check_branch
        %258 = sbr.rel (%p256) target = $region20
      $region19: #{a_call__.3} parent=11 // pred_region
        _
      $region20: #{a_call__.3} parent=11 // pred_fallthru
        _
    $region12: #{a_call__.3} parent=5 // pred_fallthru
      _
    %p259 = scmp.lt.s32.totalorder %s14, 2
    // Predicated region
    $region21: #{a_call__.3} parent=5 // pred_check
      %p260 = pneg %p259
    $region22: #{a_call__.3} parent=5 // pred_check_branch
      %262 = sbr.rel (%p260) target = $region24
    $region23: #{a_call__.3} parent=5 // pred_region
      // Predicated region
      $region25: #{a_call__.3} parent=23 // pred_check
        %p263 = pneg %p34
      $region26: #{a_call__.3} parent=23 // pred_check_branch
        %265 = sbr.rel (%p263) target = $region28
      $region27: #{a_call__.3} parent=23 // pred_region
        %s266 = smul.u32 4, %s14
        %p267 = scmp.lt.s32.totalorder %s266, 7
        %s268 = scalar_select %p267, %s266, 7
        %s269 = smul.addr %s268, 2
        %s270 = smul.addr %s269, 8
        %s271 = scalar_lea.vmem %s0, %s270
        %s272 = smul.u32 4, %s14
      $region28: #{a_call__.3} parent=23 // pred_fallthru
        _
      // Predicated region
      $region29: #{a_call__.3} parent=23 // pred_check
        %p273 = pneg %p60
      $region30: #{a_call__.3} parent=23 // pred_check_branch
        %275 = sbr.rel (%p273) target = $region32
      $region31: #{a_call__.3} parent=23 // pred_region
        %s276 = smul.u32 4, %s14
        %p277 = scmp.lt.s32.totalorder %s276, 7
        %s278 = scalar_select %p277, %s276, 7
        %s279 = smul.addr %s278, 2
        %s280 = smul.addr %s279, 8
        %s281 = scalar_lea.vmem %s1, %s280
        %s282 = smul.u32 4, %s14
      $region32: #{a_call__.3} parent=23 // pred_fallthru
        _
      // Predicated region
      $region33: #{a_call__.3} parent=23 // pred_check
        %p283 = pneg %p86
      $region34: #{a_call__.3} parent=23 // pred_check_branch
        %285 = sbr.rel (%p283) target = $region36
      $region35: #{a_call__.3} parent=23 // pred_region
        %s286 = smul.u32 4, %s14
        %p287 = scmp.lt.s32.totalorder %s286, 7
        %s288 = scalar_select %p287, %s286, 7
        %s289 = smul.addr %s288, 2
        %s290 = smul.addr %s289, 8
        %s291 = scalar_lea.vmem %s2, %s290
        %s292 = smul.u32 4, %s14
      $region36: #{a_call__.3} parent=23 // pred_fallthru
        _
      // Predicated region
      $region37: #{a_call__.3} parent=23 // pred_check
        %p293 = pneg %p112
      $region38: #{a_call__.3} parent=23 // pred_check_branch
        %295 = sbr.rel (%p293) target = $region40
      $region39: #{a_call__.3} parent=23 // pred_region
        %s296 = smul.u32 4, %s14
        %p297 = scmp.lt.s32.totalorder %s296, 7
        %s298 = scalar_select %p297, %s296, 7
        %s299 = smul.addr %s298, 2
        %s300 = smul.addr %s299, 8
        %s301 = scalar_lea.vmem %s3, %s300
        %s302 = smul.u32 4, %s14
      $region40: #{a_call__.3} parent=23 // pred_fallthru
        _
      // Predicated region
      $region41: #{a_call__.3} parent=23 // pred_check
        %p303 = pneg %p138
      $region42: #{a_call__.3} parent=23 // pred_check_branch
        %305 = sbr.rel (%p303) target = $region44
      $region43: #{a_call__.3} parent=23 // pred_region
        %s306 = smul.u32 4, %s14
        %p307 = scmp.lt.s32.totalorder %s306, 7
        %s308 = scalar_select %p307, %s306, 7
        %s309 = smul.addr %s308, 2
        %s310 = smul.addr %s309, 8
        %s311 = scalar_lea.vmem %s4, %s310
        %s312 = smul.u32 4, %s14
      $region44: #{a_call__.3} parent=23 // pred_fallthru
        _
      // Predicated region
      $region45: #{a_call__.3} parent=23 // pred_check
        %p313 = pneg %p164
      $region46: #{a_call__.3} parent=23 // pred_check_branch
        %315 = sbr.rel (%p313) target = $region48
      $region47: #{a_call__.3} parent=23 // pred_region
        %s316 = smul.u32 4, %s14
        %p317 = scmp.lt.s32.totalorder %s316, 7
        %s318 = scalar_select %p317, %s316, 7
        %s319 = smul.addr %s318, 2
        %s320 = smul.addr %s319, 8
        %s321 = scalar_lea.vmem %s5, %s320
        %s322 = smul.u32 4, %s14
      $region48: #{a_call__.3} parent=23 // pred_fallthru
        _
    $region24: #{a_call__.3} parent=5 // pred_fallthru
      _
    %p323 = scmp.le.s32.totalorder 1, %s14
    %p324 = scmp.lt.s32.totalorder %s14, 3
    %p325 = pnand %p323, %p324
    %p326 = pneg %p325
    // Predicated region
    $region49: #{a_call__.3} parent=5 // pred_check
      _
    $region50: #{a_call__.3} parent=5 // pred_check_branch
      %328 = sbr.rel (%p325) target = $region52
    $region51: #{a_call__.3} parent=5 // pred_region
      %s329 = ssub.s32 %s14, 1
      %s330 = smul.u32 4, %s19
      %p331 = scmp.lt.s32.totalorder %s330, 7
      %s332 = scalar_select %p331, %s330, 7
      %s333 = smul.addr %s332, 2
      %s334 = smul.addr %s333, 8
      %s335 = scalar_lea.vmem %s0, %s334
      %p336 = pneg %p40
      %p337 = pneg %p37
      %s338 = smul.u32 4, %s19
      %p339 = scmp.lt.s32.totalorder %s338, 7
      %s340 = scalar_select %p339, %s338, 7
      %s341 = smul.addr %s340, 2
      %s342 = smul.addr %s341, 8
      %s343 = scalar_lea.vmem %s1, %s342
      %p344 = pneg %p66
      %p345 = pneg %p63
      %s346 = smul.u32 4, %s19
      %p347 = scmp.lt.s32.totalorder %s346, 7
      %s348 = scalar_select %p347, %s346, 7
      %s349 = smul.addr %s348, 2
      %s350 = smul.addr %s349, 8
      %s351 = scalar_lea.vmem %s2, %s350
      %p352 = pneg %p92
      %p353 = pneg %p89
      %s354 = smul.u32 4, %s19
      %p355 = scmp.lt.s32.totalorder %s354, 7
      %s356 = scalar_select %p355, %s354, 7
      %s357 = smul.addr %s356, 2
      %s358 = smul.addr %s357, 8
      %s359 = scalar_lea.vmem %s3, %s358
      %p360 = pneg %p118
      %p361 = pneg %p115
      %s362 = smul.u32 4, %s19
      %p363 = scmp.lt.s32.totalorder %s362, 7
      %s364 = scalar_select %p363, %s362, 7
      %s365 = smul.addr %s364, 2
      %s366 = smul.addr %s365, 8
      %s367 = scalar_lea.vmem %s4, %s366
      %p368 = pneg %p144
      %p369 = pneg %p141
      %s370 = smul.u32 4, %s19
      %p371 = scmp.lt.s32.totalorder %s370, 7
      %s372 = scalar_select %p371, %s370, 7
      %s373 = smul.addr %s372, 2
      %s374 = smul.addr %s373, 8
      %s375 = scalar_lea.vmem %s5, %s374
      %p376 = pneg %p170
      %p377 = pneg %p167
      %p378 = pneg %p191
      %p379 = pneg %p188
      %p380 = pneg %p212
      %p381 = pneg %p209
      %p382 = pneg %p238
      %p383 = pneg %p235
      %s384 = smul.u32 4, %s19
      %p385 = scmp.lt.s32.totalorder %s384, 7
      %s386 = scalar_select %p385, %s384, 7
      %s387 = smul.addr %s386, 4
      %s388 = smul.addr %s387, 8
      %s389 = scalar_lea.vmem %s8, %s388
      %s390 = smul.u32 4, %s19
      %p391 = scmp.lt.s32.totalorder %s390, 7
      %s392 = scalar_select %p391, %s390, 7
      %s393 = smul.addr %s392, 2
      %s394 = smul.addr %s393, 8
      %s395 = scalar_lea.vmem %s0, %s394
      %s396 = smul.u32 4, %s19
      %s397 = smul.u32 4, %s19
      %p398 = scmp.lt.s32.totalorder %s397, 7
      %s399 = scalar_select %p398, %s397, 7
      %s400 = smul.addr %s399, 2
      %s401 = smul.addr %s400, 8
      %s402 = scalar_lea.vmem %s1, %s401
      %s403 = smul.u32 4, %s19
      %s404 = smul.u32 4, %s19
      %p405 = scmp.lt.s32.totalorder %s404, 7
      %s406 = scalar_select %p405, %s404, 7
      %s407 = smul.addr %s406, 2
      %s408 = smul.addr %s407, 8
      %s409 = scalar_lea.vmem %s2, %s408
      %s410 = smul.u32 4, %s19
      %s411 = smul.u32 4, %s19
      %p412 = scmp.lt.s32.totalorder %s411, 7
      %s413 = scalar_select %p412, %s411, 7
      %s414 = smul.addr %s413, 2
      %s415 = smul.addr %s414, 8
      %s416 = scalar_lea.vmem %s3, %s415
      %s417 = smul.u32 4, %s19
      %s418 = smul.u32 4, %s19
      %p419 = scmp.lt.s32.totalorder %s418, 7
      %s420 = scalar_select %p419, %s418, 7
      %s421 = smul.addr %s420, 2
      %s422 = smul.addr %s421, 8
      %s423 = scalar_lea.vmem %s4, %s422
      %s424 = smul.u32 4, %s19
      %s425 = smul.u32 4, %s19
      %p426 = scmp.lt.s32.totalorder %s425, 7
      %s427 = scalar_select %p426, %s425, 7
      %s428 = smul.addr %s427, 2
      %s429 = smul.addr %s428, 8
      %s430 = scalar_lea.vmem %s5, %s429
      %s431 = smul.u32 4, %s19
      %s432 = smul.u32 4, %s19
      %p433 = scmp.lt.s32.totalorder %s432, 7
      %s434 = scalar_select %p433, %s432, 7
      %s435 = smul.addr %s434, 4
      %s436 = smul.addr %s435, 8
      %s437 = scalar_lea.vmem %s8, %s436
      %s438 = smul.u32 4, %s19
      %v439 = vld [vmem:[%s6] sm:$0xff]
      %v440 = vld [vmem:[%s6 + $0x8] sm:$0xff]
      %v441 = vld [vmem:[%s6 + $0x10] sm:$0xff]
      %v442 = vld [vmem:[%s6 + $0x18] sm:$0xff]
      %v443 = vld [vmem:[%s6 + $0x20] sm:$0xff]
      %v444 = vld [vmem:[%s6 + $0x28] sm:$0xff]
      %v445 = vld [vmem:[%s6 + $0x30] sm:$0xff]
      %v446 = vld [vmem:[%s6 + $0x38] sm:$0xff]
      %v447 = vld [vmem:[%s7] sm:$0xff]
      %v448 = vld [vmem:[%s7 + $0x8] sm:$0xff]
      %v449 = vld [vmem:[%s7 + $0x10] sm:$0xff]
      %v450 = vld [vmem:[%s7 + $0x18] sm:$0xff]
      %v451 = vld [vmem:[%s395] sm:$0xff]
      %v452 = vld [vmem:[%s395 + $0x8] sm:$0xff]
      %v453 = vld [vmem:[%s395 + $0x10] sm:$0xff]
      %v454 = vld [vmem:[%s395 + $0x18] sm:$0xff]
      %v455 = vld [vmem:[%s395 + $0x20] sm:$0xff]
      %v456 = vld [vmem:[%s395 + $0x28] sm:$0xff]
      %v457 = vld [vmem:[%s395 + $0x30] sm:$0xff]
      %v458 = vld [vmem:[%s395 + $0x38] sm:$0xff]
      %v459 = vld [vmem:[%s402] sm:$0xff]
      %v460 = vld [vmem:[%s402 + $0x8] sm:$0xff]
      %v461 = vld [vmem:[%s402 + $0x10] sm:$0xff]
      %v462 = vld [vmem:[%s402 + $0x18] sm:$0xff]
      %v463 = vld [vmem:[%s402 + $0x20] sm:$0xff]
      %v464 = vld [vmem:[%s402 + $0x28] sm:$0xff]
      %v465 = vld [vmem:[%s402 + $0x30] sm:$0xff]
      %v466 = vld [vmem:[%s402 + $0x38] sm:$0xff]
      %v467 = vld [vmem:[%s409] sm:$0xff]
      %v468 = vld [vmem:[%s409 + $0x8] sm:$0xff]
      %v469 = vld [vmem:[%s409 + $0x10] sm:$0xff]
      %v470 = vld [vmem:[%s409 + $0x18] sm:$0xff]
      %v471 = vld [vmem:[%s409 + $0x20] sm:$0xff]
      %v472 = vld [vmem:[%s409 + $0x28] sm:$0xff]
      %v473 = vld [vmem:[%s409 + $0x30] sm:$0xff]
      %v474 = vld [vmem:[%s409 + $0x38] sm:$0xff]
      %v475 = vld [vmem:[%s416] sm:$0xff]
      %v476 = vld [vmem:[%s416 + $0x8] sm:$0xff]
      %v477 = vld [vmem:[%s416 + $0x10] sm:$0xff]
      %v478 = vld [vmem:[%s416 + $0x18] sm:$0xff]
      %v479 = vld [vmem:[%s416 + $0x20] sm:$0xff]
      %v480 = vld [vmem:[%s416 + $0x28] sm:$0xff]
      %v481 = vld [vmem:[%s416 + $0x30] sm:$0xff]
      %v482 = vld [vmem:[%s416 + $0x38] sm:$0xff]
      %v483 = vld [vmem:[%s423] sm:$0xff]
      %v484 = vld [vmem:[%s423 + $0x8] sm:$0xff]
      %v485 = vld [vmem:[%s423 + $0x10] sm:$0xff]
      %v486 = vld [vmem:[%s423 + $0x18] sm:$0xff]
      %v487 = vld [vmem:[%s423 + $0x20] sm:$0xff]
      %v488 = vld [vmem:[%s423 + $0x28] sm:$0xff]
      %v489 = vld [vmem:[%s423 + $0x30] sm:$0xff]
      %v490 = vld [vmem:[%s423 + $0x38] sm:$0xff]
      %v491 = vld [vmem:[%s430] sm:$0xff]
      %v492 = vld [vmem:[%s430 + $0x8] sm:$0xff]
      %v493 = vld [vmem:[%s430 + $0x10] sm:$0xff]
      %v494 = vld [vmem:[%s430 + $0x18] sm:$0xff]
      %v495 = vld [vmem:[%s430 + $0x20] sm:$0xff]
      %v496 = vld [vmem:[%s430 + $0x28] sm:$0xff]
      %v497 = vld [vmem:[%s430 + $0x30] sm:$0xff]
      %v498 = vld [vmem:[%s430 + $0x38] sm:$0xff]
      %501 = vrot.lane.b32.xlu0 %v451, 127
      %v502 = vpop.permute.xlu0 %501
      %503 = vrot.lane.b32.xlu0 %v452, 127
      %v504 = vpop.permute.xlu0 %503
      %509 = vrot.lane.b32.xlu0 %v467, 127
      %v510 = vpop.permute.xlu0 %509
      %511 = vrot.lane.b32.xlu0 %v468, 127
      %v512 = vpop.permute.xlu0 %511
      %517 = vrot.lane.b32.xlu0 %v483, 127
      %v518 = vpop.permute.xlu0 %517
      %519 = vrot.lane.b32.xlu0 %v484, 127
      %v520 = vpop.permute.xlu0 %519
      %524 = vset.pattern.permute.xlu0 0
      %525 = vperm.xlu0 %524, %v447
      %v526 = vpop.permute.xlu0 %525
      %529 = vset.pattern.permute.xlu0 0
      %530 = vperm.xlu0 %529, %v448
      %v531 = vpop.permute.xlu0 %530
      %534 = vset.pattern.permute.xlu0 0
      %535 = vperm.xlu0 %534, %v449
      %v536 = vpop.permute.xlu0 %535
      %539 = vset.pattern.permute.xlu0 0
      %540 = vperm.xlu0 %539, %v450
      %v541 = vpop.permute.xlu0 %540
      %vm543 = vcmask 130048
      %v545 = vsel %vm543, %v440, 0
      %v548 = vsel %vm543, %v442, 0
      %v551 = vsel %vm543, %v444, 0
      %v554 = vsel %vm543, %v446, 0
      %556 = vmatprep.subr.mxu0 0.0
      %557 = vmatpush1.msra.mxu0 %v451
      %558 = vmatprep.subr.mxu0 0.0
      %559 = vmatpush1.msra.mxu0 %v452
      %560 = vmatprep.subr.mxu0 0.0
      %561 = vmatpush1.msra.mxu0 %v459
      %562 = vmatprep.subr.mxu0 0.0
      %563 = vmatpush1.msra.mxu0 %v460
      %564 = vmatprep.subr.mxu0 0.0
      %565 = vmatpush1.msra.mxu0 %v502
      %566 = vmatprep.subr.mxu0 0.0
      %567 = vmatpush1.msra.mxu0 %v504
      %568 = vmatprep.subr.mxu0 0.0
      %569 = vmatpush1.msra.mxu0 %v467
      %570 = vmatprep.subr.mxu0 0.0
      %571 = vmatpush1.msra.mxu0 %v468
      %572 = vmatprep.subr.mxu0 0.0
      %573 = vmatpush1.msra.mxu0 %v475
      %574 = vmatprep.subr.mxu0 0.0
      %575 = vmatpush1.msra.mxu0 %v476
      %576 = vmatprep.subr.mxu0 0.0
      %577 = vmatpush1.msra.mxu0 %v510
      %578 = vmatprep.subr.mxu0 0.0
      %579 = vmatpush1.msra.mxu0 %v512
      %580 = vmatprep.subr.mxu0 0.0
      %581 = vmatpush1.msra.mxu0 %v483
      %582 = vmatprep.subr.mxu0 0.0
      %583 = vmatpush1.msra.mxu0 %v484
      %584 = vmatprep.subr.mxu0 0.0
      %585 = vmatpush1.msra.mxu0 %v491
      %586 = vmatprep.subr.mxu0 0.0
      %587 = vmatpush1.msra.mxu0 %v492
      %588 = vmatprep.subr.mxu0 0.0
      %589 = vmatpush1.msra.mxu0 %v518
      %590 = vmatprep.subr.mxu0 0.0
      %591 = vmatpush1.msra.mxu0 %v520
      %592 = vmatprep.subr.mxu0 0.0
      %593 = vmatpush1.msra.mxu0 0.0
      %594 = vmatprep.subr.mxu0 0.0
      %595 = vmatpush1.msra.mxu0 0.0
      %596 = vmatprep.subr.mxu0 0.0
      %597 = vmatpush1.msra.mxu0 0.0
      %598 = vmatprep.subr.mxu0 0.0
      %599 = vmatpush1.msra.mxu0 0.0
      %600 = vmatprep.subr.mxu0 0.0
      %601 = vmatpush1.msra.mxu0 0.0
      %602 = vmatprep.subr.mxu0 0.0
      %603 = vmatpush1.msra.mxu0 0.0
      %604 = vmatprep.subr.mxu0 0.0
      %605 = vmatpush1.msra.mxu0 0.0
      %606 = vmatprep.subr.mxu0 0.0
      %607 = vmatpush1.msra.mxu0 0.0
      %608 = vmatprep.subr.mxu0 0.0
      %609 = vmatpush1.msra.mxu0 0.0
      %610 = vmatprep.subr.mxu0 0.0
      %611 = vmatpush1.msra.mxu0 0.0
      %612 = vmatprep.subr.mxu0 0.0
      %613 = vmatpush1.msra.mxu0 0.0
      %614 = vmatprep.subr.mxu0 0.0
      %615 = vmatpush1.msra.mxu0 0.0
      %616 = vmatprep.subr.mxu0 0.0
      %617 = vmatpush1.msra.mxu0 0.0
      %618 = vmatprep.subr.mxu0 0.0
      %619 = vmatpush1.msra.mxu0 0.0
      %620 = vmatprep.mubr.f32.mxu0 %v545
      %621 = vmatmul.mubr.f32.gmra.mrb[0].mxu0 %v439
      %v622 = vpop.f32.mrb[0].mxu0
      %v623 = vadd.f32 %v526, %v622
      %v624 = vpop.f32.mrb[0].mxu0
      %625 = vmatprep.mubr.f32.mxu0 %v548
      %626 = vmatmul.mubr.f32.gmra.mrb[0].mxu0 %v441
      %v627 = vpop.f32.mrb[0].mxu0
      %v628 = vadd.f32 %v531, %v627
      %v629 = vpop.f32.mrb[0].mxu0
      %630 = vmatprep.mubr.f32.mxu0 %v551
      %631 = vmatmul.mubr.f32.gmra.mrb[0].mxu0 %v443
      %v632 = vpop.f32.mrb[0].mxu0
      %v633 = vadd.f32 %v536, %v632
      %v634 = vpop.f32.mrb[0].mxu0
      %635 = vmatprep.mubr.f32.mxu0 %v554
      %636 = vmatmul.mubr.f32.gmra.mrb[0].mxu0 %v445
      %v637 = vpop.f32.mrb[0].mxu0
      %v638 = vadd.f32 %v541, %v637
      %v639 = vpop.f32.mrb[0].mxu0
      %640 = vdwg.mxu0
      %v641 = vmax.f32 %v623, 0.0
      %v642 = vmax.f32 %v628, 0.0
      %v643 = vmax.f32 %v633, 0.0
      %v644 = vmax.f32 %v638, 0.0
      %vm645 = vcmask 31744
      %646 = vst.msk [vmem:[%s437] sm:$0xff] %vm645, %v641
      %647 = vst.msk [vmem:[%s437 + $0x8] sm:$0xff] %vm645, %v642
      %648 = vst.msk [vmem:[%s437 + $0x10] sm:$0xff] %vm645, %v643
      %649 = vst.msk [vmem:[%s437 + $0x18] sm:$0xff] %vm645, %v644
      %652 = vrot.lane.b32.xlu0 %v453, 127
      %v653 = vpop.permute.xlu0 %652
      %654 = vrot.lane.b32.xlu0 %v454, 127
      %v655 = vpop.permute.xlu0 %654
      %660 = vrot.lane.b32.xlu0 %v469, 127
      %v661 = vpop.permute.xlu0 %660
      %662 = vrot.lane.b32.xlu0 %v470, 127
      %v663 = vpop.permute.xlu0 %662
      %668 = vrot.lane.b32.xlu0 %v485, 127
      %v669 = vpop.permute.xlu0 %668
      %670 = vrot.lane.b32.xlu0 %v486, 127
      %v671 = vpop.permute.xlu0 %670
      %674 = vmatprep.subr.mxu0 0.0
      %675 = vmatpush1.msra.mxu0 %v453
      %676 = vmatprep.subr.mxu0 0.0
      %677 = vmatpush1.msra.mxu0 %v454
      %678 = vmatprep.subr.mxu0 0.0
      %679 = vmatpush1.msra.mxu0 %v461
      %680 = vmatprep.subr.mxu0 0.0
      %681 = vmatpush1.msra.mxu0 %v462
      %682 = vmatprep.subr.mxu0 0.0
      %683 = vmatpush1.msra.mxu0 %v653
      %684 = vmatprep.subr.mxu0 0.0
      %685 = vmatpush1.msra.mxu0 %v655
      %686 = vmatprep.subr.mxu0 0.0
      %687 = vmatpush1.msra.mxu0 %v469
      %688 = vmatprep.subr.mxu0 0.0
      %689 = vmatpush1.msra.mxu0 %v470
      %690 = vmatprep.subr.mxu0 0.0
      %691 = vmatpush1.msra.mxu0 %v477
      %692 = vmatprep.subr.mxu0 0.0
      %693 = vmatpush1.msra.mxu0 %v478
      %694 = vmatprep.subr.mxu0 0.0
      %695 = vmatpush1.msra.mxu0 %v661
      %696 = vmatprep.subr.mxu0 0.0
      %697 = vmatpush1.msra.mxu0 %v663
      %698 = vmatprep.subr.mxu0 0.0
      %699 = vmatpush1.msra.mxu0 %v485
      %700 = vmatprep.subr.mxu0 0.0
      %701 = vmatpush1.msra.mxu0 %v486
      %702 = vmatprep.subr.mxu0 0.0
      %703 = vmatpush1.msra.mxu0 %v493
      %704 = vmatprep.subr.mxu0 0.0
      %705 = vmatpush1.msra.mxu0 %v494
      %706 = vmatprep.subr.mxu0 0.0
      %707 = vmatpush1.msra.mxu0 %v669
      %708 = vmatprep.subr.mxu0 0.0
      %709 = vmatpush1.msra.mxu0 %v671
      %710 = vmatprep.subr.mxu0 0.0
      %711 = vmatpush1.msra.mxu0 0.0
      %712 = vmatprep.subr.mxu0 0.0
      %713 = vmatpush1.msra.mxu0 0.0
      %714 = vmatprep.subr.mxu0 0.0
      %715 = vmatpush1.msra.mxu0 0.0
      %716 = vmatprep.subr.mxu0 0.0
      %717 = vmatpush1.msra.mxu0 0.0
      %718 = vmatprep.subr.mxu0 0.0
      %719 = vmatpush1.msra.mxu0 0.0
      %720 = vmatprep.subr.mxu0 0.0
      %721 = vmatpush1.msra.mxu0 0.0
      %722 = vmatprep.subr.mxu0 0.0
      %723 = vmatpush1.msra.mxu0 0.0
      %724 = vmatprep.subr.mxu0 0.0
      %725 = vmatpush1.msra.mxu0 0.0
      %726 = vmatprep.subr.mxu0 0.0
      %727 = vmatpush1.msra.mxu0 0.0
      %728 = vmatprep.subr.mxu0 0.0
      %729 = vmatpush1.msra.mxu0 0.0
      %730 = vmatprep.subr.mxu0 0.0
      %731 = vmatpush1.msra.mxu0 0.0
      %732 = vmatprep.subr.mxu0 0.0
      %733 = vmatpush1.msra.mxu0 0.0
      %734 = vmatprep.subr.mxu0 0.0
      %735 = vmatpush1.msra.mxu0 0.0
      %736 = vmatprep.subr.mxu0 0.0
      %737 = vmatpush1.msra.mxu0 0.0
      %738 = vmatprep.mubr.f32.mxu0 %v545
      %739 = vmatmul.mubr.f32.gmra.mrb[0].mxu0 %v439
      %v740 = vpop.f32.mrb[0].mxu0
      %v741 = vadd.f32 %v526, %v740
      %v742 = vpop.f32.mrb[0].mxu0
      %743 = vmatprep.mubr.f32.mxu0 %v548
      %744 = vmatmul.mubr.f32.gmra.mrb[0].mxu0 %v441
      %v745 = vpop.f32.mrb[0].mxu0
      %v746 = vadd.f32 %v531, %v745
      %v747 = vpop.f32.mrb[0].mxu0
      %748 = vmatprep.mubr.f32.mxu0 %v551
      %749 = vmatmul.mubr.f32.gmra.mrb[0].mxu0 %v443
      %v750 = vpop.f32.mrb[0].mxu0
      %v751 = vadd.f32 %v536, %v750
      %v752 = vpop.f32.mrb[0].mxu0
      %753 = vmatprep.mubr.f32.mxu0 %v554
      %754 = vmatmul.mubr.f32.gmra.mrb[0].mxu0 %v445
      %v755 = vpop.f32.mrb[0].mxu0
      %v756 = vadd.f32 %v541, %v755
      %v757 = vpop.f32.mrb[0].mxu0
      %758 = vdwg.mxu0
      %v759 = vmax.f32 %v741, 0.0
      %v760 = vmax.f32 %v746, 0.0
      %v761 = vmax.f32 %v751, 0.0
      %v762 = vmax.f32 %v756, 0.0
      %s763 = scalar_lea.vmem %s437, 32
      %764 = vst.msk [vmem:[%s763] sm:$0xff] %vm645, %v759
      %765 = vst.msk [vmem:[%s763 + $0x8] sm:$0xff] %vm645, %v760
      %766 = vst.msk [vmem:[%s763 + $0x10] sm:$0xff] %vm645, %v761
      %767 = vst.msk [vmem:[%s763 + $0x18] sm:$0xff] %vm645, %v762
      %770 = vrot.lane.b32.xlu0 %v455, 127
      %v771 = vpop.permute.xlu0 %770
      %772 = vrot.lane.b32.xlu0 %v456, 127
      %v773 = vpop.permute.xlu0 %772
      %778 = vrot.lane.b32.xlu0 %v471, 127
      %v779 = vpop.permute.xlu0 %778
      %780 = vrot.lane.b32.xlu0 %v472, 127
      %v781 = vpop.permute.xlu0 %780
      %786 = vrot.lane.b32.xlu0 %v487, 127
      %v787 = vpop.permute.xlu0 %786
      %788 = vrot.lane.b32.xlu0 %v488, 127
      %v789 = vpop.permute.xlu0 %788
      %792 = vmatprep.subr.mxu0 0.0
      %793 = vmatpush1.msra.mxu0 %v455
      %794 = vmatprep.subr.mxu0 0.0
      %795 = vmatpush1.msra.mxu0 %v456
      %796 = vmatprep.subr.mxu0 0.0
      %797 = vmatpush1.msra.mxu0 %v463
      %798 = vmatprep.subr.mxu0 0.0
      %799 = vmatpush1.msra.mxu0 %v464
      %800 = vmatprep.subr.mxu0 0.0
      %801 = vmatpush1.msra.mxu0 %v771
      %802 = vmatprep.subr.mxu0 0.0
      %803 = vmatpush1.msra.mxu0 %v773
      %804 = vmatprep.subr.mxu0 0.0
      %805 = vmatpush1.msra.mxu0 %v471
      %806 = vmatprep.subr.mxu0 0.0
      %807 = vmatpush1.msra.mxu0 %v472
      %808 = vmatprep.subr.mxu0 0.0
      %809 = vmatpush1.msra.mxu0 %v479
      %810 = vmatprep.subr.mxu0 0.0
      %811 = vmatpush1.msra.mxu0 %v480
      %812 = vmatprep.subr.mxu0 0.0
      %813 = vmatpush1.msra.mxu0 %v779
      %814 = vmatprep.subr.mxu0 0.0
      %815 = vmatpush1.msra.mxu0 %v781
      %816 = vmatprep.subr.mxu0 0.0
      %817 = vmatpush1.msra.mxu0 %v487
      %818 = vmatprep.subr.mxu0 0.0
      %819 = vmatpush1.msra.mxu0 %v488
      %820 = vmatprep.subr.mxu0 0.0
      %821 = vmatpush1.msra.mxu0 %v495
      %822 = vmatprep.subr.mxu0 0.0
      %823 = vmatpush1.msra.mxu0 %v496
      %824 = vmatprep.subr.mxu0 0.0
      %825 = vmatpush1.msra.mxu0 %v787
      %826 = vmatprep.subr.mxu0 0.0
      %827 = vmatpush1.msra.mxu0 %v789
      %828 = vmatprep.subr.mxu0 0.0
      %829 = vmatpush1.msra.mxu0 0.0
      %830 = vmatprep.subr.mxu0 0.0
      %831 = vmatpush1.msra.mxu0 0.0
      %832 = vmatprep.subr.mxu0 0.0
      %833 = vmatpush1.msra.mxu0 0.0
      %834 = vmatprep.subr.mxu0 0.0
      %835 = vmatpush1.msra.mxu0 0.0
      %836 = vmatprep.subr.mxu0 0.0
      %837 = vmatpush1.msra.mxu0 0.0
      %838 = vmatprep.subr.mxu0 0.0
      %839 = vmatpush1.msra.mxu0 0.0
      %840 = vmatprep.subr.mxu0 0.0
      %841 = vmatpush1.msra.mxu0 0.0
      %842 = vmatprep.subr.mxu0 0.0
      %843 = vmatpush1.msra.mxu0 0.0
      %844 = vmatprep.subr.mxu0 0.0
      %845 = vmatpush1.msra.mxu0 0.0
      %846 = vmatprep.subr.mxu0 0.0
      %847 = vmatpush1.msra.mxu0 0.0
      %848 = vmatprep.subr.mxu0 0.0
      %849 = vmatpush1.msra.mxu0 0.0
      %850 = vmatprep.subr.mxu0 0.0
      %851 = vmatpush1.msra.mxu0 0.0
      %852 = vmatprep.subr.mxu0 0.0
      %853 = vmatpush1.msra.mxu0 0.0
      %854 = vmatprep.subr.mxu0 0.0
      %855 = vmatpush1.msra.mxu0 0.0
      %856 = vmatprep.mubr.f32.mxu0 %v545
      %857 = vmatmul.mubr.f32.gmra.mrb[0].mxu0 %v439
      %v858 = vpop.f32.mrb[0].mxu0
      %v859 = vadd.f32 %v526, %v858
      %v860 = vpop.f32.mrb[0].mxu0
      %861 = vmatprep.mubr.f32.mxu0 %v548
      %862 = vmatmul.mubr.f32.gmra.mrb[0].mxu0 %v441
      %v863 = vpop.f32.mrb[0].mxu0
      %v864 = vadd.f32 %v531, %v863
      %v865 = vpop.f32.mrb[0].mxu0
      %866 = vmatprep.mubr.f32.mxu0 %v551
      %867 = vmatmul.mubr.f32.gmra.mrb[0].mxu0 %v443
      %v868 = vpop.f32.mrb[0].mxu0
      %v869 = vadd.f32 %v536, %v868
      %v870 = vpop.f32.mrb[0].mxu0
      %871 = vmatprep.mubr.f32.mxu0 %v554
      %872 = vmatmul.mubr.f32.gmra.mrb[0].mxu0 %v445
      %v873 = vpop.f32.mrb[0].mxu0
      %v874 = vadd.f32 %v541, %v873
      %v875 = vpop.f32.mrb[0].mxu0
      %876 = vdwg.mxu0
      %v877 = vmax.f32 %v859, 0.0
      %v878 = vmax.f32 %v864, 0.0
      %v879 = vmax.f32 %v869, 0.0
      %v880 = vmax.f32 %v874, 0.0
      %s881 = scalar_lea.vmem %s437, 64
      %882 = vst.msk [vmem:[%s881] sm:$0xff] %vm645, %v877
      %883 = vst.msk [vmem:[%s881 + $0x8] sm:$0xff] %vm645, %v878
      %884 = vst.msk [vmem:[%s881 + $0x10] sm:$0xff] %vm645, %v879
      %885 = vst.msk [vmem:[%s881 + $0x18] sm:$0xff] %vm645, %v880
      %888 = vrot.lane.b32.xlu0 %v457, 127
      %v889 = vpop.permute.xlu0 %888
      %890 = vrot.lane.b32.xlu0 %v458, 127
      %v891 = vpop.permute.xlu0 %890
      %896 = vrot.lane.b32.xlu0 %v473, 127
      %v897 = vpop.permute.xlu0 %896
      %898 = vrot.lane.b32.xlu0 %v474, 127
      %v899 = vpop.permute.xlu0 %898
      %904 = vrot.lane.b32.xlu0 %v489, 127
      %v905 = vpop.permute.xlu0 %904
      %906 = vrot.lane.b32.xlu0 %v490, 127
      %v907 = vpop.permute.xlu0 %906
      %910 = vmatprep.subr.mxu0 0.0
      %911 = vmatpush1.msra.mxu0 %v457
      %912 = vmatprep.subr.mxu0 0.0
      %913 = vmatpush1.msra.mxu0 %v458
      %914 = vmatprep.subr.mxu0 0.0
      %915 = vmatpush1.msra.mxu0 %v465
      %916 = vmatprep.subr.mxu0 0.0
      %917 = vmatpush1.msra.mxu0 %v466
      %918 = vmatprep.subr.mxu0 0.0
      %919 = vmatpush1.msra.mxu0 %v889
      %920 = vmatprep.subr.mxu0 0.0
      %921 = vmatpush1.msra.mxu0 %v891
      %922 = vmatprep.subr.mxu0 0.0
      %923 = vmatpush1.msra.mxu0 %v473
      %924 = vmatprep.subr.mxu0 0.0
      %925 = vmatpush1.msra.mxu0 %v474
      %926 = vmatprep.subr.mxu0 0.0
      %927 = vmatpush1.msra.mxu0 %v481
      %928 = vmatprep.subr.mxu0 0.0
      %929 = vmatpush1.msra.mxu0 %v482
      %930 = vmatprep.subr.mxu0 0.0
      %931 = vmatpush1.msra.mxu0 %v897
      %932 = vmatprep.subr.mxu0 0.0
      %933 = vmatpush1.msra.mxu0 %v899
      %934 = vmatprep.subr.mxu0 0.0
      %935 = vmatpush1.msra.mxu0 %v489
      %936 = vmatprep.subr.mxu0 0.0
      %937 = vmatpush1.msra.mxu0 %v490
      %938 = vmatprep.subr.mxu0 0.0
      %939 = vmatpush1.msra.mxu0 %v497
      %940 = vmatprep.subr.mxu0 0.0
      %941 = vmatpush1.msra.mxu0 %v498
      %942 = vmatprep.subr.mxu0 0.0
      %943 = vmatpush1.msra.mxu0 %v905
      %944 = vmatprep.subr.mxu0 0.0
      %945 = vmatpush1.msra.mxu0 %v907
      %946 = vmatprep.subr.mxu0 0.0
      %947 = vmatpush1.msra.mxu0 0.0
      %948 = vmatprep.subr.mxu0 0.0
      %949 = vmatpush1.msra.mxu0 0.0
      %950 = vmatprep.subr.mxu0 0.0
      %951 = vmatpush1.msra.mxu0 0.0
      %952 = vmatprep.subr.mxu0 0.0
      %953 = vmatpush1.msra.mxu0 0.0
      %954 = vmatprep.subr.mxu0 0.0
      %955 = vmatpush1.msra.mxu0 0.0
      %956 = vmatprep.subr.mxu0 0.0
      %957 = vmatpush1.msra.mxu0 0.0
      %958 = vmatprep.subr.mxu0 0.0
      %959 = vmatpush1.msra.mxu0 0.0
      %960 = vmatprep.subr.mxu0 0.0
      %961 = vmatpush1.msra.mxu0 0.0
      %962 = vmatprep.subr.mxu0 0.0
      %963 = vmatpush1.msra.mxu0 0.0
      %964 = vmatprep.subr.mxu0 0.0
      %965 = vmatpush1.msra.mxu0 0.0
      %966 = vmatprep.subr.mxu0 0.0
      %967 = vmatpush1.msra.mxu0 0.0
      %968 = vmatprep.subr.mxu0 0.0
      %969 = vmatpush1.msra.mxu0 0.0
      %970 = vmatprep.subr.mxu0 0.0
      %971 = vmatpush1.msra.mxu0 0.0
      %972 = vmatprep.subr.mxu0 0.0
      %973 = vmatpush1.msra.mxu0 0.0
      %974 = vmatprep.mubr.f32.mxu0 %v545
      %975 = vmatmul.mubr.f32.gmra.mrb[0].mxu0 %v439
      %v976 = vpop.f32.mrb[0].mxu0
      %v977 = vadd.f32 %v526, %v976
      %v978 = vpop.f32.mrb[0].mxu0
      %979 = vmatprep.mubr.f32.mxu0 %v548
      %980 = vmatmul.mubr.f32.gmra.mrb[0].mxu0 %v441
      %v981 = vpop.f32.mrb[0].mxu0
      %v982 = vadd.f32 %v531, %v981
      %v983 = vpop.f32.mrb[0].mxu0
      %984 = vmatprep.mubr.f32.mxu0 %v551
      %985 = vmatmul.mubr.f32.gmra.mrb[0].mxu0 %v443
      %v986 = vpop.f32.mrb[0].mxu0
      %v987 = vadd.f32 %v536, %v986
      %v988 = vpop.f32.mrb[0].mxu0
      %989 = vmatprep.mubr.f32.mxu0 %v554
      %990 = vmatmul.mubr.f32.gmra.mrb[0].mxu0 %v445
      %v991 = vpop.f32.mrb[0].mxu0
      %v992 = vadd.f32 %v541, %v991
      %v993 = vpop.f32.mrb[0].mxu0
      %994 = vdwg.mxu0
      %v995 = vmax.f32 %v977, 0.0
      %v996 = vmax.f32 %v982, 0.0
      %v997 = vmax.f32 %v987, 0.0
      %v998 = vmax.f32 %v992, 0.0
      %s999 = scalar_lea.vmem %s437, 96
      %1000 = vst.msk [vmem:[%s999] sm:$0xff] %vm645, %v995
      %1001 = vst.msk [vmem:[%s999 + $0x8] sm:$0xff] %vm645, %v996
      %1002 = vst.msk [vmem:[%s999 + $0x10] sm:$0xff] %vm645, %v997
      %1003 = vst.msk [vmem:[%s999 + $0x18] sm:$0xff] %vm645, %v998
      %s1004 = smul.u32 4, %s19
      %p1005 = scmp.lt.s32.totalorder %s1004, 7
      %s1006 = scalar_select %p1005, %s1004, 7
      %s1007 = smul.addr %s1006, 4
      %s1008 = smul.addr %s1007, 8
      %s1009 = scalar_lea.vmem %s8, %s1008
      // Predicated region
      $region53: #{a_call__.3} parent=51 // pred_check
        %p1010 = pneg %p235
      $region54: #{a_call__.3} parent=51 // pred_check_branch
        %1012 = sbr.rel (%p1010) target = $region56
      $region55: #{a_call__.3} parent=51 // pred_region
        %s1013 = smul.u32 4, %s19
      $region56: #{a_call__.3} parent=51 // pred_fallthru
        _
    $region52: #{a_call__.3} parent=5 // pred_fallthru
      _
    %p1014 = scmp.le.s32.totalorder 2, %s14
    // Predicated region
    $region57: #{a_call__.3} parent=5 // pred_check
      %p1015 = pneg %p1014
    $region58: #{a_call__.3} parent=5 // pred_check_branch
      %1017 = sbr.rel (%p1015) target = $region60
    $region59: #{a_call__.3} parent=5 // pred_region
      %s1018 = ssub.s32 %s14, 2
      // Predicated region
      $region61: #{a_call__.3} parent=59 // pred_check
        %p1019 = pneg %p241
      $region62: #{a_call__.3} parent=59 // pred_check_branch
        %1021 = sbr.rel (%p1019) target = $region64
      $region63: #{a_call__.3} parent=59 // pred_region
        %s1022 = smul.u32 4, %s20
        %p1023 = scmp.lt.s32.totalorder %s1022, 7
        %s1024 = scalar_select %p1023, %s1022, 7
        %s1025 = smul.addr %s1024, 4
        %s1026 = smul.addr %s1025, 8
        %s1027 = scalar_lea.vmem %s8, %s1026
      $region64: #{a_call__.3} parent=59 // pred_fallthru
        _
    $region60: #{a_call__.3} parent=5 // pred_fallthru
      _
  $region6: #{a_call__.3} parent=0 // loop_footer
    %s18 = sadd.s32 1, %s14
  $region7: #{a_call__.3} parent=0 // loop_footer_branch
    %13 = sbr.rel target = $region3
  $region8: #{a_call__.3} parent=0 // loop_exit
    _

// kernel: a_call__.2
$region0: #{a_call__.2}
  #allocation0 [shape = 'u32[]', space=smem, size = 0x4, offset = 0x4, fixed_abs, tag = 'smem constant byte address 0x4 - core index']
  #allocation1 [shape = 'u32[144,128]{1,0:T(1,128)}', space=vmem, size = 0x12000, scoped, tag = 'internal scratch']
  %s0 = inlined_call_operand.vmem [shape: f32[16,8,9], index: 0, kind: input, shape index: {}]
  %s1 = inlined_call_operand.vmem [shape: f32[16,8,9], index: 1, kind: input, shape index: {}]
  %s2 = inlined_call_operand.vmem [shape: f32[16,8,9], index: 2, kind: input, shape index: {}]
  %s3 = inlined_call_operand.vmem [shape: f32[16,8,9], index: 3, kind: input, shape index: {}]
  %s4 = inlined_call_operand.vmem [shape: f32[16,8,9], index: 4, kind: input, shape index: {}]
  %s5 = inlined_call_operand.vmem [shape: f32[16,8,9], index: 5, kind: input, shape index: {}]
  %s6 = inlined_call_operand.vmem [shape: f32[16,72], index: 6, kind: input, shape index: {}]
  %s7 = inlined_call_operand.vmem [shape: f32[16,1], index: 7, kind: input, shape index: {}]
  %s8 = inlined_call_operand.vmem [shape: f32[16,16,8], index: 8, kind: output, shape index: {}]
  %s9 = sld [smem:[#allocation0]]
  $region65: #{a_call__.2} parent=0
    _
  %s11 = ssub.s32 1, %s9
  %s12 = scalar_select 0, %s11, %s9
  loop: start=0, step=1, limit=4
  $region2: #{a_call__.2} parent=0 // loop_pre_header
    _
  $region3: #{a_call__.2} parent=0 // loop_header
    %s14 = sphi 0, %s18
    %p15 = scmp.ge.s32.totalorder %s14, 4
    %s24 = sphi 0, %s26
    %s27 = sphi 0, %s24
    %s28 = sphi 0, %s27
    %s44 = sphi 0, %s28
    %s50 = sphi 0, %s52
    %s53 = sphi 0, %s50
    %s54 = sphi 0, %s53
    %s70 = sphi 0, %s54
    %s76 = sphi 0, %s78
    %s79 = sphi 0, %s76
    %s80 = sphi 0, %s79
    %s96 = sphi 0, %s80
    %s102 = sphi 0, %s104
    %s105 = sphi 0, %s102
    %s106 = sphi 0, %s105
    %s122 = sphi 0, %s106
    %s128 = sphi 0, %s130
    %s131 = sphi 0, %s128
    %s132 = sphi 0, %s131
    %s148 = sphi 0, %s132
    %s154 = sphi 0, %s156
    %s157 = sphi 0, %s154
    %s158 = sphi 0, %s157
    %s174 = sphi 0, %s158
    %s178 = sphi 0, %s178
    %s180 = sphi 0, %s178
    %s181 = sphi 0, %s180
    %s195 = sphi 0, %s181
    %s199 = sphi 0, %s199
    %s201 = sphi 0, %s199
    %s202 = sphi 0, %s201
    %s216 = sphi 0, %s202
    %s222 = sphi 0, %s224
    %s225 = sphi 0, %s222
    %s226 = sphi 0, %s225
    %s242 = sphi 0, %s226
  $region4: #{a_call__.2} parent=0 // loop_header_branch
    %17 = sbr.rel (%p15) target = $region8
  $region5: #{a_call__.2} parent=0 // loop_body
    %s19 = ssub.s32 %s14, 1
    %s20 = ssub.s32 %s14, 2
    %s21 = sadd.s32 %s14, 1
    %s22 = ssub.s32 %s14, %s21
    %p23 = scmp.eq.s32.totalorder %s22, 0
    %s25 = sadd.s32 %s24, 1
    %s26 = scalar_select %p23, %s24, %s25
    %p29 = pneg %p23
    %p30 = scmp.eq.s32.totalorder %s14, 1
    %p31 = por %p29, %p30
    %p32 = scmp.ne.s32.totalorder %s24, %s27
    %p33 = scmp.eq.s32.totalorder %s14, 0
    %p34 = por %p32, %p33
    %p35 = scmp.ne.s32.totalorder %s24, %s27
    %p36 = scmp.eq.s32.totalorder %s19, 1
    %p37 = por %p35, %p36
    %p38 = scmp.ne.s32.totalorder %s27, %s28
    %p39 = scmp.eq.s32.totalorder %s19, 0
    %p40 = por %p38, %p39
    %p41 = scmp.ne.s32.totalorder %s27, %s28
    %p42 = scmp.eq.s32.totalorder %s20, 1
    %p43 = por %p41, %p42
    %p45 = scmp.ne.s32.totalorder %s28, %s44
    %p46 = scmp.eq.s32.totalorder %s20, 0
    %p47 = por %p45, %p46
    %s48 = ssub.s32 %s14, %s21
    %p49 = scmp.eq.s32.totalorder %s48, 0
    %s51 = sadd.s32 %s50, 1
    %s52 = scalar_select %p49, %s50, %s51
    %p55 = pneg %p49
    %p56 = scmp.eq.s32.totalorder %s14, 1
    %p57 = por %p55, %p56
    %p58 = scmp.ne.s32.totalorder %s50, %s53
    %p59 = scmp.eq.s32.totalorder %s14, 0
    %p60 = por %p58, %p59
    %p61 = scmp.ne.s32.totalorder %s50, %s53
    %p62 = scmp.eq.s32.totalorder %s19, 1
    %p63 = por %p61, %p62
    %p64 = scmp.ne.s32.totalorder %s53, %s54
    %p65 = scmp.eq.s32.totalorder %s19, 0
    %p66 = por %p64, %p65
    %p67 = scmp.ne.s32.totalorder %s53, %s54
    %p68 = scmp.eq.s32.totalorder %s20, 1
    %p69 = por %p67, %p68
    %p71 = scmp.ne.s32.totalorder %s54, %s70
    %p72 = scmp.eq.s32.totalorder %s20, 0
    %p73 = por %p71, %p72
    %s74 = ssub.s32 %s14, %s21
    %p75 = scmp.eq.s32.totalorder %s74, 0
    %s77 = sadd.s32 %s76, 1
    %s78 = scalar_select %p75, %s76, %s77
    %p81 = pneg %p75
    %p82 = scmp.eq.s32.totalorder %s14, 1
    %p83 = por %p81, %p82
    %p84 = scmp.ne.s32.totalorder %s76, %s79
    %p85 = scmp.eq.s32.totalorder %s14, 0
    %p86 = por %p84, %p85
    %p87 = scmp.ne.s32.totalorder %s76, %s79
    %p88 = scmp.eq.s32.totalorder %s19, 1
    %p89 = por %p87, %p88
    %p90 = scmp.ne.s32.totalorder %s79, %s80
    %p91 = scmp.eq.s32.totalorder %s19, 0
    %p92 = por %p90, %p91
    %p93 = scmp.ne.s32.totalorder %s79, %s80
    %p94 = scmp.eq.s32.totalorder %s20, 1
    %p95 = por %p93, %p94
    %p97 = scmp.ne.s32.totalorder %s80, %s96
    %p98 = scmp.eq.s32.totalorder %s20, 0
    %p99 = por %p97, %p98
    %s100 = ssub.s32 %s14, %s21
    %p101 = scmp.eq.s32.totalorder %s100, 0
    %s103 = sadd.s32 %s102, 1
    %s104 = scalar_select %p101, %s102, %s103
    %p107 = pneg %p101
    %p108 = scmp.eq.s32.totalorder %s14, 1
    %p109 = por %p107, %p108
    %p110 = scmp.ne.s32.totalorder %s102, %s105
    %p111 = scmp.eq.s32.totalorder %s14, 0
    %p112 = por %p110, %p111
    %p113 = scmp.ne.s32.totalorder %s102, %s105
    %p114 = scmp.eq.s32.totalorder %s19, 1
    %p115 = por %p113, %p114
    %p116 = scmp.ne.s32.totalorder %s105, %s106
    %p117 = scmp.eq.s32.totalorder %s19, 0
    %p118 = por %p116, %p117
    %p119 = scmp.ne.s32.totalorder %s105, %s106
    %p120 = scmp.eq.s32.totalorder %s20, 1
    %p121 = por %p119, %p120
    %p123 = scmp.ne.s32.totalorder %s106, %s122
    %p124 = scmp.eq.s32.totalorder %s20, 0
    %p125 = por %p123, %p124
    %s126 = ssub.s32 %s14, %s21
    %p127 = scmp.eq.s32.totalorder %s126, 0
    %s129 = sadd.s32 %s128, 1
    %s130 = scalar_select %p127, %s128, %s129
    %p133 = pneg %p127
    %p134 = scmp.eq.s32.totalorder %s14, 1
    %p135 = por %p133, %p134
    %p136 = scmp.ne.s32.totalorder %s128, %s131
    %p137 = scmp.eq.s32.totalorder %s14, 0
    %p138 = por %p136, %p137
    %p139 = scmp.ne.s32.totalorder %s128, %s131
    %p140 = scmp.eq.s32.totalorder %s19, 1
    %p141 = por %p139, %p140
    %p142 = scmp.ne.s32.totalorder %s131, %s132
    %p143 = scmp.eq.s32.totalorder %s19, 0
    %p144 = por %p142, %p143
    %p145 = scmp.ne.s32.totalorder %s131, %s132
    %p146 = scmp.eq.s32.totalorder %s20, 1
    %p147 = por %p145, %p146
    %p149 = scmp.ne.s32.totalorder %s132, %s148
    %p150 = scmp.eq.s32.totalorder %s20, 0
    %p151 = por %p149, %p150
    %s152 = ssub.s32 %s14, %s21
    %p153 = scmp.eq.s32.totalorder %s152, 0
    %s155 = sadd.s32 %s154, 1
    %s156 = scalar_select %p153, %s154, %s155
    %p159 = pneg %p153
    %p160 = scmp.eq.s32.totalorder %s14, 1
    %p161 = por %p159, %p160
    %p162 = scmp.ne.s32.totalorder %s154, %s157
    %p163 = scmp.eq.s32.totalorder %s14, 0
    %p164 = por %p162, %p163
    %p165 = scmp.ne.s32.totalorder %s154, %s157
    %p166 = scmp.eq.s32.totalorder %s19, 1
    %p167 = por %p165, %p166
    %p168 = scmp.ne.s32.totalorder %s157, %s158
    %p169 = scmp.eq.s32.totalorder %s19, 0
    %p170 = por %p168, %p169
    %p171 = scmp.ne.s32.totalorder %s157, %s158
    %p172 = scmp.eq.s32.totalorder %s20, 1
    %p173 = por %p171, %p172
    %p175 = scmp.ne.s32.totalorder %s158, %s174
    %p176 = scmp.eq.s32.totalorder %s20, 0
    %p177 = por %p175, %p176
    %s179 = sadd.s32 %s178, 1
    %p182 = scmp.eq.s32.totalorder %s14, 1
    %p183 = scmp.ne.s32.totalorder %s178, %s180
    %p184 = scmp.eq.s32.totalorder %s14, 0
    %p185 = por %p183, %p184
    %p186 = scmp.ne.s32.totalorder %s178, %s180
    %p187 = scmp.eq.s32.totalorder %s19, 1
    %p188 = por %p186, %p187
    %p189 = scmp.ne.s32.totalorder %s180, %s181
    %p190 = scmp.eq.s32.totalorder %s19, 0
    %p191 = por %p189, %p190
    %p192 = scmp.ne.s32.totalorder %s180, %s181
    %p193 = scmp.eq.s32.totalorder %s20, 1
    %p194 = por %p192, %p193
    %p196 = scmp.ne.s32.totalorder %s181, %s195
    %p197 = scmp.eq.s32.totalorder %s20, 0
    %p198 = por %p196, %p197
    %s200 = sadd.s32 %s199, 1
    %p203 = scmp.eq.s32.totalorder %s14, 1
    %p204 = scmp.ne.s32.totalorder %s199, %s201
    %p205 = scmp.eq.s32.totalorder %s14, 0
    %p206 = por %p204, %p205
    %p207 = scmp.ne.s32.totalorder %s199, %s201
    %p208 = scmp.eq.s32.totalorder %s19, 1
    %p209 = por %p207, %p208
    %p210 = scmp.ne.s32.totalorder %s201, %s202
    %p211 = scmp.eq.s32.totalorder %s19, 0
    %p212 = por %p210, %p211
    %p213 = scmp.ne.s32.totalorder %s201, %s202
    %p214 = scmp.eq.s32.totalorder %s20, 1
    %p215 = por %p213, %p214
    %p217 = scmp.ne.s32.totalorder %s202, %s216
    %p218 = scmp.eq.s32.totalorder %s20, 0
    %p219 = por %p217, %p218
    %s220 = ssub.s32 %s14, %s21
    %p221 = scmp.eq.s32.totalorder %s220, 0
    %s223 = sadd.s32 %s222, 1
    %s224 = scalar_select %p221, %s222, %s223
    %p227 = pneg %p221
    %p228 = scmp.eq.s32.totalorder %s14, 1
    %p229 = por %p227, %p228
    %p230 = scmp.ne.s32.totalorder %s222, %s225
    %p231 = scmp.eq.s32.totalorder %s14, 0
    %p232 = por %p230, %p231
    %p233 = scmp.ne.s32.totalorder %s222, %s225
    %p234 = scmp.eq.s32.totalorder %s19, 1
    %p235 = por %p233, %p234
    %p236 = scmp.ne.s32.totalorder %s225, %s226
    %p237 = scmp.eq.s32.totalorder %s19, 0
    %p238 = por %p236, %p237
    %p239 = scmp.ne.s32.totalorder %s225, %s226
    %p240 = scmp.eq.s32.totalorder %s20, 1
    %p241 = por %p239, %p240
    %p243 = scmp.ne.s32.totalorder %s226, %s242
    %p244 = scmp.eq.s32.totalorder %s20, 0
    %p245 = por %p243, %p244
    %p246 = scmp.le.s32.totalorder 1, %s14
    %p247 = scmp.lt.s32.totalorder %s14, 3
    %p248 = pnand %p246, %p247
    %p249 = pneg %p248
    // Predicated region
    $region9: #{a_call__.2} parent=5 // pred_check
      _
    $region10: #{a_call__.2} parent=5 // pred_check_branch
      %251 = sbr.rel (%p248) target = $region12
    $region11: #{a_call__.2} parent=5 // pred_region
      %s252 = ssub.s32 %s14, 1
      // Predicated region
      $region13: #{a_call__.2} parent=11 // pred_check
        %p253 = pneg %p191
      $region14: #{a_call__.2} parent=11 // pred_check_branch
        %255 = sbr.rel (%p253) target = $region16
      $region15: #{a_call__.2} parent=11 // pred_region
        _
      $region16: #{a_call__.2} parent=11 // pred_fallthru
        _
      // Predicated region
      $region17: #{a_call__.2} parent=11 // pred_check
        %p256 = pneg %p212
      $region18: #{a_call__.2} parent=11 // pred_check_branch
        %258 = sbr.rel (%p256) target = $region20
      $region19: #{a_call__.2} parent=11 // pred_region
        _
      $region20: #{a_call__.2} parent=11 // pred_fallthru
        _
    $region12: #{a_call__.2} parent=5 // pred_fallthru
      _
    %p259 = scmp.lt.s32.totalorder %s14, 2
    // Predicated region
    $region21: #{a_call__.2} parent=5 // pred_check
      %p260 = pneg %p259
    $region22: #{a_call__.2} parent=5 // pred_check_branch
      %262 = sbr.rel (%p260) target = $region24
    $region23: #{a_call__.2} parent=5 // pred_region
      // Predicated region
      $region25: #{a_call__.2} parent=23 // pred_check
        %p263 = pneg %p34
      $region26: #{a_call__.2} parent=23 // pred_check_branch
        %265 = sbr.rel (%p263) target = $region28
      $region27: #{a_call__.2} parent=23 // pred_region
        %s266 = smul.u32 8, %s14
        %p267 = scmp.lt.s32.totalorder %s266, 15
        %s268 = scalar_select %p267, %s266, 15
        %s269 = smul.addr %s268, 8
        %s270 = scalar_lea.vmem %s0, %s269
        %s271 = smul.u32 8, %s14
      $region28: #{a_call__.2} parent=23 // pred_fallthru
        _
      // Predicated region
      $region29: #{a_call__.2} parent=23 // pred_check
        %p272 = pneg %p60
      $region30: #{a_call__.2} parent=23 // pred_check_branch
        %274 = sbr.rel (%p272) target = $region32
      $region31: #{a_call__.2} parent=23 // pred_region
        %s275 = smul.u32 8, %s14
        %p276 = scmp.lt.s32.totalorder %s275, 15
        %s277 = scalar_select %p276, %s275, 15
        %s278 = smul.addr %s277, 8
        %s279 = scalar_lea.vmem %s1, %s278
        %s280 = smul.u32 8, %s14
      $region32: #{a_call__.2} parent=23 // pred_fallthru
        _
      // Predicated region
      $region33: #{a_call__.2} parent=23 // pred_check
        %p281 = pneg %p86
      $region34: #{a_call__.2} parent=23 // pred_check_branch
        %283 = sbr.rel (%p281) target = $region36
      $region35: #{a_call__.2} parent=23 // pred_region
        %s284 = smul.u32 8, %s14
        %p285 = scmp.lt.s32.totalorder %s284, 15
        %s286 = scalar_select %p285, %s284, 15
        %s287 = smul.addr %s286, 8
        %s288 = scalar_lea.vmem %s2, %s287
        %s289 = smul.u32 8, %s14
      $region36: #{a_call__.2} parent=23 // pred_fallthru
        _
      // Predicated region
      $region37: #{a_call__.2} parent=23 // pred_check
        %p290 = pneg %p112
      $region38: #{a_call__.2} parent=23 // pred_check_branch
        %292 = sbr.rel (%p290) target = $region40
      $region39: #{a_call__.2} parent=23 // pred_region
        %s293 = smul.u32 8, %s14
        %p294 = scmp.lt.s32.totalorder %s293, 15
        %s295 = scalar_select %p294, %s293, 15
        %s296 = smul.addr %s295, 8
        %s297 = scalar_lea.vmem %s3, %s296
        %s298 = smul.u32 8, %s14
      $region40: #{a_call__.2} parent=23 // pred_fallthru
        _
      // Predicated region
      $region41: #{a_call__.2} parent=23 // pred_check
        %p299 = pneg %p138
      $region42: #{a_call__.2} parent=23 // pred_check_branch
        %301 = sbr.rel (%p299) target = $region44
      $region43: #{a_call__.2} parent=23 // pred_region
        %s302 = smul.u32 8, %s14
        %p303 = scmp.lt.s32.totalorder %s302, 15
        %s304 = scalar_select %p303, %s302, 15
        %s305 = smul.addr %s304, 8
        %s306 = scalar_lea.vmem %s4, %s305
        %s307 = smul.u32 8, %s14
      $region44: #{a_call__.2} parent=23 // pred_fallthru
        _
      // Predicated region
      $region45: #{a_call__.2} parent=23 // pred_check
        %p308 = pneg %p164
      $region46: #{a_call__.2} parent=23 // pred_check_branch
        %310 = sbr.rel (%p308) target = $region48
      $region47: #{a_call__.2} parent=23 // pred_region
        %s311 = smul.u32 8, %s14
        %p312 = scmp.lt.s32.totalorder %s311, 15
        %s313 = scalar_select %p312, %s311, 15
        %s314 = smul.addr %s313, 8
        %s315 = scalar_lea.vmem %s5, %s314
        %s316 = smul.u32 8, %s14
      $region48: #{a_call__.2} parent=23 // pred_fallthru
        _
    $region24: #{a_call__.2} parent=5 // pred_fallthru
      _
    %p317 = scmp.le.s32.totalorder 1, %s14
    %p318 = scmp.lt.s32.totalorder %s14, 3
    %p319 = pnand %p317, %p318
    %p320 = pneg %p319
    // Predicated region
    $region49: #{a_call__.2} parent=5 // pred_check
      _
    $region50: #{a_call__.2} parent=5 // pred_check_branch
      %322 = sbr.rel (%p319) target = $region52
    $region51: #{a_call__.2} parent=5 // pred_region
      %s323 = ssub.s32 %s14, 1
      %s324 = smul.u32 8, %s19
      %p325 = scmp.lt.s32.totalorder %s324, 15
      %s326 = scalar_select %p325, %s324, 15
      %s327 = smul.addr %s326, 8
      %s328 = scalar_lea.vmem %s0, %s327
      %p329 = pneg %p40
      %p330 = pneg %p37
      %s331 = smul.u32 8, %s19
      %p332 = scmp.lt.s32.totalorder %s331, 15
      %s333 = scalar_select %p332, %s331, 15
      %s334 = smul.addr %s333, 8
      %s335 = scalar_lea.vmem %s1, %s334
      %p336 = pneg %p66
      %p337 = pneg %p63
      %s338 = smul.u32 8, %s19
      %p339 = scmp.lt.s32.totalorder %s338, 15
      %s340 = scalar_select %p339, %s338, 15
      %s341 = smul.addr %s340, 8
      %s342 = scalar_lea.vmem %s2, %s341
      %p343 = pneg %p92
      %p344 = pneg %p89
      %s345 = smul.u32 8, %s19
      %p346 = scmp.lt.s32.totalorder %s345, 15
      %s347 = scalar_select %p346, %s345, 15
      %s348 = smul.addr %s347, 8
      %s349 = scalar_lea.vmem %s3, %s348
      %p350 = pneg %p118
      %p351 = pneg %p115
      %s352 = smul.u32 8, %s19
      %p353 = scmp.lt.s32.totalorder %s352, 15
      %s354 = scalar_select %p353, %s352, 15
      %s355 = smul.addr %s354, 8
      %s356 = scalar_lea.vmem %s4, %s355
      %p357 = pneg %p144
      %p358 = pneg %p141
      %s359 = smul.u32 8, %s19
      %p360 = scmp.lt.s32.totalorder %s359, 15
      %s361 = scalar_select %p360, %s359, 15
      %s362 = smul.addr %s361, 8
      %s363 = scalar_lea.vmem %s5, %s362
      %p364 = pneg %p170
      %p365 = pneg %p167
      %p366 = pneg %p191
      %p367 = pneg %p188
      %p368 = pneg %p212
      %p369 = pneg %p209
      %p370 = pneg %p238
      %p371 = pneg %p235
      %s372 = smul.u32 8, %s19
      %p373 = scmp.lt.s32.totalorder %s372, 15
      %s374 = scalar_select %p373, %s372, 15
      %s375 = smul.addr %s374, 2
      %s376 = smul.addr %s375, 8
      %s377 = scalar_lea.vmem %s8, %s376
      %s378 = smul.u32 8, %s19
      %p379 = scmp.lt.s32.totalorder %s378, 15
      %s380 = scalar_select %p379, %s378, 15
      %s381 = smul.addr %s380, 8
      %s382 = scalar_lea.vmem %s0, %s381
      %s383 = smul.u32 8, %s19
      %s384 = smul.u32 8, %s19
      %p385 = scmp.lt.s32.totalorder %s384, 15
      %s386 = scalar_select %p385, %s384, 15
      %s387 = smul.addr %s386, 8
      %s388 = scalar_lea.vmem %s1, %s387
      %s389 = smul.u32 8, %s19
      %s390 = smul.u32 8, %s19
      %p391 = scmp.lt.s32.totalorder %s390, 15
      %s392 = scalar_select %p391, %s390, 15
      %s393 = smul.addr %s392, 8
      %s394 = scalar_lea.vmem %s2, %s393
      %s395 = smul.u32 8, %s19
      %s396 = smul.u32 8, %s19
      %p397 = scmp.lt.s32.totalorder %s396, 15
      %s398 = scalar_select %p397, %s396, 15
      %s399 = smul.addr %s398, 8
      %s400 = scalar_lea.vmem %s3, %s399
      %s401 = smul.u32 8, %s19
      %s402 = smul.u32 8, %s19
      %p403 = scmp.lt.s32.totalorder %s402, 15
      %s404 = scalar_select %p403, %s402, 15
      %s405 = smul.addr %s404, 8
      %s406 = scalar_lea.vmem %s4, %s405
      %s407 = smul.u32 8, %s19
      %s408 = smul.u32 8, %s19
      %p409 = scmp.lt.s32.totalorder %s408, 15
      %s410 = scalar_select %p409, %s408, 15
      %s411 = smul.addr %s410, 8
      %s412 = scalar_lea.vmem %s5, %s411
      %s413 = smul.u32 8, %s19
      %s414 = smul.u32 8, %s19
      %p415 = scmp.lt.s32.totalorder %s414, 15
      %s416 = scalar_select %p415, %s414, 15
      %s417 = smul.addr %s416, 2
      %s418 = smul.addr %s417, 8
      %s419 = scalar_lea.vmem %s8, %s418
      %s420 = smul.u32 8, %s19
      %v421 = vld [vmem:[%s6] sm:$0xff]
      %v422 = vld [vmem:[%s6 + $0x8] sm:$0xff]
      %v423 = vld [vmem:[%s7] sm:$0xff]
      %v424 = vld [vmem:[%s7 + $0x8] sm:$0xff]
      %v425 = vld [vmem:[%s382] sm:$0xff]
      %v426 = vld [vmem:[%s382 + $0x8] sm:$0xff]
      %v427 = vld [vmem:[%s382 + $0x10] sm:$0xff]
      %v428 = vld [vmem:[%s382 + $0x18] sm:$0xff]
      %v429 = vld [vmem:[%s382 + $0x20] sm:$0xff]
      %v430 = vld [vmem:[%s382 + $0x28] sm:$0xff]
      %v431 = vld [vmem:[%s382 + $0x30] sm:$0xff]
      %v432 = vld [vmem:[%s382 + $0x38] sm:$0xff]
      %v433 = vld [vmem:[%s388] sm:$0xff]
      %v434 = vld [vmem:[%s388 + $0x8] sm:$0xff]
      %v435 = vld [vmem:[%s388 + $0x10] sm:$0xff]
      %v436 = vld [vmem:[%s388 + $0x18] sm:$0xff]
      %v437 = vld [vmem:[%s388 + $0x20] sm:$0xff]
      %v438 = vld [vmem:[%s388 + $0x28] sm:$0xff]
      %v439 = vld [vmem:[%s388 + $0x30] sm:$0xff]
      %v440 = vld [vmem:[%s388 + $0x38] sm:$0xff]
      %v441 = vld [vmem:[%s394] sm:$0xff]
      %v442 = vld [vmem:[%s394 + $0x8] sm:$0xff]
      %v443 = vld [vmem:[%s394 + $0x10] sm:$0xff]
      %v444 = vld [vmem:[%s394 + $0x18] sm:$0xff]
      %v445 = vld [vmem:[%s394 + $0x20] sm:$0xff]
      %v446 = vld [vmem:[%s394 + $0x28] sm:$0xff]
      %v447 = vld [vmem:[%s394 + $0x30] sm:$0xff]
      %v448 = vld [vmem:[%s394 + $0x38] sm:$0xff]
      %v449 = vld [vmem:[%s400] sm:$0xff]
      %v450 = vld [vmem:[%s400 + $0x8] sm:$0xff]
      %v451 = vld [vmem:[%s400 + $0x10] sm:$0xff]
      %v452 = vld [vmem:[%s400 + $0x18] sm:$0xff]
      %v453 = vld [vmem:[%s400 + $0x20] sm:$0xff]
      %v454 = vld [vmem:[%s400 + $0x28] sm:$0xff]
      %v455 = vld [vmem:[%s400 + $0x30] sm:$0xff]
      %v456 = vld [vmem:[%s400 + $0x38] sm:$0xff]
      %v457 = vld [vmem:[%s406] sm:$0xff]
      %v458 = vld [vmem:[%s406 + $0x8] sm:$0xff]
      %v459 = vld [vmem:[%s406 + $0x10] sm:$0xff]
      %v460 = vld [vmem:[%s406 + $0x18] sm:$0xff]
      %v461 = vld [vmem:[%s406 + $0x20] sm:$0xff]
      %v462 = vld [vmem:[%s406 + $0x28] sm:$0xff]
      %v463 = vld [vmem:[%s406 + $0x30] sm:$0xff]
      %v464 = vld [vmem:[%s406 + $0x38] sm:$0xff]
      %v465 = vld [vmem:[%s412] sm:$0xff]
      %v466 = vld [vmem:[%s412 + $0x8] sm:$0xff]
      %v467 = vld [vmem:[%s412 + $0x10] sm:$0xff]
      %v468 = vld [vmem:[%s412 + $0x18] sm:$0xff]
      %v469 = vld [vmem:[%s412 + $0x20] sm:$0xff]
      %v470 = vld [vmem:[%s412 + $0x28] sm:$0xff]
      %v471 = vld [vmem:[%s412 + $0x30] sm:$0xff]
      %v472 = vld [vmem:[%s412 + $0x38] sm:$0xff]
      %474 = vrot.lane.b32.xlu0 %v425, 127
      %v475 = vpop.permute.xlu0 %474
      %478 = vrot.lane.b32.xlu0 %v441, 127
      %v479 = vpop.permute.xlu0 %478
      %482 = vrot.lane.b32.xlu0 %v457, 127
      %v483 = vpop.permute.xlu0 %482
      %486 = vset.pattern.permute.xlu0 0
      %487 = vperm.xlu0 %486, %v423
      %v488 = vpop.permute.xlu0 %487
      %491 = vset.pattern.permute.xlu0 0
      %492 = vperm.xlu0 %491, %v424
      %v493 = vpop.permute.xlu0 %492
      %vm495 = vcmask 588800
      %v497 = vsel %vm495, %v421, 0
      %v500 = vsel %vm495, %v422, 0
      %502 = vmatprep.subr.mxu0 0.0
      %503 = vmatpush1.msra.mxu0 %v425
      %504 = vmatprep.subr.mxu0 0.0
      %505 = vmatpush1.msra.mxu0 %v433
      %506 = vmatprep.subr.mxu0 0.0
      %507 = vmatpush1.msra.mxu0 %v475
      %508 = vmatprep.subr.mxu0 0.0
      %509 = vmatpush1.msra.mxu0 %v441
      %510 = vmatprep.subr.mxu0 0.0
      %511 = vmatpush1.msra.mxu0 %v449
      %512 = vmatprep.subr.mxu0 0.0
      %513 = vmatpush1.msra.mxu0 %v479
      %514 = vmatprep.subr.mxu0 0.0
      %515 = vmatpush1.msra.mxu0 %v457
      %516 = vmatprep.subr.mxu0 0.0
      %517 = vmatpush1.msra.mxu0 %v465
      %518 = vmatprep.subr.mxu0 0.0
      %519 = vmatpush1.msra.mxu0 %v483
      %520 = vmatprep.subr.mxu0 0.0
      %521 = vmatpush1.msra.mxu0 0.0
      %522 = vmatprep.subr.mxu0 0.0
      %523 = vmatpush1.msra.mxu0 0.0
      %524 = vmatprep.subr.mxu0 0.0
      %525 = vmatpush1.msra.mxu0 0.0
      %526 = vmatprep.subr.mxu0 0.0
      %527 = vmatpush1.msra.mxu0 0.0
      %528 = vmatprep.subr.mxu0 0.0
      %529 = vmatpush1.msra.mxu0 0.0
      %530 = vmatprep.subr.mxu0 0.0
      %531 = vmatpush1.msra.mxu0 0.0
      %532 = vmatprep.subr.mxu0 0.0
      %533 = vmatpush1.msra.mxu0 0.0
      %534 = vmatprep.subr.mxu0 0.0
      %535 = vmatpush1.msra.mxu0 0.0
      %536 = vmatprep.subr.mxu0 0.0
      %537 = vmatpush1.msra.mxu0 0.0
      %538 = vmatprep.subr.mxu0 0.0
      %539 = vmatpush1.msra.mxu0 0.0
      %540 = vmatprep.subr.mxu0 0.0
      %541 = vmatpush1.msra.mxu0 0.0
      %542 = vmatprep.subr.mxu0 0.0
      %543 = vmatpush1.msra.mxu0 0.0
      %544 = vmatprep.subr.mxu0 0.0
      %545 = vmatpush1.msra.mxu0 0.0
      %546 = vmatprep.subr.mxu0 0.0
      %547 = vmatpush1.msra.mxu0 0.0
      %548 = vmatprep.subr.mxu0 0.0
      %549 = vmatpush1.msra.mxu0 0.0
      %550 = vmatprep.subr.mxu0 0.0
      %551 = vmatpush1.msra.mxu0 0.0
      %552 = vmatprep.subr.mxu0 0.0
      %553 = vmatpush1.msra.mxu0 0.0
      %554 = vmatprep.subr.mxu0 0.0
      %555 = vmatpush1.msra.mxu0 0.0
      %556 = vmatprep.subr.mxu0 0.0
      %557 = vmatpush1.msra.mxu0 0.0
      %558 = vmatprep.subr.mxu0 0.0
      %559 = vmatpush1.msra.mxu0 0.0
      %560 = vmatprep.subr.mxu0 0.0
      %561 = vmatpush1.msra.mxu0 0.0
      %562 = vmatprep.subr.mxu0 0.0
      %563 = vmatpush1.msra.mxu0 0.0
      %564 = vmatprep.subr.mxu0 0.0
      %565 = vmatpush1.msra.mxu0 0.0
      %566 = vmatprep.mubr.f32.mxu0 0.0
      %567 = vmatmul.mubr.f32.gmra.mrb[0].mxu0 %v497
      %v568 = vpop.f32.mrb[0].mxu0
      %v569 = vadd.f32 %v488, %v568
      %v570 = vpop.f32.mrb[0].mxu0
      %571 = vmatprep.mubr.f32.mxu0 0.0
      %572 = vmatmul.mubr.f32.gmra.mrb[0].mxu0 %v500
      %v573 = vpop.f32.mrb[0].mxu0
      %v574 = vadd.f32 %v493, %v573
      %v575 = vpop.f32.mrb[0].mxu0
      %576 = vdwg.mxu0
      %v577 = vmax.f32 %v569, 0.0
      %v578 = vmax.f32 %v574, 0.0
      %vm579 = vcmask 64512
      %580 = vst.msk [vmem:[%s419] sm:$0xff] %vm579, %v577
      %581 = vst.msk [vmem:[%s419 + $0x8] sm:$0xff] %vm579, %v578
      %583 = vrot.lane.b32.xlu0 %v426, 127
      %v584 = vpop.permute.xlu0 %583
      %587 = vrot.lane.b32.xlu0 %v442, 127
      %v588 = vpop.permute.xlu0 %587
      %591 = vrot.lane.b32.xlu0 %v458, 127
      %v592 = vpop.permute.xlu0 %591
      %594 = vmatprep.subr.mxu0 0.0
      %595 = vmatpush1.msra.mxu0 %v426
      %596 = vmatprep.subr.mxu0 0.0
      %597 = vmatpush1.msra.mxu0 %v434
      %598 = vmatprep.subr.mxu0 0.0
      %599 = vmatpush1.msra.mxu0 %v584
      %600 = vmatprep.subr.mxu0 0.0
      %601 = vmatpush1.msra.mxu0 %v442
      %602 = vmatprep.subr.mxu0 0.0
      %603 = vmatpush1.msra.mxu0 %v450
      %604 = vmatprep.subr.mxu0 0.0
      %605 = vmatpush1.msra.mxu0 %v588
      %606 = vmatprep.subr.mxu0 0.0
      %607 = vmatpush1.msra.mxu0 %v458
      %608 = vmatprep.subr.mxu0 0.0
      %609 = vmatpush1.msra.mxu0 %v466
      %610 = vmatprep.subr.mxu0 0.0
      %611 = vmatpush1.msra.mxu0 %v592
      %612 = vmatprep.subr.mxu0 0.0
      %613 = vmatpush1.msra.mxu0 0.0
      %614 = vmatprep.subr.mxu0 0.0
      %615 = vmatpush1.msra.mxu0 0.0
      %616 = vmatprep.subr.mxu0 0.0
      %617 = vmatpush1.msra.mxu0 0.0
      %618 = vmatprep.subr.mxu0 0.0
      %619 = vmatpush1.msra.mxu0 0.0
      %620 = vmatprep.subr.mxu0 0.0
      %621 = vmatpush1.msra.mxu0 0.0
      %622 = vmatprep.subr.mxu0 0.0
      %623 = vmatpush1.msra.mxu0 0.0
      %624 = vmatprep.subr.mxu0 0.0
      %625 = vmatpush1.msra.mxu0 0.0
      %626 = vmatprep.subr.mxu0 0.0
      %627 = vmatpush1.msra.mxu0 0.0
      %628 = vmatprep.subr.mxu0 0.0
      %629 = vmatpush1.msra.mxu0 0.0
      %630 = vmatprep.subr.mxu0 0.0
      %631 = vmatpush1.msra.mxu0 0.0
      %632 = vmatprep.subr.mxu0 0.0
      %633 = vmatpush1.msra.mxu0 0.0
      %634 = vmatprep.subr.mxu0 0.0
      %635 = vmatpush1.msra.mxu0 0.0
      %636 = vmatprep.subr.mxu0 0.0
      %637 = vmatpush1.msra.mxu0 0.0
      %638 = vmatprep.subr.mxu0 0.0
      %639 = vmatpush1.msra.mxu0 0.0
      %640 = vmatprep.subr.mxu0 0.0
      %641 = vmatpush1.msra.mxu0 0.0
      %642 = vmatprep.subr.mxu0 0.0
      %643 = vmatpush1.msra.mxu0 0.0
      %644 = vmatprep.subr.mxu0 0.0
      %645 = vmatpush1.msra.mxu0 0.0
      %646 = vmatprep.subr.mxu0 0.0
      %647 = vmatpush1.msra.mxu0 0.0
      %648 = vmatprep.subr.mxu0 0.0
      %649 = vmatpush1.msra.mxu0 0.0
      %650 = vmatprep.subr.mxu0 0.0
      %651 = vmatpush1.msra.mxu0 0.0
      %652 = vmatprep.subr.mxu0 0.0
      %653 = vmatpush1.msra.mxu0 0.0
      %654 = vmatprep.subr.mxu0 0.0
      %655 = vmatpush1.msra.mxu0 0.0
      %656 = vmatprep.subr.mxu0 0.0
      %657 = vmatpush1.msra.mxu0 0.0
      %658 = vmatprep.mubr.f32.mxu0 0.0
      %659 = vmatmul.mubr.f32.gmra.mrb[0].mxu0 %v497
      %v660 = vpop.f32.mrb[0].mxu0
      %v661 = vadd.f32 %v488, %v660
      %v662 = vpop.f32.mrb[0].mxu0
      %663 = vmatprep.mubr.f32.mxu0 0.0
      %664 = vmatmul.mubr.f32.gmra.mrb[0].mxu0 %v500
      %v665 = vpop.f32.mrb[0].mxu0
      %v666 = vadd.f32 %v493, %v665
      %v667 = vpop.f32.mrb[0].mxu0
      %668 = vdwg.mxu0
      %v669 = vmax.f32 %v661, 0.0
      %v670 = vmax.f32 %v666, 0.0
      %s671 = scalar_lea.vmem %s419, 16
      %672 = vst.msk [vmem:[%s671] sm:$0xff] %vm579, %v669
      %673 = vst.msk [vmem:[%s671 + $0x8] sm:$0xff] %vm579, %v670
      %675 = vrot.lane.b32.xlu0 %v427, 127
      %v676 = vpop.permute.xlu0 %675
      %679 = vrot.lane.b32.xlu0 %v443, 127
      %v680 = vpop.permute.xlu0 %679
      %683 = vrot.lane.b32.xlu0 %v459, 127
      %v684 = vpop.permute.xlu0 %683
      %686 = vmatprep.subr.mxu0 0.0
      %687 = vmatpush1.msra.mxu0 %v427
      %688 = vmatprep.subr.mxu0 0.0
      %689 = vmatpush1.msra.mxu0 %v435
      %690 = vmatprep.subr.mxu0 0.0
      %691 = vmatpush1.msra.mxu0 %v676
      %692 = vmatprep.subr.mxu0 0.0
      %693 = vmatpush1.msra.mxu0 %v443
      %694 = vmatprep.subr.mxu0 0.0
      %695 = vmatpush1.msra.mxu0 %v451
      %696 = vmatprep.subr.mxu0 0.0
      %697 = vmatpush1.msra.mxu0 %v680
      %698 = vmatprep.subr.mxu0 0.0
      %699 = vmatpush1.msra.mxu0 %v459
      %700 = vmatprep.subr.mxu0 0.0
      %701 = vmatpush1.msra.mxu0 %v467
      %702 = vmatprep.subr.mxu0 0.0
      %703 = vmatpush1.msra.mxu0 %v684
      %704 = vmatprep.subr.mxu0 0.0
      %705 = vmatpush1.msra.mxu0 0.0
      %706 = vmatprep.subr.mxu0 0.0
      %707 = vmatpush1.msra.mxu0 0.0
      %708 = vmatprep.subr.mxu0 0.0
      %709 = vmatpush1.msra.mxu0 0.0
      %710 = vmatprep.subr.mxu0 0.0
      %711 = vmatpush1.msra.mxu0 0.0
      %712 = vmatprep.subr.mxu0 0.0
      %713 = vmatpush1.msra.mxu0 0.0
      %714 = vmatprep.subr.mxu0 0.0
      %715 = vmatpush1.msra.mxu0 0.0
      %716 = vmatprep.subr.mxu0 0.0
      %717 = vmatpush1.msra.mxu0 0.0
      %718 = vmatprep.subr.mxu0 0.0
      %719 = vmatpush1.msra.mxu0 0.0
      %720 = vmatprep.subr.mxu0 0.0
      %721 = vmatpush1.msra.mxu0 0.0
      %722 = vmatprep.subr.mxu0 0.0
      %723 = vmatpush1.msra.mxu0 0.0
      %724 = vmatprep.subr.mxu0 0.0
      %725 = vmatpush1.msra.mxu0 0.0
      %726 = vmatprep.subr.mxu0 0.0
      %727 = vmatpush1.msra.mxu0 0.0
      %728 = vmatprep.subr.mxu0 0.0
      %729 = vmatpush1.msra.mxu0 0.0
      %730 = vmatprep.subr.mxu0 0.0
      %731 = vmatpush1.msra.mxu0 0.0
      %732 = vmatprep.subr.mxu0 0.0
      %733 = vmatpush1.msra.mxu0 0.0
      %734 = vmatprep.subr.mxu0 0.0
      %735 = vmatpush1.msra.mxu0 0.0
      %736 = vmatprep.subr.mxu0 0.0
      %737 = vmatpush1.msra.mxu0 0.0
      %738 = vmatprep.subr.mxu0 0.0
      %739 = vmatpush1.msra.mxu0 0.0
      %740 = vmatprep.subr.mxu0 0.0
      %741 = vmatpush1.msra.mxu0 0.0
      %742 = vmatprep.subr.mxu0 0.0
      %743 = vmatpush1.msra.mxu0 0.0
      %744 = vmatprep.subr.mxu0 0.0
      %745 = vmatpush1.msra.mxu0 0.0
      %746 = vmatprep.subr.mxu0 0.0
      %747 = vmatpush1.msra.mxu0 0.0
      %748 = vmatprep.subr.mxu0 0.0
      %749 = vmatpush1.msra.mxu0 0.0
      %750 = vmatprep.mubr.f32.mxu0 0.0
      %751 = vmatmul.mubr.f32.gmra.mrb[0].mxu0 %v497
      %v752 = vpop.f32.mrb[0].mxu0
      %v753 = vadd.f32 %v488, %v752
      %v754 = vpop.f32.mrb[0].mxu0
      %755 = vmatprep.mubr.f32.mxu0 0.0
      %756 = vmatmul.mubr.f32.gmra.mrb[0].mxu0 %v500
      %v757 = vpop.f32.mrb[0].mxu0
      %v758 = vadd.f32 %v493, %v757
      %v759 = vpop.f32.mrb[0].mxu0
      %760 = vdwg.mxu0
      %v761 = vmax.f32 %v753, 0.0
      %v762 = vmax.f32 %v758, 0.0
      %s763 = scalar_lea.vmem %s419, 32
      %764 = vst.msk [vmem:[%s763] sm:$0xff] %vm579, %v761
      %765 = vst.msk [vmem:[%s763 + $0x8] sm:$0xff] %vm579, %v762
      %767 = vrot.lane.b32.xlu0 %v428, 127
      %v768 = vpop.permute.xlu0 %767
      %771 = vrot.lane.b32.xlu0 %v444, 127
      %v772 = vpop.permute.xlu0 %771
      %775 = vrot.lane.b32.xlu0 %v460, 127
      %v776 = vpop.permute.xlu0 %775
      %778 = vmatprep.subr.mxu0 0.0
      %779 = vmatpush1.msra.mxu0 %v428
      %780 = vmatprep.subr.mxu0 0.0
      %781 = vmatpush1.msra.mxu0 %v436
      %782 = vmatprep.subr.mxu0 0.0
      %783 = vmatpush1.msra.mxu0 %v768
      %784 = vmatprep.subr.mxu0 0.0
      %785 = vmatpush1.msra.mxu0 %v444
      %786 = vmatprep.subr.mxu0 0.0
      %787 = vmatpush1.msra.mxu0 %v452
      %788 = vmatprep.subr.mxu0 0.0
      %789 = vmatpush1.msra.mxu0 %v772
      %790 = vmatprep.subr.mxu0 0.0
      %791 = vmatpush1.msra.mxu0 %v460
      %792 = vmatprep.subr.mxu0 0.0
      %793 = vmatpush1.msra.mxu0 %v468
      %794 = vmatprep.subr.mxu0 0.0
      %795 = vmatpush1.msra.mxu0 %v776
      %796 = vmatprep.subr.mxu0 0.0
      %797 = vmatpush1.msra.mxu0 0.0
      %798 = vmatprep.subr.mxu0 0.0
      %799 = vmatpush1.msra.mxu0 0.0
      %800 = vmatprep.subr.mxu0 0.0
      %801 = vmatpush1.msra.mxu0 0.0
      %802 = vmatprep.subr.mxu0 0.0
      %803 = vmatpush1.msra.mxu0 0.0
      %804 = vmatprep.subr.mxu0 0.0
      %805 = vmatpush1.msra.mxu0 0.0
      %806 = vmatprep.subr.mxu0 0.0
      %807 = vmatpush1.msra.mxu0 0.0
      %808 = vmatprep.subr.mxu0 0.0
      %809 = vmatpush1.msra.mxu0 0.0
      %810 = vmatprep.subr.mxu0 0.0
      %811 = vmatpush1.msra.mxu0 0.0
      %812 = vmatprep.subr.mxu0 0.0
      %813 = vmatpush1.msra.mxu0 0.0
      %814 = vmatprep.subr.mxu0 0.0
      %815 = vmatpush1.msra.mxu0 0.0
      %816 = vmatprep.subr.mxu0 0.0
      %817 = vmatpush1.msra.mxu0 0.0
      %818 = vmatprep.subr.mxu0 0.0
      %819 = vmatpush1.msra.mxu0 0.0
      %820 = vmatprep.subr.mxu0 0.0
      %821 = vmatpush1.msra.mxu0 0.0
      %822 = vmatprep.subr.mxu0 0.0
      %823 = vmatpush1.msra.mxu0 0.0
      %824 = vmatprep.subr.mxu0 0.0
      %825 = vmatpush1.msra.mxu0 0.0
      %826 = vmatprep.subr.mxu0 0.0
      %827 = vmatpush1.msra.mxu0 0.0
      %828 = vmatprep.subr.mxu0 0.0
      %829 = vmatpush1.msra.mxu0 0.0
      %830 = vmatprep.subr.mxu0 0.0
      %831 = vmatpush1.msra.mxu0 0.0
      %832 = vmatprep.subr.mxu0 0.0
      %833 = vmatpush1.msra.mxu0 0.0
      %834 = vmatprep.subr.mxu0 0.0
      %835 = vmatpush1.msra.mxu0 0.0
      %836 = vmatprep.subr.mxu0 0.0
      %837 = vmatpush1.msra.mxu0 0.0
      %838 = vmatprep.subr.mxu0 0.0
      %839 = vmatpush1.msra.mxu0 0.0
      %840 = vmatprep.subr.mxu0 0.0
      %841 = vmatpush1.msra.mxu0 0.0
      %842 = vmatprep.mubr.f32.mxu0 0.0
      %843 = vmatmul.mubr.f32.gmra.mrb[0].mxu0 %v497
      %v844 = vpop.f32.mrb[0].mxu0
      %v845 = vadd.f32 %v488, %v844
      %v846 = vpop.f32.mrb[0].mxu0
      %847 = vmatprep.mubr.f32.mxu0 0.0
      %848 = vmatmul.mubr.f32.gmra.mrb[0].mxu0 %v500
      %v849 = vpop.f32.mrb[0].mxu0
      %v850 = vadd.f32 %v493, %v849
      %v851 = vpop.f32.mrb[0].mxu0
      %852 = vdwg.mxu0
      %v853 = vmax.f32 %v845, 0.0
      %v854 = vmax.f32 %v850, 0.0
      %s855 = scalar_lea.vmem %s419, 48
      %856 = vst.msk [vmem:[%s855] sm:$0xff] %vm579, %v853
      %857 = vst.msk [vmem:[%s855 + $0x8] sm:$0xff] %vm579, %v854
      %859 = vrot.lane.b32.xlu0 %v429, 127
      %v860 = vpop.permute.xlu0 %859
      %863 = vrot.lane.b32.xlu0 %v445, 127
      %v864 = vpop.permute.xlu0 %863
      %867 = vrot.lane.b32.xlu0 %v461, 127
      %v868 = vpop.permute.xlu0 %867
      %870 = vmatprep.subr.mxu0 0.0
      %871 = vmatpush1.msra.mxu0 %v429
      %872 = vmatprep.subr.mxu0 0.0
      %873 = vmatpush1.msra.mxu0 %v437
      %874 = vmatprep.subr.mxu0 0.0
      %875 = vmatpush1.msra.mxu0 %v860
      %876 = vmatprep.subr.mxu0 0.0
      %877 = vmatpush1.msra.mxu0 %v445
      %878 = vmatprep.subr.mxu0 0.0
      %879 = vmatpush1.msra.mxu0 %v453
      %880 = vmatprep.subr.mxu0 0.0
      %881 = vmatpush1.msra.mxu0 %v864
      %882 = vmatprep.subr.mxu0 0.0
      %883 = vmatpush1.msra.mxu0 %v461
      %884 = vmatprep.subr.mxu0 0.0
      %885 = vmatpush1.msra.mxu0 %v469
      %886 = vmatprep.subr.mxu0 0.0
      %887 = vmatpush1.msra.mxu0 %v868
      %888 = vmatprep.subr.mxu0 0.0
      %889 = vmatpush1.msra.mxu0 0.0
      %890 = vmatprep.subr.mxu0 0.0
      %891 = vmatpush1.msra.mxu0 0.0
      %892 = vmatprep.subr.mxu0 0.0
      %893 = vmatpush1.msra.mxu0 0.0
      %894 = vmatprep.subr.mxu0 0.0
      %895 = vmatpush1.msra.mxu0 0.0
      %896 = vmatprep.subr.mxu0 0.0
      %897 = vmatpush1.msra.mxu0 0.0
      %898 = vmatprep.subr.mxu0 0.0
      %899 = vmatpush1.msra.mxu0 0.0
      %900 = vmatprep.subr.mxu0 0.0
      %901 = vmatpush1.msra.mxu0 0.0
      %902 = vmatprep.subr.mxu0 0.0
      %903 = vmatpush1.msra.mxu0 0.0
      %904 = vmatprep.subr.mxu0 0.0
      %905 = vmatpush1.msra.mxu0 0.0
      %906 = vmatprep.subr.mxu0 0.0
      %907 = vmatpush1.msra.mxu0 0.0
      %908 = vmatprep.subr.mxu0 0.0
      %909 = vmatpush1.msra.mxu0 0.0
      %910 = vmatprep.subr.mxu0 0.0
      %911 = vmatpush1.msra.mxu0 0.0
      %912 = vmatprep.subr.mxu0 0.0
      %913 = vmatpush1.msra.mxu0 0.0
      %914 = vmatprep.subr.mxu0 0.0
      %915 = vmatpush1.msra.mxu0 0.0
      %916 = vmatprep.subr.mxu0 0.0
      %917 = vmatpush1.msra.mxu0 0.0
      %918 = vmatprep.subr.mxu0 0.0
      %919 = vmatpush1.msra.mxu0 0.0
      %920 = vmatprep.subr.mxu0 0.0
      %921 = vmatpush1.msra.mxu0 0.0
      %922 = vmatprep.subr.mxu0 0.0
      %923 = vmatpush1.msra.mxu0 0.0
      %924 = vmatprep.subr.mxu0 0.0
      %925 = vmatpush1.msra.mxu0 0.0
      %926 = vmatprep.subr.mxu0 0.0
      %927 = vmatpush1.msra.mxu0 0.0
      %928 = vmatprep.subr.mxu0 0.0
      %929 = vmatpush1.msra.mxu0 0.0
      %930 = vmatprep.subr.mxu0 0.0
      %931 = vmatpush1.msra.mxu0 0.0
      %932 = vmatprep.subr.mxu0 0.0
      %933 = vmatpush1.msra.mxu0 0.0
      %934 = vmatprep.mubr.f32.mxu0 0.0
      %935 = vmatmul.mubr.f32.gmra.mrb[0].mxu0 %v497
      %v936 = vpop.f32.mrb[0].mxu0
      %v937 = vadd.f32 %v488, %v936
      %v938 = vpop.f32.mrb[0].mxu0
      %939 = vmatprep.mubr.f32.mxu0 0.0
      %940 = vmatmul.mubr.f32.gmra.mrb[0].mxu0 %v500
      %v941 = vpop.f32.mrb[0].mxu0
      %v942 = vadd.f32 %v493, %v941
      %v943 = vpop.f32.mrb[0].mxu0
      %944 = vdwg.mxu0
      %v945 = vmax.f32 %v937, 0.0
      %v946 = vmax.f32 %v942, 0.0
      %s947 = scalar_lea.vmem %s419, 64
      %948 = vst.msk [vmem:[%s947] sm:$0xff] %vm579, %v945
      %949 = vst.msk [vmem:[%s947 + $0x8] sm:$0xff] %vm579, %v946
      %951 = vrot.lane.b32.xlu0 %v430, 127
      %v952 = vpop.permute.xlu0 %951
      %955 = vrot.lane.b32.xlu0 %v446, 127
      %v956 = vpop.permute.xlu0 %955
      %959 = vrot.lane.b32.xlu0 %v462, 127
      %v960 = vpop.permute.xlu0 %959
      %962 = vmatprep.subr.mxu0 0.0
      %963 = vmatpush1.msra.mxu0 %v430
      %964 = vmatprep.subr.mxu0 0.0
      %965 = vmatpush1.msra.mxu0 %v438
      %966 = vmatprep.subr.mxu0 0.0
      %967 = vmatpush1.msra.mxu0 %v952
      %968 = vmatprep.subr.mxu0 0.0
      %969 = vmatpush1.msra.mxu0 %v446
      %970 = vmatprep.subr.mxu0 0.0
      %971 = vmatpush1.msra.mxu0 %v454
      %972 = vmatprep.subr.mxu0 0.0
      %973 = vmatpush1.msra.mxu0 %v956
      %974 = vmatprep.subr.mxu0 0.0
      %975 = vmatpush1.msra.mxu0 %v462
      %976 = vmatprep.subr.mxu0 0.0
      %977 = vmatpush1.msra.mxu0 %v470
      %978 = vmatprep.subr.mxu0 0.0
      %979 = vmatpush1.msra.mxu0 %v960
      %980 = vmatprep.subr.mxu0 0.0
      %981 = vmatpush1.msra.mxu0 0.0
      %982 = vmatprep.subr.mxu0 0.0
      %983 = vmatpush1.msra.mxu0 0.0
      %984 = vmatprep.subr.mxu0 0.0
      %985 = vmatpush1.msra.mxu0 0.0
      %986 = vmatprep.subr.mxu0 0.0
      %987 = vmatpush1.msra.mxu0 0.0
      %988 = vmatprep.subr.mxu0 0.0
      %989 = vmatpush1.msra.mxu0 0.0
      %990 = vmatprep.subr.mxu0 0.0
      %991 = vmatpush1.msra.mxu0 0.0
      %992 = vmatprep.subr.mxu0 0.0
      %993 = vmatpush1.msra.mxu0 0.0
      %994 = vmatprep.subr.mxu0 0.0
      %995 = vmatpush1.msra.mxu0 0.0
      %996 = vmatprep.subr.mxu0 0.0
      %997 = vmatpush1.msra.mxu0 0.0
      %998 = vmatprep.subr.mxu0 0.0
      %999 = vmatpush1.msra.mxu0 0.0
      %1000 = vmatprep.subr.mxu0 0.0
      %1001 = vmatpush1.msra.mxu0 0.0
      %1002 = vmatprep.subr.mxu0 0.0
      %1003 = vmatpush1.msra.mxu0 0.0
      %1004 = vmatprep.subr.mxu0 0.0
      %1005 = vmatpush1.msra.mxu0 0.0
      %1006 = vmatprep.subr.mxu0 0.0
      %1007 = vmatpush1.msra.mxu0 0.0
      %1008 = vmatprep.subr.mxu0 0.0
      %1009 = vmatpush1.msra.mxu0 0.0
      %1010 = vmatprep.subr.mxu0 0.0
      %1011 = vmatpush1.msra.mxu0 0.0
      %1012 = vmatprep.subr.mxu0 0.0
      %1013 = vmatpush1.msra.mxu0 0.0
      %1014 = vmatprep.subr.mxu0 0.0
      %1015 = vmatpush1.msra.mxu0 0.0
      %1016 = vmatprep.subr.mxu0 0.0
      %1017 = vmatpush1.msra.mxu0 0.0
      %1018 = vmatprep.subr.mxu0 0.0
      %1019 = vmatpush1.msra.mxu0 0.0
      %1020 = vmatprep.subr.mxu0 0.0
      %1021 = vmatpush1.msra.mxu0 0.0
      %1022 = vmatprep.subr.mxu0 0.0
      %1023 = vmatpush1.msra.mxu0 0.0
      %1024 = vmatprep.subr.mxu0 0.0
      %1025 = vmatpush1.msra.mxu0 0.0
      %1026 = vmatprep.mubr.f32.mxu0 0.0
      %1027 = vmatmul.mubr.f32.gmra.mrb[0].mxu0 %v497
      %v1028 = vpop.f32.mrb[0].mxu0
      %v1029 = vadd.f32 %v488, %v1028
      %v1030 = vpop.f32.mrb[0].mxu0
      %1031 = vmatprep.mubr.f32.mxu0 0.0
      %1032 = vmatmul.mubr.f32.gmra.mrb[0].mxu0 %v500
      %v1033 = vpop.f32.mrb[0].mxu0
      %v1034 = vadd.f32 %v493, %v1033
      %v1035 = vpop.f32.mrb[0].mxu0
      %1036 = vdwg.mxu0
      %v1037 = vmax.f32 %v1029, 0.0
      %v1038 = vmax.f32 %v1034, 0.0
      %s1039 = scalar_lea.vmem %s419, 80
      %1040 = vst.msk [vmem:[%s1039] sm:$0xff] %vm579, %v1037
      %1041 = vst.msk [vmem:[%s1039 + $0x8] sm:$0xff] %vm579, %v1038
      %1043 = vrot.lane.b32.xlu0 %v431, 127
      %v1044 = vpop.permute.xlu0 %1043
      %1047 = vrot.lane.b32.xlu0 %v447, 127
      %v1048 = vpop.permute.xlu0 %1047
      %1051 = vrot.lane.b32.xlu0 %v463, 127
      %v1052 = vpop.permute.xlu0 %1051
      %1054 = vmatprep.subr.mxu0 0.0
      %1055 = vmatpush1.msra.mxu0 %v431
      %1056 = vmatprep.subr.mxu0 0.0
      %1057 = vmatpush1.msra.mxu0 %v439
      %1058 = vmatprep.subr.mxu0 0.0
      %1059 = vmatpush1.msra.mxu0 %v1044
      %1060 = vmatprep.subr.mxu0 0.0
      %1061 = vmatpush1.msra.mxu0 %v447
      %1062 = vmatprep.subr.mxu0 0.0
      %1063 = vmatpush1.msra.mxu0 %v455
      %1064 = vmatprep.subr.mxu0 0.0
      %1065 = vmatpush1.msra.mxu0 %v1048
      %1066 = vmatprep.subr.mxu0 0.0
      %1067 = vmatpush1.msra.mxu0 %v463
      %1068 = vmatprep.subr.mxu0 0.0
      %1069 = vmatpush1.msra.mxu0 %v471
      %1070 = vmatprep.subr.mxu0 0.0
      %1071 = vmatpush1.msra.mxu0 %v1052
      %1072 = vmatprep.subr.mxu0 0.0
      %1073 = vmatpush1.msra.mxu0 0.0
      %1074 = vmatprep.subr.mxu0 0.0
      %1075 = vmatpush1.msra.mxu0 0.0
      %1076 = vmatprep.subr.mxu0 0.0
      %1077 = vmatpush1.msra.mxu0 0.0
      %1078 = vmatprep.subr.mxu0 0.0
      %1079 = vmatpush1.msra.mxu0 0.0
      %1080 = vmatprep.subr.mxu0 0.0
      %1081 = vmatpush1.msra.mxu0 0.0
      %1082 = vmatprep.subr.mxu0 0.0
      %1083 = vmatpush1.msra.mxu0 0.0
      %1084 = vmatprep.subr.mxu0 0.0
      %1085 = vmatpush1.msra.mxu0 0.0
      %1086 = vmatprep.subr.mxu0 0.0
      %1087 = vmatpush1.msra.mxu0 0.0
      %1088 = vmatprep.subr.mxu0 0.0
      %1089 = vmatpush1.msra.mxu0 0.0
      %1090 = vmatprep.subr.mxu0 0.0
      %1091 = vmatpush1.msra.mxu0 0.0
      %1092 = vmatprep.subr.mxu0 0.0
      %1093 = vmatpush1.msra.mxu0 0.0
      %1094 = vmatprep.subr.mxu0 0.0
      %1095 = vmatpush1.msra.mxu0 0.0
      %1096 = vmatprep.subr.mxu0 0.0
      %1097 = vmatpush1.msra.mxu0 0.0
      %1098 = vmatprep.subr.mxu0 0.0
      %1099 = vmatpush1.msra.mxu0 0.0
      %1100 = vmatprep.subr.mxu0 0.0
      %1101 = vmatpush1.msra.mxu0 0.0
      %1102 = vmatprep.subr.mxu0 0.0
      %1103 = vmatpush1.msra.mxu0 0.0
      %1104 = vmatprep.subr.mxu0 0.0
      %1105 = vmatpush1.msra.mxu0 0.0
      %1106 = vmatprep.subr.mxu0 0.0
      %1107 = vmatpush1.msra.mxu0 0.0
      %1108 = vmatprep.subr.mxu0 0.0
      %1109 = vmatpush1.msra.mxu0 0.0
      %1110 = vmatprep.subr.mxu0 0.0
      %1111 = vmatpush1.msra.mxu0 0.0
      %1112 = vmatprep.subr.mxu0 0.0
      %1113 = vmatpush1.msra.mxu0 0.0
      %1114 = vmatprep.subr.mxu0 0.0
      %1115 = vmatpush1.msra.mxu0 0.0
      %1116 = vmatprep.subr.mxu0 0.0
      %1117 = vmatpush1.msra.mxu0 0.0
      %1118 = vmatprep.mubr.f32.mxu0 0.0
      %1119 = vmatmul.mubr.f32.gmra.mrb[0].mxu0 %v497
      %v1120 = vpop.f32.mrb[0].mxu0
      %v1121 = vadd.f32 %v488, %v1120
      %v1122 = vpop.f32.mrb[0].mxu0
      %1123 = vmatprep.mubr.f32.mxu0 0.0
      %1124 = vmatmul.mubr.f32.gmra.mrb[0].mxu0 %v500
      %v1125 = vpop.f32.mrb[0].mxu0
      %v1126 = vadd.f32 %v493, %v1125
      %v1127 = vpop.f32.mrb[0].mxu0
      %1128 = vdwg.mxu0
      %v1129 = vmax.f32 %v1121, 0.0
      %v1130 = vmax.f32 %v1126, 0.0
      %s1131 = scalar_lea.vmem %s419, 96
      %1132 = vst.msk [vmem:[%s1131] sm:$0xff] %vm579, %v1129
      %1133 = vst.msk [vmem:[%s1131 + $0x8] sm:$0xff] %vm579, %v1130
      %1135 = vrot.lane.b32.xlu0 %v432, 127
      %v1136 = vpop.permute.xlu0 %1135
      %1139 = vrot.lane.b32.xlu0 %v448, 127
      %v1140 = vpop.permute.xlu0 %1139
      %1143 = vrot.lane.b32.xlu0 %v464, 127
      %v1144 = vpop.permute.xlu0 %1143
      %1146 = vmatprep.subr.mxu0 0.0
      %1147 = vmatpush1.msra.mxu0 %v432
      %1148 = vmatprep.subr.mxu0 0.0
      %1149 = vmatpush1.msra.mxu0 %v440
      %1150 = vmatprep.subr.mxu0 0.0
      %1151 = vmatpush1.msra.mxu0 %v1136
      %1152 = vmatprep.subr.mxu0 0.0
      %1153 = vmatpush1.msra.mxu0 %v448
      %1154 = vmatprep.subr.mxu0 0.0
      %1155 = vmatpush1.msra.mxu0 %v456
      %1156 = vmatprep.subr.mxu0 0.0
      %1157 = vmatpush1.msra.mxu0 %v1140
      %1158 = vmatprep.subr.mxu0 0.0
      %1159 = vmatpush1.msra.mxu0 %v464
      %1160 = vmatprep.subr.mxu0 0.0
      %1161 = vmatpush1.msra.mxu0 %v472
      %1162 = vmatprep.subr.mxu0 0.0
      %1163 = vmatpush1.msra.mxu0 %v1144
      %1164 = vmatprep.subr.mxu0 0.0
      %1165 = vmatpush1.msra.mxu0 0.0
      %1166 = vmatprep.subr.mxu0 0.0
      %1167 = vmatpush1.msra.mxu0 0.0
      %1168 = vmatprep.subr.mxu0 0.0
      %1169 = vmatpush1.msra.mxu0 0.0
      %1170 = vmatprep.subr.mxu0 0.0
      %1171 = vmatpush1.msra.mxu0 0.0
      %1172 = vmatprep.subr.mxu0 0.0
      %1173 = vmatpush1.msra.mxu0 0.0
      %1174 = vmatprep.subr.mxu0 0.0
      %1175 = vmatpush1.msra.mxu0 0.0
      %1176 = vmatprep.subr.mxu0 0.0
      %1177 = vmatpush1.msra.mxu0 0.0
      %1178 = vmatprep.subr.mxu0 0.0
      %1179 = vmatpush1.msra.mxu0 0.0
      %1180 = vmatprep.subr.mxu0 0.0
      %1181 = vmatpush1.msra.mxu0 0.0
      %1182 = vmatprep.subr.mxu0 0.0
      %1183 = vmatpush1.msra.mxu0 0.0
      %1184 = vmatprep.subr.mxu0 0.0
      %1185 = vmatpush1.msra.mxu0 0.0
      %1186 = vmatprep.subr.mxu0 0.0
      %1187 = vmatpush1.msra.mxu0 0.0
      %1188 = vmatprep.subr.mxu0 0.0
      %1189 = vmatpush1.msra.mxu0 0.0
      %1190 = vmatprep.subr.mxu0 0.0
      %1191 = vmatpush1.msra.mxu0 0.0
      %1192 = vmatprep.subr.mxu0 0.0
      %1193 = vmatpush1.msra.mxu0 0.0
      %1194 = vmatprep.subr.mxu0 0.0
      %1195 = vmatpush1.msra.mxu0 0.0
      %1196 = vmatprep.subr.mxu0 0.0
      %1197 = vmatpush1.msra.mxu0 0.0
      %1198 = vmatprep.subr.mxu0 0.0
      %1199 = vmatpush1.msra.mxu0 0.0
      %1200 = vmatprep.subr.mxu0 0.0
      %1201 = vmatpush1.msra.mxu0 0.0
      %1202 = vmatprep.subr.mxu0 0.0
      %1203 = vmatpush1.msra.mxu0 0.0
      %1204 = vmatprep.subr.mxu0 0.0
      %1205 = vmatpush1.msra.mxu0 0.0
      %1206 = vmatprep.subr.mxu0 0.0
      %1207 = vmatpush1.msra.mxu0 0.0
      %1208 = vmatprep.subr.mxu0 0.0
      %1209 = vmatpush1.msra.mxu0 0.0
      %1210 = vmatprep.mubr.f32.mxu0 0.0
      %1211 = vmatmul.mubr.f32.gmra.mrb[0].mxu0 %v497
      %v1212 = vpop.f32.mrb[0].mxu0
      %v1213 = vadd.f32 %v488, %v1212
      %v1214 = vpop.f32.mrb[0].mxu0
      %1215 = vmatprep.mubr.f32.mxu0 0.0
      %1216 = vmatmul.mubr.f32.gmra.mrb[0].mxu0 %v500
      %v1217 = vpop.f32.mrb[0].mxu0
      %v1218 = vadd.f32 %v493, %v1217
      %v1219 = vpop.f32.mrb[0].mxu0
      %1220 = vdwg.mxu0
      %v1221 = vmax.f32 %v1213, 0.0
      %v1222 = vmax.f32 %v1218, 0.0
      %s1223 = scalar_lea.vmem %s419, 112
      %1224 = vst.msk [vmem:[%s1223] sm:$0xff] %vm579, %v1221
      %1225 = vst.msk [vmem:[%s1223 + $0x8] sm:$0xff] %vm579, %v1222
      %s1226 = smul.u32 8, %s19
      %p1227 = scmp.lt.s32.totalorder %s1226, 15
      %s1228 = scalar_select %p1227, %s1226, 15
      %s1229 = smul.addr %s1228, 2
      %s1230 = smul.addr %s1229, 8
      %s1231 = scalar_lea.vmem %s8, %s1230
      // Predicated region
      $region53: #{a_call__.2} parent=51 // pred_check
        %p1232 = pneg %p235
      $region54: #{a_call__.2} parent=51 // pred_check_branch
        %1234 = sbr.rel (%p1232) target = $region56
      $region55: #{a_call__.2} parent=51 // pred_region
        %s1235 = smul.u32 8, %s19
      $region56: #{a_call__.2} parent=51 // pred_fallthru
        _
    $region52: #{a_call__.2} parent=5 // pred_fallthru
      _
    %p1236 = scmp.le.s32.totalorder 2, %s14
    // Predicated region
    $region57: #{a_call__.2} parent=5 // pred_check
      %p1237 = pneg %p1236
    $region58: #{a_call__.2} parent=5 // pred_check_branch
      %1239 = sbr.rel (%p1237) target = $region60
    $region59: #{a_call__.2} parent=5 // pred_region
      %s1240 = ssub.s32 %s14, 2
      // Predicated region
      $region61: #{a_call__.2} parent=59 // pred_check
        %p1241 = pneg %p241
      $region62: #{a_call__.2} parent=59 // pred_check_branch
        %1243 = sbr.rel (%p1241) target = $region64
      $region63: #{a_call__.2} parent=59 // pred_region
        %s1244 = smul.u32 8, %s20
        %p1245 = scmp.lt.s32.totalorder %s1244, 15
        %s1246 = scalar_select %p1245, %s1244, 15
        %s1247 = smul.addr %s1246, 2
        %s1248 = smul.addr %s1247, 8
        %s1249 = scalar_lea.vmem %s8, %s1248
      $region64: #{a_call__.2} parent=59 // pred_fallthru
        _
    $region60: #{a_call__.2} parent=5 // pred_fallthru
      _
  $region6: #{a_call__.2} parent=0 // loop_footer
    %s18 = sadd.s32 1, %s14
  $region7: #{a_call__.2} parent=0 // loop_footer_branch
    %13 = sbr.rel target = $region3
  $region8: #{a_call__.2} parent=0 // loop_exit
    _

</llo_original>
